<compile_context>
chip_gen: v7x
topology: tpu7x:2x2x1
jax: 0.10.0
libtpu: 0.0.40
codegen_flags: <defaults>
</compile_context>

<pallas_src>
import numpy as np

import jax
import jax.numpy as jnp
from jax import lax
from jax.experimental import pallas as pl
from jax.experimental.pallas import tpu as pltpu


# ----------------------------- fused kernel --------------------------------
#
# Per-sample layouts (lane dim is always the interleaved (W, C) axis):
#   X   : (32, 96)   X[h, w*3+ic]      = input[n, ic, h, w]
#   A1  : (28, 168)  A1[h, x*6+oc]     = relu(conv1)[n, oc, h, x]
#   P1  : (14, 84)   P1[h, x*6+ic]     = pool1[n, ic, h, x]
#   A2  : (10, 160)  A2[h, x*16+oc]    = relu(conv2)[n, oc, h, x]
#   P2  : (5, 80)    P2[h, x*16+oc]    = pool2[n, oc, h, x]
#
# conv = sum_i  rows[i:i+OH] @ M_i      (M_i = banded weight matrix)
# pool = max(Re @ A, Ro @ A) then max(. @ Ce, . @ Co)   (0/1 selectors)
# fc1  = sum_h  P2[h:h+1] @ F1[h]       (torch (C,H,W) flatten folded in F1)

def _lenet_kernel(x_ref, m1_ref, b1_ref, re1_ref, ro1_ref, ce1_ref, co1_ref,
                  m2_ref, b2_ref, re2_ref, ro2_ref, ce2_ref, co2_ref,
                  f1_ref, fb1_ref, f2_ref, fb2_ref, f3_ref, fb3_ref,
                  out_ref, p1_scr, p2_scr):
    f32 = jnp.float32

    # ---- conv1 (5x5 valid, 3->6) + bias + ReLU -> (28, 168) ----
    a1 = jnp.dot(x_ref[pl.ds(0, 28), :], m1_ref[0], preferred_element_type=f32)
    for i in range(1, 5):
        a1 = a1 + jnp.dot(x_ref[pl.ds(i, 28), :], m1_ref[i],
                          preferred_element_type=f32)
    a1 = jnp.maximum(a1 + b1_ref[...], 0.0)

    # ---- maxpool 2x2 -> (14, 84) ----
    rmax = jnp.maximum(jnp.dot(re1_ref[...], a1, preferred_element_type=f32),
                       jnp.dot(ro1_ref[...], a1, preferred_element_type=f32))
    p1_scr[...] = jnp.maximum(
        jnp.dot(rmax, ce1_ref[...], preferred_element_type=f32),
        jnp.dot(rmax, co1_ref[...], preferred_element_type=f32))

    # ---- conv2 (5x5 valid, 6->16) + bias + ReLU -> (10, 160) ----
    a2 = jnp.dot(p1_scr[pl.ds(0, 10), :], m2_ref[0], preferred_element_type=f32)
    for i in range(1, 5):
        a2 = a2 + jnp.dot(p1_scr[pl.ds(i, 10), :], m2_ref[i],
                          preferred_element_type=f32)
    a2 = jnp.maximum(a2 + b2_ref[...], 0.0)

    # ---- maxpool 2x2 -> (5, 80) ----
    rmax2 = jnp.maximum(jnp.dot(re2_ref[...], a2, preferred_element_type=f32),
                        jnp.dot(ro2_ref[...], a2, preferred_element_type=f32))
    p2_scr[...] = jnp.maximum(
        jnp.dot(rmax2, ce2_ref[...], preferred_element_type=f32),
        jnp.dot(rmax2, co2_ref[...], preferred_element_type=f32))

    # ---- fc1 (400 -> 120) + ReLU  (torch flatten order folded into f1_ref) ----
    y = jnp.dot(p2_scr[pl.ds(0, 1), :], f1_ref[0], preferred_element_type=f32)
    for h in range(1, 5):
        y = y + jnp.dot(p2_scr[pl.ds(h, 1), :], f1_ref[h],
                        preferred_element_type=f32)
    y = jnp.maximum(y + fb1_ref[...], 0.0)

    # ---- fc2 (120 -> 84) + ReLU ----
    y = jnp.maximum(
        jnp.dot(y, f2_ref[...], preferred_element_type=f32) + fb2_ref[...], 0.0)

    # ---- fc3 (84 -> 10) ----
    y = jnp.dot(y, f3_ref[...], preferred_element_type=f32) + fb3_ref[...]

    out_ref[...] = y                       # (1, 10) block of the (N, 1, 10) output


def _const_index_map(rank):
    return lambda i: (0,) * rank


def net_forward(prep, x):
    """x: (N, 3, 32, 32) float32 NCHW (PyTorch layout).  Returns (N, 10)."""
    n = x.shape[0]
    # one tiny layout op on the 6 KB input: NCHW -> (N, H, W*C)
    x2 = jnp.transpose(x, (0, 2, 3, 1)).reshape(n, 32, 32 * 3)

    in_specs = [pl.BlockSpec((None, 32, 96), lambda i: (i, 0, 0))]
    in_specs += [pl.BlockSpec(a.shape, _const_index_map(a.ndim)) for a in prep]

    out = pl.pallas_call(
        _lenet_kernel,
        out_shape=jax.ShapeDtypeStruct((n, 1, 10), jnp.float32),
        grid_spec=pltpu.PrefetchScalarGridSpec(
            num_scalar_prefetch=0,
            grid=(n,),
            in_specs=in_specs,
            out_specs=pl.BlockSpec((None, 1, 10), lambda i: (i, 0, 0)),
            scratch_shapes=[pltpu.VMEM((14, 84), jnp.float32),
                            pltpu.VMEM((5, 80), jnp.float32)]),
        compiler_params=pltpu.CompilerParams(
            dimension_semantics=("parallel",)),
    )(x2, *prep)
    return out.reshape(n, 10)


# ---------------------- one-time parameter packing --------------------------

def prepare_inputs(params):
    """Pack torch-shaped parameters into TPU-friendly operands.  Runs once."""
    w1 = np.asarray(params["conv1_w"], np.float32)   # (6, 3, 5, 5)
    b1 = np.asarray(params["conv1_b"], np.float32)
    w2 = np.asarray(params["conv2_w"], np.float32)   # (16, 6, 5, 5)
    b2 = np.asarray(params["conv2_b"], np.float32)
    f1w = np.asarray(params["fc1_w"], np.float32)    # (120, 400)
    f1b = np.asarray(params["fc1_b"], np.float32)
    f2w = np.asarray(params["fc2_w"], np.float32)    # (84, 120)
    f2b = np.asarray(params["fc2_b"], np.float32)
    f3w = np.asarray(params["fc3_w"], np.float32)    # (10, 84)
    f3b = np.asarray(params["fc3_b"], np.float32)

    # conv1 banded matrices: m1[i, w*3+ic, x*6+oc] = w1[oc, ic, i, w-x], 0<=w-x<5
    m1 = np.zeros((5, 96, 168), np.float32)
    for i in range(5):
        for x in range(28):
            for j in range(5):
                w = x + j
                m1[i, w * 3:w * 3 + 3, x * 6:x * 6 + 6] = w1[:, :, i, j].T
    b1row = np.tile(b1, 28)[None, :]                  # (1, 168)

    # pool-1 selectors (rows then interleaved columns)
    re1 = np.zeros((14, 28), np.float32)
    ro1 = np.zeros((14, 28), np.float32)
    re1[np.arange(14), 2 * np.arange(14)] = 1.0
    ro1[np.arange(14), 2 * np.arange(14) + 1] = 1.0
    ce1 = np.zeros((168, 84), np.float32)
    co1 = np.zeros((168, 84), np.float32)
    for xo in range(14):
        for oc in range(6):
            ce1[(2 * xo) * 6 + oc, xo * 6 + oc] = 1.0
            co1[(2 * xo + 1) * 6 + oc, xo * 6 + oc] = 1.0

    # conv2 banded matrices: m2[i, w*6+ic, x*16+oc] = w2[oc, ic, i, w-x]
    m2 = np.zeros((5, 84, 160), np.float32)
    for i in range(5):
        for x in range(10):
            for j in range(5):
                w = x + j
                m2[i, w * 6:w * 6 + 6, x * 16:x * 16 + 16] = w2[:, :, i, j].T
    b2row = np.tile(b2, 10)[None, :]                  # (1, 160)

    # pool-2 selectors
    re2 = np.zeros((5, 10), np.float32)
    ro2 = np.zeros((5, 10), np.float32)
    re2[np.arange(5), 2 * np.arange(5)] = 1.0
    ro2[np.arange(5), 2 * np.arange(5) + 1] = 1.0
    ce2 = np.zeros((160, 80), np.float32)
    co2 = np.zeros((160, 80), np.float32)
    for xo in range(5):
        for oc in range(16):
            ce2[(2 * xo) * 16 + oc, xo * 16 + oc] = 1.0
            co2[(2 * xo + 1) * 16 + oc, xo * 16 + oc] = 1.0

    # fc1: fold torch's (C, H, W) flatten order into the weight and split by
    # the pooled row h -> no in-kernel flatten / activation permutation.
    fc1p = np.zeros((5, 80, 120), np.float32)
    for h in range(5):
        for w in range(5):
            for c in range(16):
                fc1p[h, w * 16 + c, :] = f1w[:, c * 25 + h * 5 + w]

    prep = (m1, b1row, re1, ro1, ce1, co1,
            m2, b2row, re2, ro2, ce2, co2,
            fc1p, f1b[None, :], f2w.T.copy(), f2b[None, :],
            f3w.T.copy(), f3b[None, :])
    return tuple(jnp.asarray(a) for a in prep)


# ----------------------------- params & reference ---------------------------

def init_params(key):
    """Deterministic init matching the torch module's parameter shapes."""
    def uniform(k, shape, fan_in):
        bound = 1.0 / (fan_in ** 0.5)
        return jax.random.uniform(k, shape, jnp.float32, -bound, bound)

    ks = jax.random.split(key, 10)
    return {
        "conv1_w": uniform(ks[0], (6, 3, 5, 5), 3 * 5 * 5),
        "conv1_b": uniform(ks[1], (6,), 3 * 5 * 5),
        "conv2_w": uniform(ks[2], (16, 6, 5, 5), 6 * 5 * 5),
        "conv2_b": uniform(ks[3], (16,), 6 * 5 * 5),
        "fc1_w": uniform(ks[4], (120, 400), 400),
        "fc1_b": uniform(ks[5], (120,), 400),
        "fc2_w": uniform(ks[6], (84, 120), 120),
        "fc2_b": uniform(ks[7], (84,), 120),
        "fc3_w": uniform(ks[8], (10, 84), 84),
        "fc3_b": uniform(ks[9], (10,), 84),
    }


def reference_forward(params, x):
    """Plain-XLA reference with identical semantics (for validation only)."""
    dn = ("NCHW", "OIHW", "NCHW")
    y = lax.conv_general_dilated(x, params["conv1_w"], (1, 1), "VALID",
                                 dimension_numbers=dn)
    y = jnp.maximum(y + params["conv1_b"][None, :, None, None], 0.0)
    y = lax.reduce_window(y, -jnp.inf, lax.max, (1, 1, 2, 2), (1, 1, 2, 2), "VALID")
    y = lax.conv_general_dilated(y, params["conv2_w"], (1, 1), "VALID",
                                 dimension_numbers=dn)
    y = jnp.maximum(y + params["conv2_b"][None, :, None, None], 0.0)
    y = lax.reduce_window(y, -jnp.inf, lax.max, (1, 1, 2, 2), (1, 1, 2, 2), "VALID")
    y = y.reshape(y.shape[0], -1)
    y = jnp.maximum(y @ params["fc1_w"].T + params["fc1_b"], 0.0)
    y = jnp.maximum(y @ params["fc2_w"].T + params["fc2_b"], 0.0)
    return y @ params["fc3_w"].T + params["fc3_b"]


if __name__ == "__main__":
    key = jax.random.PRNGKey(0)
    pkey, xkey = jax.random.split(key)
    params = init_params(pkey)
    prep = prepare_inputs(params)

    # fc1's 16*5*5 input implies a 32x32 spatial input (CIFAR-10); small batch.
    x = jax.random.normal(xkey, (2, 3, 32, 32), jnp.float32)

    out = jax.jit(net_forward)(prep, x)
    out = jax.block_until_ready(out)
    assert out.shape == (2, 10) and out.dtype == jnp.float32

    ref = jax.block_until_ready(jax.jit(reference_forward)(params, x))
    assert jnp.allclose(out, ref, rtol=5e-2, atol=5e-2), (out, ref)

    print("KERNEL_OK")
</pallas_src>

<mosaic_0001>
module attributes {stable_mosaic.version = 11 : i64} {
  func.func @_lenet_kernel(%arg0: i32, %arg1: memref<1x32x96xf32, #tpu.memory_space<vmem>>, %arg2: memref<5x96x168xf32, #tpu.memory_space<vmem>>, %arg3: memref<1x168xf32, #tpu.memory_space<vmem>>, %arg4: memref<14x28xf32, #tpu.memory_space<vmem>>, %arg5: memref<14x28xf32, #tpu.memory_space<vmem>>, %arg6: memref<168x84xf32, #tpu.memory_space<vmem>>, %arg7: memref<168x84xf32, #tpu.memory_space<vmem>>, %arg8: memref<5x84x160xf32, #tpu.memory_space<vmem>>, %arg9: memref<1x160xf32, #tpu.memory_space<vmem>>, %arg10: memref<5x10xf32, #tpu.memory_space<vmem>>, %arg11: memref<5x10xf32, #tpu.memory_space<vmem>>, %arg12: memref<160x80xf32, #tpu.memory_space<vmem>>, %arg13: memref<160x80xf32, #tpu.memory_space<vmem>>, %arg14: memref<5x80x120xf32, #tpu.memory_space<vmem>>, %arg15: memref<1x120xf32, #tpu.memory_space<vmem>>, %arg16: memref<120x84xf32, #tpu.memory_space<vmem>>, %arg17: memref<1x84xf32, #tpu.memory_space<vmem>>, %arg18: memref<84x10xf32, #tpu.memory_space<vmem>>, %arg19: memref<1x10xf32, #tpu.memory_space<vmem>>, %arg20: memref<1x1x10xf32, #tpu.memory_space<vmem>>, %arg21: memref<14x84xf32, #tpu.memory_space<vmem>>, %arg22: memref<5x80xf32, #tpu.memory_space<vmem>>) attributes {dimension_semantics = [#tpu.dimension_semantics<parallel>], iteration_bounds = array<i64: 2>, scalar_prefetch = 0 : i64, scratch_operands = 2 : i64, tpu.core_type = #tpu.core_type<tc>, window_params = [{transform_indices = @transform_0, window_bounds = array<i64: 1, 32, 96>}, {pipeline_mode = #tpu.pipeline_mode<synchronous>, transform_indices = @transform_1, window_bounds = array<i64: 5, 96, 168>}, {pipeline_mode = #tpu.pipeline_mode<synchronous>, transform_indices = @transform_2, window_bounds = array<i64: 1, 168>}, {pipeline_mode = #tpu.pipeline_mode<synchronous>, transform_indices = @transform_3, window_bounds = array<i64: 14, 28>}, {pipeline_mode = #tpu.pipeline_mode<synchronous>, transform_indices = @transform_4, window_bounds = array<i64: 14, 28>}, {pipeline_mode = #tpu.pipeline_mode<synchronous>, transform_indices = @transform_5, window_bounds = array<i64: 168, 84>}, {pipeline_mode = #tpu.pipeline_mode<synchronous>, transform_indices = @transform_6, window_bounds = array<i64: 168, 84>}, {pipeline_mode = #tpu.pipeline_mode<synchronous>, transform_indices = @transform_7, window_bounds = array<i64: 5, 84, 160>}, {pipeline_mode = #tpu.pipeline_mode<synchronous>, transform_indices = @transform_8, window_bounds = array<i64: 1, 160>}, {pipeline_mode = #tpu.pipeline_mode<synchronous>, transform_indices = @transform_9, window_bounds = array<i64: 5, 10>}, {pipeline_mode = #tpu.pipeline_mode<synchronous>, transform_indices = @transform_10, window_bounds = array<i64: 5, 10>}, {pipeline_mode = #tpu.pipeline_mode<synchronous>, transform_indices = @transform_11, window_bounds = array<i64: 160, 80>}, {pipeline_mode = #tpu.pipeline_mode<synchronous>, transform_indices = @transform_12, window_bounds = array<i64: 160, 80>}, {pipeline_mode = #tpu.pipeline_mode<synchronous>, transform_indices = @transform_13, window_bounds = array<i64: 5, 80, 120>}, {pipeline_mode = #tpu.pipeline_mode<synchronous>, transform_indices = @transform_14, window_bounds = array<i64: 1, 120>}, {pipeline_mode = #tpu.pipeline_mode<synchronous>, transform_indices = @transform_15, window_bounds = array<i64: 120, 84>}, {pipeline_mode = #tpu.pipeline_mode<synchronous>, transform_indices = @transform_16, window_bounds = array<i64: 1, 84>}, {pipeline_mode = #tpu.pipeline_mode<synchronous>, transform_indices = @transform_17, window_bounds = array<i64: 84, 10>}, {pipeline_mode = #tpu.pipeline_mode<synchronous>, transform_indices = @transform_18, window_bounds = array<i64: 1, 10>}, {transform_indices = @transform_19, window_bounds = array<i64: 1, 1, 10>}]} {
    %c0 = arith.constant 0 : index
    %c0_0 = arith.constant 0 : index
    %c0_1 = arith.constant 0 : index
    %0 = vector.load %arg1[%c0, %c0_0, %c0_1] : memref<1x32x96xf32, #tpu.memory_space<vmem>>, vector<1x28x96xf32>
    %1 = vector.shape_cast %0 : vector<1x28x96xf32> to vector<28x96xf32>
    %c0_2 = arith.constant 0 : index
    %c0_3 = arith.constant 0 : index
    %c0_4 = arith.constant 0 : index
    %2 = vector.load %arg2[%c0_2, %c0_3, %c0_4] : memref<5x96x168xf32, #tpu.memory_space<vmem>>, vector<1x96x168xf32>
    %3 = vector.shape_cast %2 : vector<1x96x168xf32> to vector<96x168xf32>
    %cst = arith.constant dense<0.000000e+00> : vector<28x168xf32>
    %4 = tpu.matmul %1, %3, %cst {dimension_numbers = #tpu.dot_dimension_numbers<[1], [0], [0], [1], [0, 0, 1, 1], [], []>} : vector<28x96xf32>, vector<96x168xf32>, vector<28x168xf32> -> vector<28x168xf32>
    %c0_5 = arith.constant 0 : index
    %c1 = arith.constant 1 : index
    %c0_6 = arith.constant 0 : index
    %5 = vector.load %arg1[%c0_5, %c1, %c0_6] : memref<1x32x96xf32, #tpu.memory_space<vmem>>, vector<1x28x96xf32>
    %6 = vector.shape_cast %5 : vector<1x28x96xf32> to vector<28x96xf32>
    %c1_7 = arith.constant 1 : index
    %c0_8 = arith.constant 0 : index
    %c0_9 = arith.constant 0 : index
    %7 = vector.load %arg2[%c1_7, %c0_8, %c0_9] : memref<5x96x168xf32, #tpu.memory_space<vmem>>, vector<1x96x168xf32>
    %8 = vector.shape_cast %7 : vector<1x96x168xf32> to vector<96x168xf32>
    %cst_10 = arith.constant dense<0.000000e+00> : vector<28x168xf32>
    %9 = tpu.matmul %6, %8, %cst_10 {dimension_numbers = #tpu.dot_dimension_numbers<[1], [0], [0], [1], [0, 0, 1, 1], [], []>} : vector<28x96xf32>, vector<96x168xf32>, vector<28x168xf32> -> vector<28x168xf32>
    %10 = arith.addf %4, %9 : vector<28x168xf32>
    %c0_11 = arith.constant 0 : index
    %c2 = arith.constant 2 : index
    %c0_12 = arith.constant 0 : index
    %11 = vector.load %arg1[%c0_11, %c2, %c0_12] : memref<1x32x96xf32, #tpu.memory_space<vmem>>, vector<1x28x96xf32>
    %12 = vector.shape_cast %11 : vector<1x28x96xf32> to vector<28x96xf32>
    %c2_13 = arith.constant 2 : index
    %c0_14 = arith.constant 0 : index
    %c0_15 = arith.constant 0 : index
    %13 = vector.load %arg2[%c2_13, %c0_14, %c0_15] : memref<5x96x168xf32, #tpu.memory_space<vmem>>, vector<1x96x168xf32>
    %14 = vector.shape_cast %13 : vector<1x96x168xf32> to vector<96x168xf32>
    %cst_16 = arith.constant dense<0.000000e+00> : vector<28x168xf32>
    %15 = tpu.matmul %12, %14, %cst_16 {dimension_numbers = #tpu.dot_dimension_numbers<[1], [0], [0], [1], [0, 0, 1, 1], [], []>} : vector<28x96xf32>, vector<96x168xf32>, vector<28x168xf32> -> vector<28x168xf32>
    %16 = arith.addf %10, %15 : vector<28x168xf32>
    %c0_17 = arith.constant 0 : index
    %c3 = arith.constant 3 : index
    %c0_18 = arith.constant 0 : index
    %17 = vector.load %arg1[%c0_17, %c3, %c0_18] : memref<1x32x96xf32, #tpu.memory_space<vmem>>, vector<1x28x96xf32>
    %18 = vector.shape_cast %17 : vector<1x28x96xf32> to vector<28x96xf32>
    %c3_19 = arith.constant 3 : index
    %c0_20 = arith.constant 0 : index
    %c0_21 = arith.constant 0 : index
    %19 = vector.load %arg2[%c3_19, %c0_20, %c0_21] : memref<5x96x168xf32, #tpu.memory_space<vmem>>, vector<1x96x168xf32>
    %20 = vector.shape_cast %19 : vector<1x96x168xf32> to vector<96x168xf32>
    %cst_22 = arith.constant dense<0.000000e+00> : vector<28x168xf32>
    %21 = tpu.matmul %18, %20, %cst_22 {dimension_numbers = #tpu.dot_dimension_numbers<[1], [0], [0], [1], [0, 0, 1, 1], [], []>} : vector<28x96xf32>, vector<96x168xf32>, vector<28x168xf32> -> vector<28x168xf32>
    %22 = arith.addf %16, %21 : vector<28x168xf32>
    %c0_23 = arith.constant 0 : index
    %c4 = arith.constant 4 : index
    %c0_24 = arith.constant 0 : index
    %23 = vector.load %arg1[%c0_23, %c4, %c0_24] : memref<1x32x96xf32, #tpu.memory_space<vmem>>, vector<1x28x96xf32>
    %24 = vector.shape_cast %23 : vector<1x28x96xf32> to vector<28x96xf32>
    %c4_25 = arith.constant 4 : index
    %c0_26 = arith.constant 0 : index
    %c0_27 = arith.constant 0 : index
    %25 = vector.load %arg2[%c4_25, %c0_26, %c0_27] : memref<5x96x168xf32, #tpu.memory_space<vmem>>, vector<1x96x168xf32>
    %26 = vector.shape_cast %25 : vector<1x96x168xf32> to vector<96x168xf32>
    %cst_28 = arith.constant dense<0.000000e+00> : vector<28x168xf32>
    %27 = tpu.matmul %24, %26, %cst_28 {dimension_numbers = #tpu.dot_dimension_numbers<[1], [0], [0], [1], [0, 0, 1, 1], [], []>} : vector<28x96xf32>, vector<96x168xf32>, vector<28x168xf32> -> vector<28x168xf32>
    %28 = arith.addf %22, %27 : vector<28x168xf32>
    %c0_29 = arith.constant 0 : index
    %c0_30 = arith.constant 0 : index
    %29 = vector.load %arg3[%c0_29, %c0_30] : memref<1x168xf32, #tpu.memory_space<vmem>>, vector<1x168xf32>
    %30 = vector.broadcast %29 : vector<1x168xf32> to vector<28x168xf32>
    %31 = arith.addf %28, %30 : vector<28x168xf32>
    %cst_31 = arith.constant 0.000000e+00 : f32
    %32 = vector.broadcast %cst_31 : f32 to vector<28x168xf32>
    %33 = arith.maximumf %31, %32 : vector<28x168xf32>
    %c0_32 = arith.constant 0 : index
    %c0_33 = arith.constant 0 : index
    %34 = vector.load %arg4[%c0_32, %c0_33] : memref<14x28xf32, #tpu.memory_space<vmem>>, vector<14x28xf32>
    %cst_34 = arith.constant dense<0.000000e+00> : vector<14x168xf32>
    %35 = tpu.matmul %34, %33, %cst_34 {dimension_numbers = #tpu.dot_dimension_numbers<[1], [0], [0], [1], [0, 0, 1, 1], [], []>} : vector<14x28xf32>, vector<28x168xf32>, vector<14x168xf32> -> vector<14x168xf32>
    %c0_35 = arith.constant 0 : index
    %c0_36 = arith.constant 0 : index
    %36 = vector.load %arg5[%c0_35, %c0_36] : memref<14x28xf32, #tpu.memory_space<vmem>>, vector<14x28xf32>
    %cst_37 = arith.constant dense<0.000000e+00> : vector<14x168xf32>
    %37 = tpu.matmul %36, %33, %cst_37 {dimension_numbers = #tpu.dot_dimension_numbers<[1], [0], [0], [1], [0, 0, 1, 1], [], []>} : vector<14x28xf32>, vector<28x168xf32>, vector<14x168xf32> -> vector<14x168xf32>
    %38 = arith.maximumf %35, %37 : vector<14x168xf32>
    %c0_38 = arith.constant 0 : index
    %c0_39 = arith.constant 0 : index
    %39 = vector.load %arg6[%c0_38, %c0_39] : memref<168x84xf32, #tpu.memory_space<vmem>>, vector<168x84xf32>
    %cst_40 = arith.constant dense<0.000000e+00> : vector<14x84xf32>
    %40 = tpu.matmul %38, %39, %cst_40 {dimension_numbers = #tpu.dot_dimension_numbers<[1], [0], [0], [1], [0, 0, 1, 1], [], []>} : vector<14x168xf32>, vector<168x84xf32>, vector<14x84xf32> -> vector<14x84xf32>
    %c0_41 = arith.constant 0 : index
    %c0_42 = arith.constant 0 : index
    %41 = vector.load %arg7[%c0_41, %c0_42] : memref<168x84xf32, #tpu.memory_space<vmem>>, vector<168x84xf32>
    %cst_43 = arith.constant dense<0.000000e+00> : vector<14x84xf32>
    %42 = tpu.matmul %38, %41, %cst_43 {dimension_numbers = #tpu.dot_dimension_numbers<[1], [0], [0], [1], [0, 0, 1, 1], [], []>} : vector<14x168xf32>, vector<168x84xf32>, vector<14x84xf32> -> vector<14x84xf32>
    %43 = arith.maximumf %40, %42 : vector<14x84xf32>
    %c0_44 = arith.constant 0 : index
    %c0_45 = arith.constant 0 : index
    %44 = vector.load %arg21[%c0_44, %c0_45] : memref<14x84xf32, #tpu.memory_space<vmem>>, vector<14x84xf32>
    tpu.vector_store %arg21[%c0_44, %c0_45], %43 {strides = array<i32>} : memref<14x84xf32, #tpu.memory_space<vmem>>, vector<14x84xf32>,
    %c0_46 = arith.constant 0 : index
    %c0_47 = arith.constant 0 : index
    %45 = vector.load %arg21[%c0_46, %c0_47] : memref<14x84xf32, #tpu.memory_space<vmem>>, vector<10x84xf32>
    %c0_48 = arith.constant 0 : index
    %c0_49 = arith.constant 0 : index
    %c0_50 = arith.constant 0 : index
    %46 = vector.load %arg8[%c0_48, %c0_49, %c0_50] : memref<5x84x160xf32, #tpu.memory_space<vmem>>, vector<1x84x160xf32>
    %47 = vector.shape_cast %46 : vector<1x84x160xf32> to vector<84x160xf32>
    %cst_51 = arith.constant dense<0.000000e+00> : vector<10x160xf32>
    %48 = tpu.matmul %45, %47, %cst_51 {dimension_numbers = #tpu.dot_dimension_numbers<[1], [0], [0], [1], [0, 0, 1, 1], [], []>} : vector<10x84xf32>, vector<84x160xf32>, vector<10x160xf32> -> vector<10x160xf32>
    %c1_52 = arith.constant 1 : index
    %c0_53 = arith.constant 0 : index
    %49 = vector.load %arg21[%c1_52, %c0_53] : memref<14x84xf32, #tpu.memory_space<vmem>>, vector<10x84xf32>
    %c1_54 = arith.constant 1 : index
    %c0_55 = arith.constant 0 : index
    %c0_56 = arith.constant 0 : index
    %50 = vector.load %arg8[%c1_54, %c0_55, %c0_56] : memref<5x84x160xf32, #tpu.memory_space<vmem>>, vector<1x84x160xf32>
    %51 = vector.shape_cast %50 : vector<1x84x160xf32> to vector<84x160xf32>
    %cst_57 = arith.constant dense<0.000000e+00> : vector<10x160xf32>
    %52 = tpu.matmul %49, %51, %cst_57 {dimension_numbers = #tpu.dot_dimension_numbers<[1], [0], [0], [1], [0, 0, 1, 1], [], []>} : vector<10x84xf32>, vector<84x160xf32>, vector<10x160xf32> -> vector<10x160xf32>
    %53 = arith.addf %48, %52 : vector<10x160xf32>
    %c2_58 = arith.constant 2 : index
    %c0_59 = arith.constant 0 : index
    %54 = vector.load %arg21[%c2_58, %c0_59] : memref<14x84xf32, #tpu.memory_space<vmem>>, vector<10x84xf32>
    %c2_60 = arith.constant 2 : index
    %c0_61 = arith.constant 0 : index
    %c0_62 = arith.constant 0 : index
    %55 = vector.load %arg8[%c2_60, %c0_61, %c0_62] : memref<5x84x160xf32, #tpu.memory_space<vmem>>, vector<1x84x160xf32>
    %56 = vector.shape_cast %55 : vector<1x84x160xf32> to vector<84x160xf32>
    %cst_63 = arith.constant dense<0.000000e+00> : vector<10x160xf32>
    %57 = tpu.matmul %54, %56, %cst_63 {dimension_numbers = #tpu.dot_dimension_numbers<[1], [0], [0], [1], [0, 0, 1, 1], [], []>} : vector<10x84xf32>, vector<84x160xf32>, vector<10x160xf32> -> vector<10x160xf32>
    %58 = arith.addf %53, %57 : vector<10x160xf32>
    %c3_64 = arith.constant 3 : index
    %c0_65 = arith.constant 0 : index
    %59 = vector.load %arg21[%c3_64, %c0_65] : memref<14x84xf32, #tpu.memory_space<vmem>>, vector<10x84xf32>
    %c3_66 = arith.constant 3 : index
    %c0_67 = arith.constant 0 : index
    %c0_68 = arith.constant 0 : index
    %60 = vector.load %arg8[%c3_66, %c0_67, %c0_68] : memref<5x84x160xf32, #tpu.memory_space<vmem>>, vector<1x84x160xf32>
    %61 = vector.shape_cast %60 : vector<1x84x160xf32> to vector<84x160xf32>
    %cst_69 = arith.constant dense<0.000000e+00> : vector<10x160xf32>
    %62 = tpu.matmul %59, %61, %cst_69 {dimension_numbers = #tpu.dot_dimension_numbers<[1], [0], [0], [1], [0, 0, 1, 1], [], []>} : vector<10x84xf32>, vector<84x160xf32>, vector<10x160xf32> -> vector<10x160xf32>
    %63 = arith.addf %58, %62 : vector<10x160xf32>
    %c4_70 = arith.constant 4 : index
    %c0_71 = arith.constant 0 : index
    %64 = vector.load %arg21[%c4_70, %c0_71] : memref<14x84xf32, #tpu.memory_space<vmem>>, vector<10x84xf32>
    %c4_72 = arith.constant 4 : index
    %c0_73 = arith.constant 0 : index
    %c0_74 = arith.constant 0 : index
    %65 = vector.load %arg8[%c4_72, %c0_73, %c0_74] : memref<5x84x160xf32, #tpu.memory_space<vmem>>, vector<1x84x160xf32>
    %66 = vector.shape_cast %65 : vector<1x84x160xf32> to vector<84x160xf32>
    %cst_75 = arith.constant dense<0.000000e+00> : vector<10x160xf32>
    %67 = tpu.matmul %64, %66, %cst_75 {dimension_numbers = #tpu.dot_dimension_numbers<[1], [0], [0], [1], [0, 0, 1, 1], [], []>} : vector<10x84xf32>, vector<84x160xf32>, vector<10x160xf32> -> vector<10x160xf32>
    %68 = arith.addf %63, %67 : vector<10x160xf32>
    %c0_76 = arith.constant 0 : index
    %c0_77 = arith.constant 0 : index
    %69 = vector.load %arg9[%c0_76, %c0_77] : memref<1x160xf32, #tpu.memory_space<vmem>>, vector<1x160xf32>
    %70 = vector.broadcast %69 : vector<1x160xf32> to vector<10x160xf32>
    %71 = arith.addf %68, %70 : vector<10x160xf32>
    %cst_78 = arith.constant 0.000000e+00 : f32
    %72 = vector.broadcast %cst_78 : f32 to vector<10x160xf32>
    %73 = arith.maximumf %71, %72 : vector<10x160xf32>
    %c0_79 = arith.constant 0 : index
    %c0_80 = arith.constant 0 : index
    %74 = vector.load %arg10[%c0_79, %c0_80] : memref<5x10xf32, #tpu.memory_space<vmem>>, vector<5x10xf32>
    %cst_81 = arith.constant dense<0.000000e+00> : vector<5x160xf32>
    %75 = tpu.matmul %74, %73, %cst_81 {dimension_numbers = #tpu.dot_dimension_numbers<[1], [0], [0], [1], [0, 0, 1, 1], [], []>} : vector<5x10xf32>, vector<10x160xf32>, vector<5x160xf32> -> vector<5x160xf32>
    %c0_82 = arith.constant 0 : index
    %c0_83 = arith.constant 0 : index
    %76 = vector.load %arg11[%c0_82, %c0_83] : memref<5x10xf32, #tpu.memory_space<vmem>>, vector<5x10xf32>
    %cst_84 = arith.constant dense<0.000000e+00> : vector<5x160xf32>
    %77 = tpu.matmul %76, %73, %cst_84 {dimension_numbers = #tpu.dot_dimension_numbers<[1], [0], [0], [1], [0, 0, 1, 1], [], []>} : vector<5x10xf32>, vector<10x160xf32>, vector<5x160xf32> -> vector<5x160xf32>
    %78 = arith.maximumf %75, %77 : vector<5x160xf32>
    %c0_85 = arith.constant 0 : index
    %c0_86 = arith.constant 0 : index
    %79 = vector.load %arg12[%c0_85, %c0_86] : memref<160x80xf32, #tpu.memory_space<vmem>>, vector<160x80xf32>
    %cst_87 = arith.constant dense<0.000000e+00> : vector<5x80xf32>
    %80 = tpu.matmul %78, %79, %cst_87 {dimension_numbers = #tpu.dot_dimension_numbers<[1], [0], [0], [1], [0, 0, 1, 1], [], []>} : vector<5x160xf32>, vector<160x80xf32>, vector<5x80xf32> -> vector<5x80xf32>
    %c0_88 = arith.constant 0 : index
    %c0_89 = arith.constant 0 : index
    %81 = vector.load %arg13[%c0_88, %c0_89] : memref<160x80xf32, #tpu.memory_space<vmem>>, vector<160x80xf32>
    %cst_90 = arith.constant dense<0.000000e+00> : vector<5x80xf32>
    %82 = tpu.matmul %78, %81, %cst_90 {dimension_numbers = #tpu.dot_dimension_numbers<[1], [0], [0], [1], [0, 0, 1, 1], [], []>} : vector<5x160xf32>, vector<160x80xf32>, vector<5x80xf32> -> vector<5x80xf32>
    %83 = arith.maximumf %80, %82 : vector<5x80xf32>
    %c0_91 = arith.constant 0 : index
    %c0_92 = arith.constant 0 : index
    %84 = vector.load %arg22[%c0_91, %c0_92] : memref<5x80xf32, #tpu.memory_space<vmem>>, vector<5x80xf32>
    tpu.vector_store %arg22[%c0_91, %c0_92], %83 {strides = array<i32>} : memref<5x80xf32, #tpu.memory_space<vmem>>, vector<5x80xf32>,
    %c0_93 = arith.constant 0 : index
    %c0_94 = arith.constant 0 : index
    %85 = vector.load %arg22[%c0_93, %c0_94] : memref<5x80xf32, #tpu.memory_space<vmem>>, vector<1x80xf32>
    %c0_95 = arith.constant 0 : index
    %c0_96 = arith.constant 0 : index
    %c0_97 = arith.constant 0 : index
    %86 = vector.load %arg14[%c0_95, %c0_96, %c0_97] : memref<5x80x120xf32, #tpu.memory_space<vmem>>, vector<1x80x120xf32>
    %87 = vector.shape_cast %86 : vector<1x80x120xf32> to vector<80x120xf32>
    %cst_98 = arith.constant dense<0.000000e+00> : vector<1x120xf32>
    %88 = tpu.matmul %85, %87, %cst_98 {dimension_numbers = #tpu.dot_dimension_numbers<[1], [0], [0], [1], [0, 0, 1, 1], [], []>} : vector<1x80xf32>, vector<80x120xf32>, vector<1x120xf32> -> vector<1x120xf32>
    %c1_99 = arith.constant 1 : index
    %c0_100 = arith.constant 0 : index
    %89 = vector.load %arg22[%c1_99, %c0_100] : memref<5x80xf32, #tpu.memory_space<vmem>>, vector<1x80xf32>
    %c1_101 = arith.constant 1 : index
    %c0_102 = arith.constant 0 : index
    %c0_103 = arith.constant 0 : index
    %90 = vector.load %arg14[%c1_101, %c0_102, %c0_103] : memref<5x80x120xf32, #tpu.memory_space<vmem>>, vector<1x80x120xf32>
    %91 = vector.shape_cast %90 : vector<1x80x120xf32> to vector<80x120xf32>
    %cst_104 = arith.constant dense<0.000000e+00> : vector<1x120xf32>
    %92 = tpu.matmul %89, %91, %cst_104 {dimension_numbers = #tpu.dot_dimension_numbers<[1], [0], [0], [1], [0, 0, 1, 1], [], []>} : vector<1x80xf32>, vector<80x120xf32>, vector<1x120xf32> -> vector<1x120xf32>
    %93 = arith.addf %88, %92 : vector<1x120xf32>
    %c2_105 = arith.constant 2 : index
    %c0_106 = arith.constant 0 : index
    %94 = vector.load %arg22[%c2_105, %c0_106] : memref<5x80xf32, #tpu.memory_space<vmem>>, vector<1x80xf32>
    %c2_107 = arith.constant 2 : index
    %c0_108 = arith.constant 0 : index
    %c0_109 = arith.constant 0 : index
    %95 = vector.load %arg14[%c2_107, %c0_108, %c0_109] : memref<5x80x120xf32, #tpu.memory_space<vmem>>, vector<1x80x120xf32>
    %96 = vector.shape_cast %95 : vector<1x80x120xf32> to vector<80x120xf32>
    %cst_110 = arith.constant dense<0.000000e+00> : vector<1x120xf32>
    %97 = tpu.matmul %94, %96, %cst_110 {dimension_numbers = #tpu.dot_dimension_numbers<[1], [0], [0], [1], [0, 0, 1, 1], [], []>} : vector<1x80xf32>, vector<80x120xf32>, vector<1x120xf32> -> vector<1x120xf32>
    %98 = arith.addf %93, %97 : vector<1x120xf32>
    %c3_111 = arith.constant 3 : index
    %c0_112 = arith.constant 0 : index
    %99 = vector.load %arg22[%c3_111, %c0_112] : memref<5x80xf32, #tpu.memory_space<vmem>>, vector<1x80xf32>
    %c3_113 = arith.constant 3 : index
    %c0_114 = arith.constant 0 : index
    %c0_115 = arith.constant 0 : index
    %100 = vector.load %arg14[%c3_113, %c0_114, %c0_115] : memref<5x80x120xf32, #tpu.memory_space<vmem>>, vector<1x80x120xf32>
    %101 = vector.shape_cast %100 : vector<1x80x120xf32> to vector<80x120xf32>
    %cst_116 = arith.constant dense<0.000000e+00> : vector<1x120xf32>
    %102 = tpu.matmul %99, %101, %cst_116 {dimension_numbers = #tpu.dot_dimension_numbers<[1], [0], [0], [1], [0, 0, 1, 1], [], []>} : vector<1x80xf32>, vector<80x120xf32>, vector<1x120xf32> -> vector<1x120xf32>
    %103 = arith.addf %98, %102 : vector<1x120xf32>
    %c4_117 = arith.constant 4 : index
    %c0_118 = arith.constant 0 : index
    %104 = vector.load %arg22[%c4_117, %c0_118] : memref<5x80xf32, #tpu.memory_space<vmem>>, vector<1x80xf32>
    %c4_119 = arith.constant 4 : index
    %c0_120 = arith.constant 0 : index
    %c0_121 = arith.constant 0 : index
    %105 = vector.load %arg14[%c4_119, %c0_120, %c0_121] : memref<5x80x120xf32, #tpu.memory_space<vmem>>, vector<1x80x120xf32>
    %106 = vector.shape_cast %105 : vector<1x80x120xf32> to vector<80x120xf32>
    %cst_122 = arith.constant dense<0.000000e+00> : vector<1x120xf32>
    %107 = tpu.matmul %104, %106, %cst_122 {dimension_numbers = #tpu.dot_dimension_numbers<[1], [0], [0], [1], [0, 0, 1, 1], [], []>} : vector<1x80xf32>, vector<80x120xf32>, vector<1x120xf32> -> vector<1x120xf32>
    %108 = arith.addf %103, %107 : vector<1x120xf32>
    %c0_123 = arith.constant 0 : index
    %c0_124 = arith.constant 0 : index
    %109 = vector.load %arg15[%c0_123, %c0_124] : memref<1x120xf32, #tpu.memory_space<vmem>>, vector<1x120xf32>
    %110 = arith.addf %108, %109 : vector<1x120xf32>
    %cst_125 = arith.constant 0.000000e+00 : f32
    %111 = vector.broadcast %cst_125 : f32 to vector<1x120xf32>
    %112 = arith.maximumf %110, %111 : vector<1x120xf32>
    %c0_126 = arith.constant 0 : index
    %c0_127 = arith.constant 0 : index
    %113 = vector.load %arg16[%c0_126, %c0_127] : memref<120x84xf32, #tpu.memory_space<vmem>>, vector<120x84xf32>
    %cst_128 = arith.constant dense<0.000000e+00> : vector<1x84xf32>
    %114 = tpu.matmul %112, %113, %cst_128 {dimension_numbers = #tpu.dot_dimension_numbers<[1], [0], [0], [1], [0, 0, 1, 1], [], []>} : vector<1x120xf32>, vector<120x84xf32>, vector<1x84xf32> -> vector<1x84xf32>
    %c0_129 = arith.constant 0 : index
    %c0_130 = arith.constant 0 : index
    %115 = vector.load %arg17[%c0_129, %c0_130] : memref<1x84xf32, #tpu.memory_space<vmem>>, vector<1x84xf32>
    %116 = arith.addf %114, %115 : vector<1x84xf32>
    %cst_131 = arith.constant 0.000000e+00 : f32
    %117 = vector.broadcast %cst_131 : f32 to vector<1x84xf32>
    %118 = arith.maximumf %116, %117 : vector<1x84xf32>
    %c0_132 = arith.constant 0 : index
    %c0_133 = arith.constant 0 : index
    %119 = vector.load %arg18[%c0_132, %c0_133] : memref<84x10xf32, #tpu.memory_space<vmem>>, vector<84x10xf32>
    %cst_134 = arith.constant dense<0.000000e+00> : vector<1x10xf32>
    %120 = tpu.matmul %118, %119, %cst_134 {dimension_numbers = #tpu.dot_dimension_numbers<[1], [0], [0], [1], [0, 0, 1, 1], [], []>} : vector<1x84xf32>, vector<84x10xf32>, vector<1x10xf32> -> vector<1x10xf32>
    %c0_135 = arith.constant 0 : index
    %c0_136 = arith.constant 0 : index
    %121 = vector.load %arg19[%c0_135, %c0_136] : memref<1x10xf32, #tpu.memory_space<vmem>>, vector<1x10xf32>
    %122 = arith.addf %120, %121 : vector<1x10xf32>
    %c0_137 = arith.constant 0 : index
    %c0_138 = arith.constant 0 : index
    %c0_139 = arith.constant 0 : index
    %123 = vector.load %arg20[%c0_137, %c0_138, %c0_139] : memref<1x1x10xf32, #tpu.memory_space<vmem>>, vector<1x1x10xf32>
    %124 = vector.shape_cast %123 : vector<1x1x10xf32> to vector<1x10xf32>
    %125 = vector.shape_cast %122 : vector<1x10xf32> to vector<1x1x10xf32>
    tpu.vector_store %arg20[%c0_137, %c0_138, %c0_139], %125 {strides = array<i32>} : memref<1x1x10xf32, #tpu.memory_space<vmem>>, vector<1x1x10xf32>,
    return
  }
  func.func @transform_0(%arg0: i32) -> (i32, i32, i32) {
    %c0_i32 = arith.constant 0 : i32
    %c0_i32_0 = arith.constant 0 : i32
    %c0_i32_1 = arith.constant 0 : i32
    return %arg0, %c0_i32, %c0_i32_0 : i32, i32, i32
  }
  func.func @transform_1(%arg0: i32) -> (i32, i32, i32) {
    %c0_i32 = arith.constant 0 : i32
    %c0_i32_0 = arith.constant 0 : i32
    %c0_i32_1 = arith.constant 0 : i32
    %c0_i32_2 = arith.constant 0 : i32
    return %c0_i32, %c0_i32_0, %c0_i32_1 : i32, i32, i32
  }
  func.func @transform_2(%arg0: i32) -> (i32, i32) {
    %c0_i32 = arith.constant 0 : i32
    %c0_i32_0 = arith.constant 0 : i32
    %c0_i32_1 = arith.constant 0 : i32
    return %c0_i32, %c0_i32_0 : i32, i32
  }
  func.func @transform_3(%arg0: i32) -> (i32, i32) {
    %c0_i32 = arith.constant 0 : i32
    %c0_i32_0 = arith.constant 0 : i32
    %c0_i32_1 = arith.constant 0 : i32
    return %c0_i32, %c0_i32_0 : i32, i32
  }
  func.func @transform_4(%arg0: i32) -> (i32, i32) {
    %c0_i32 = arith.constant 0 : i32
    %c0_i32_0 = arith.constant 0 : i32
    %c0_i32_1 = arith.constant 0 : i32
    return %c0_i32, %c0_i32_0 : i32, i32
  }
  func.func @transform_5(%arg0: i32) -> (i32, i32) {
    %c0_i32 = arith.constant 0 : i32
    %c0_i32_0 = arith.constant 0 : i32
    %c0_i32_1 = arith.constant 0 : i32
    return %c0_i32, %c0_i32_0 : i32, i32
  }
  func.func @transform_6(%arg0: i32) -> (i32, i32) {
    %c0_i32 = arith.constant 0 : i32
    %c0_i32_0 = arith.constant 0 : i32
    %c0_i32_1 = arith.constant 0 : i32
    return %c0_i32, %c0_i32_0 : i32, i32
  }
  func.func @transform_7(%arg0: i32) -> (i32, i32, i32) {
    %c0_i32 = arith.constant 0 : i32
    %c0_i32_0 = arith.constant 0 : i32
    %c0_i32_1 = arith.constant 0 : i32
    %c0_i32_2 = arith.constant 0 : i32
    return %c0_i32, %c0_i32_0, %c0_i32_1 : i32, i32, i32
  }
  func.func @transform_8(%arg0: i32) -> (i32, i32) {
    %c0_i32 = arith.constant 0 : i32
    %c0_i32_0 = arith.constant 0 : i32
    %c0_i32_1 = arith.constant 0 : i32
    return %c0_i32, %c0_i32_0 : i32, i32
  }
  func.func @transform_9(%arg0: i32) -> (i32, i32) {
    %c0_i32 = arith.constant 0 : i32
    %c0_i32_0 = arith.constant 0 : i32
    %c0_i32_1 = arith.constant 0 : i32
    return %c0_i32, %c0_i32_0 : i32, i32
  }
  func.func @transform_10(%arg0: i32) -> (i32, i32) {
    %c0_i32 = arith.constant 0 : i32
    %c0_i32_0 = arith.constant 0 : i32
    %c0_i32_1 = arith.constant 0 : i32
    return %c0_i32, %c0_i32_0 : i32, i32
  }
  func.func @transform_11(%arg0: i32) -> (i32, i32) {
    %c0_i32 = arith.constant 0 : i32
    %c0_i32_0 = arith.constant 0 : i32
    %c0_i32_1 = arith.constant 0 : i32
    return %c0_i32, %c0_i32_0 : i32, i32
  }
  func.func @transform_12(%arg0: i32) -> (i32, i32) {
    %c0_i32 = arith.constant 0 : i32
    %c0_i32_0 = arith.constant 0 : i32
    %c0_i32_1 = arith.constant 0 : i32
    return %c0_i32, %c0_i32_0 : i32, i32
  }
  func.func @transform_13(%arg0: i32) -> (i32, i32, i32) {
    %c0_i32 = arith.constant 0 : i32
    %c0_i32_0 = arith.constant 0 : i32
    %c0_i32_1 = arith.constant 0 : i32
    %c0_i32_2 = arith.constant 0 : i32
    return %c0_i32, %c0_i32_0, %c0_i32_1 : i32, i32, i32
  }
  func.func @transform_14(%arg0: i32) -> (i32, i32) {
    %c0_i32 = arith.constant 0 : i32
    %c0_i32_0 = arith.constant 0 : i32
    %c0_i32_1 = arith.constant 0 : i32
    return %c0_i32, %c0_i32_0 : i32, i32
  }
  func.func @transform_15(%arg0: i32) -> (i32, i32) {
    %c0_i32 = arith.constant 0 : i32
    %c0_i32_0 = arith.constant 0 : i32
    %c0_i32_1 = arith.constant 0 : i32
    return %c0_i32, %c0_i32_0 : i32, i32
  }
  func.func @transform_16(%arg0: i32) -> (i32, i32) {
    %c0_i32 = arith.constant 0 : i32
    %c0_i32_0 = arith.constant 0 : i32
    %c0_i32_1 = arith.constant 0 : i32
    return %c0_i32, %c0_i32_0 : i32, i32
  }
  func.func @transform_17(%arg0: i32) -> (i32, i32) {
    %c0_i32 = arith.constant 0 : i32
    %c0_i32_0 = arith.constant 0 : i32
    %c0_i32_1 = arith.constant 0 : i32
    return %c0_i32, %c0_i32_0 : i32, i32
  }
  func.func @transform_18(%arg0: i32) -> (i32, i32) {
    %c0_i32 = arith.constant 0 : i32
    %c0_i32_0 = arith.constant 0 : i32
    %c0_i32_1 = arith.constant 0 : i32
    return %c0_i32, %c0_i32_0 : i32, i32
  }
  func.func @transform_19(%arg0: i32) -> (i32, i32, i32) {
    %c0_i32 = arith.constant 0 : i32
    %c0_i32_0 = arith.constant 0 : i32
    %c0_i32_1 = arith.constant 0 : i32
    return %arg0, %c0_i32, %c0_i32_0 : i32, i32, i32
  }
}

</mosaic_0001>

<llo_original>
// kernel: net_forward.1
$region0: #{net_forward.1}
  #allocation0 [shape = 'u32[]', space=smem, size = 0x4, offset = 0x4, fixed_abs, tag = 'smem constant byte address 0x4 - core index']
  #allocation1 [shape = 'u32[144,128]{1,0:T(1,128)}', space=vmem, size = 0x12000, scoped, tag = 'internal scratch']
  #allocation2 [shape = 'f32[14,84]{1,0:T(8,128)}', space=vmem, size = 0x2000, scoped, tag = 'scratch operand']
  #allocation3 [shape = 'f32[5,80]{1,0:T(8,128)}', space=vmem, size = 0x1000, scoped, tag = 'scratch operand']
  %s0 = inlined_call_operand.vmem [shape: f32[2,32,96], index: 0, kind: input, shape index: {}]
  %s1 = inlined_call_operand.vmem [shape: f32[5,96,168], index: 1, kind: input, shape index: {}]
  %s2 = inlined_call_operand.vmem [shape: f32[1,168], index: 2, kind: input, shape index: {}]
  %s3 = inlined_call_operand.vmem [shape: f32[14,28], index: 3, kind: input, shape index: {}]
  %s4 = inlined_call_operand.vmem [shape: f32[14,28], index: 4, kind: input, shape index: {}]
  %s5 = inlined_call_operand.vmem [shape: f32[168,84], index: 5, kind: input, shape index: {}]
  %s6 = inlined_call_operand.vmem [shape: f32[168,84], index: 6, kind: input, shape index: {}]
  %s7 = inlined_call_operand.vmem [shape: f32[5,84,160], index: 7, kind: input, shape index: {}]
  %s8 = inlined_call_operand.vmem [shape: f32[1,160], index: 8, kind: input, shape index: {}]
  %s9 = inlined_call_operand.vmem [shape: f32[5,10], index: 9, kind: input, shape index: {}]
  %s10 = inlined_call_operand.vmem [shape: f32[5,10], index: 10, kind: input, shape index: {}]
  %s11 = inlined_call_operand.vmem [shape: f32[160,80], index: 11, kind: input, shape index: {}]
  %s12 = inlined_call_operand.vmem [shape: f32[160,80], index: 12, kind: input, shape index: {}]
  %s13 = inlined_call_operand.vmem [shape: f32[5,80,120], index: 13, kind: input, shape index: {}]
  %s14 = inlined_call_operand.vmem [shape: f32[1,120], index: 14, kind: input, shape index: {}]
  %s15 = inlined_call_operand.vmem [shape: f32[120,84], index: 15, kind: input, shape index: {}]
  %s16 = inlined_call_operand.vmem [shape: f32[1,84], index: 16, kind: input, shape index: {}]
  %s17 = inlined_call_operand.vmem [shape: f32[84,10], index: 17, kind: input, shape index: {}]
  %s18 = inlined_call_operand.vmem [shape: f32[1,10], index: 18, kind: input, shape index: {}]
  %s19 = inlined_call_operand.hbm [shape: f32[2,1,10], index: 19, kind: output, shape index: {}]
  %s20 = sld [smem:[#allocation0]]
  $region109: #{net_forward.1} parent=0
    _
  %s22 = ssub.s32 1, %s20
  %s23 = scalar_select 0, %s22, %s20
  $region1: #{net_forward.1} parent=0
    #allocation4 [shape = 'u8[1024]{0}', space=vmem, size = 0x400, scoped, tag = 'output window, operand 0']
    #allocation5 [shape = 's32[2]{0}', space=sflag, size = 0x8, scoped, tag = 'scoped memory for net_forward.1']
    %24 = vsyncpa [#allocation5], 0
    %s25 = scalar_lea.sflag [#allocation5], 1
    %26 = vsyncpa %s25, 0
    loop: start=0, step=1, limit=4
    $region2: #{net_forward.1} parent=1 // loop_pre_header
      _
    $region3: #{net_forward.1} parent=1 // loop_header
      %s28 = sphi 0, %s32
      %p29 = scmp.ge.s32.totalorder %s28, 4
      %s38 = sphi 0, %s40
      %s41 = sphi 0, %s38
      %s42 = sphi 0, %s41
      %s58 = sphi 0, %s42
      %s62 = sphi 0, %s62
      %s64 = sphi 0, %s62
      %s65 = sphi 0, %s64
      %s79 = sphi 0, %s65
      %s83 = sphi 0, %s83
      %s85 = sphi 0, %s83
      %s86 = sphi 0, %s85
      %s100 = sphi 0, %s86
      %s104 = sphi 0, %s104
      %s106 = sphi 0, %s104
      %s107 = sphi 0, %s106
      %s121 = sphi 0, %s107
      %s125 = sphi 0, %s125
      %s127 = sphi 0, %s125
      %s128 = sphi 0, %s127
      %s142 = sphi 0, %s128
      %s146 = sphi 0, %s146
      %s148 = sphi 0, %s146
      %s149 = sphi 0, %s148
      %s163 = sphi 0, %s149
      %s167 = sphi 0, %s167
      %s169 = sphi 0, %s167
      %s170 = sphi 0, %s169
      %s184 = sphi 0, %s170
      %s188 = sphi 0, %s188
      %s190 = sphi 0, %s188
      %s191 = sphi 0, %s190
      %s205 = sphi 0, %s191
      %s209 = sphi 0, %s209
      %s211 = sphi 0, %s209
      %s212 = sphi 0, %s211
      %s226 = sphi 0, %s212
      %s230 = sphi 0, %s230
      %s232 = sphi 0, %s230
      %s233 = sphi 0, %s232
      %s247 = sphi 0, %s233
      %s251 = sphi 0, %s251
      %s253 = sphi 0, %s251
      %s254 = sphi 0, %s253
      %s268 = sphi 0, %s254
      %s272 = sphi 0, %s272
      %s274 = sphi 0, %s272
      %s275 = sphi 0, %s274
      %s289 = sphi 0, %s275
      %s293 = sphi 0, %s293
      %s295 = sphi 0, %s293
      %s296 = sphi 0, %s295
      %s310 = sphi 0, %s296
      %s314 = sphi 0, %s314
      %s316 = sphi 0, %s314
      %s317 = sphi 0, %s316
      %s331 = sphi 0, %s317
      %s335 = sphi 0, %s335
      %s337 = sphi 0, %s335
      %s338 = sphi 0, %s337
      %s352 = sphi 0, %s338
      %s356 = sphi 0, %s356
      %s358 = sphi 0, %s356
      %s359 = sphi 0, %s358
      %s373 = sphi 0, %s359
      %s377 = sphi 0, %s377
      %s379 = sphi 0, %s377
      %s380 = sphi 0, %s379
      %s394 = sphi 0, %s380
      %s398 = sphi 0, %s398
      %s400 = sphi 0, %s398
      %s401 = sphi 0, %s400
      %s415 = sphi 0, %s401
      %s419 = sphi 0, %s419
      %s421 = sphi 0, %s419
      %s422 = sphi 0, %s421
      %s436 = sphi 0, %s422
      %s442 = sphi 0, %s444
      %s445 = sphi 0, %s442
      %s446 = sphi 0, %s445
      %s462 = sphi 0, %s446
    $region4: #{net_forward.1} parent=1 // loop_header_branch
      %31 = sbr.rel (%p29) target = $region8
    $region5: #{net_forward.1} parent=1 // loop_body
      %s33 = ssub.s32 %s28, 1
      %s34 = ssub.s32 %s28, 2
      %s35 = sadd.s32 %s28, 1
      %s36 = ssub.s32 %s28, %s35
      %p37 = scmp.eq.s32.totalorder %s36, 0
      %s39 = sadd.s32 %s38, 1
      %s40 = scalar_select %p37, %s38, %s39
      %p43 = pneg %p37
      %p44 = scmp.eq.s32.totalorder %s28, 1
      %p45 = por %p43, %p44
      %p46 = scmp.ne.s32.totalorder %s38, %s41
      %p47 = scmp.eq.s32.totalorder %s28, 0
      %p48 = por %p46, %p47
      %p49 = scmp.ne.s32.totalorder %s38, %s41
      %p50 = scmp.eq.s32.totalorder %s33, 1
      %p51 = por %p49, %p50
      %p52 = scmp.ne.s32.totalorder %s41, %s42
      %p53 = scmp.eq.s32.totalorder %s33, 0
      %p54 = por %p52, %p53
      %p55 = scmp.ne.s32.totalorder %s41, %s42
      %p56 = scmp.eq.s32.totalorder %s34, 1
      %p57 = por %p55, %p56
      %p59 = scmp.ne.s32.totalorder %s42, %s58
      %p60 = scmp.eq.s32.totalorder %s34, 0
      %p61 = por %p59, %p60
      %s63 = sadd.s32 %s62, 1
      %p66 = scmp.eq.s32.totalorder %s28, 1
      %p67 = scmp.ne.s32.totalorder %s62, %s64
      %p68 = scmp.eq.s32.totalorder %s28, 0
      %p69 = por %p67, %p68
      %p70 = scmp.ne.s32.totalorder %s62, %s64
      %p71 = scmp.eq.s32.totalorder %s33, 1
      %p72 = por %p70, %p71
      %p73 = scmp.ne.s32.totalorder %s64, %s65
      %p74 = scmp.eq.s32.totalorder %s33, 0
      %p75 = por %p73, %p74
      %p76 = scmp.ne.s32.totalorder %s64, %s65
      %p77 = scmp.eq.s32.totalorder %s34, 1
      %p78 = por %p76, %p77
      %p80 = scmp.ne.s32.totalorder %s65, %s79
      %p81 = scmp.eq.s32.totalorder %s34, 0
      %p82 = por %p80, %p81
      %s84 = sadd.s32 %s83, 1
      %p87 = scmp.eq.s32.totalorder %s28, 1
      %p88 = scmp.ne.s32.totalorder %s83, %s85
      %p89 = scmp.eq.s32.totalorder %s28, 0
      %p90 = por %p88, %p89
      %p91 = scmp.ne.s32.totalorder %s83, %s85
      %p92 = scmp.eq.s32.totalorder %s33, 1
      %p93 = por %p91, %p92
      %p94 = scmp.ne.s32.totalorder %s85, %s86
      %p95 = scmp.eq.s32.totalorder %s33, 0
      %p96 = por %p94, %p95
      %p97 = scmp.ne.s32.totalorder %s85, %s86
      %p98 = scmp.eq.s32.totalorder %s34, 1
      %p99 = por %p97, %p98
      %p101 = scmp.ne.s32.totalorder %s86, %s100
      %p102 = scmp.eq.s32.totalorder %s34, 0
      %p103 = por %p101, %p102
      %s105 = sadd.s32 %s104, 1
      %p108 = scmp.eq.s32.totalorder %s28, 1
      %p109 = scmp.ne.s32.totalorder %s104, %s106
      %p110 = scmp.eq.s32.totalorder %s28, 0
      %p111 = por %p109, %p110
      %p112 = scmp.ne.s32.totalorder %s104, %s106
      %p113 = scmp.eq.s32.totalorder %s33, 1
      %p114 = por %p112, %p113
      %p115 = scmp.ne.s32.totalorder %s106, %s107
      %p116 = scmp.eq.s32.totalorder %s33, 0
      %p117 = por %p115, %p116
      %p118 = scmp.ne.s32.totalorder %s106, %s107
      %p119 = scmp.eq.s32.totalorder %s34, 1
      %p120 = por %p118, %p119
      %p122 = scmp.ne.s32.totalorder %s107, %s121
      %p123 = scmp.eq.s32.totalorder %s34, 0
      %p124 = por %p122, %p123
      %s126 = sadd.s32 %s125, 1
      %p129 = scmp.eq.s32.totalorder %s28, 1
      %p130 = scmp.ne.s32.totalorder %s125, %s127
      %p131 = scmp.eq.s32.totalorder %s28, 0
      %p132 = por %p130, %p131
      %p133 = scmp.ne.s32.totalorder %s125, %s127
      %p134 = scmp.eq.s32.totalorder %s33, 1
      %p135 = por %p133, %p134
      %p136 = scmp.ne.s32.totalorder %s127, %s128
      %p137 = scmp.eq.s32.totalorder %s33, 0
      %p138 = por %p136, %p137
      %p139 = scmp.ne.s32.totalorder %s127, %s128
      %p140 = scmp.eq.s32.totalorder %s34, 1
      %p141 = por %p139, %p140
      %p143 = scmp.ne.s32.totalorder %s128, %s142
      %p144 = scmp.eq.s32.totalorder %s34, 0
      %p145 = por %p143, %p144
      %s147 = sadd.s32 %s146, 1
      %p150 = scmp.eq.s32.totalorder %s28, 1
      %p151 = scmp.ne.s32.totalorder %s146, %s148
      %p152 = scmp.eq.s32.totalorder %s28, 0
      %p153 = por %p151, %p152
      %p154 = scmp.ne.s32.totalorder %s146, %s148
      %p155 = scmp.eq.s32.totalorder %s33, 1
      %p156 = por %p154, %p155
      %p157 = scmp.ne.s32.totalorder %s148, %s149
      %p158 = scmp.eq.s32.totalorder %s33, 0
      %p159 = por %p157, %p158
      %p160 = scmp.ne.s32.totalorder %s148, %s149
      %p161 = scmp.eq.s32.totalorder %s34, 1
      %p162 = por %p160, %p161
      %p164 = scmp.ne.s32.totalorder %s149, %s163
      %p165 = scmp.eq.s32.totalorder %s34, 0
      %p166 = por %p164, %p165
      %s168 = sadd.s32 %s167, 1
      %p171 = scmp.eq.s32.totalorder %s28, 1
      %p172 = scmp.ne.s32.totalorder %s167, %s169
      %p173 = scmp.eq.s32.totalorder %s28, 0
      %p174 = por %p172, %p173
      %p175 = scmp.ne.s32.totalorder %s167, %s169
      %p176 = scmp.eq.s32.totalorder %s33, 1
      %p177 = por %p175, %p176
      %p178 = scmp.ne.s32.totalorder %s169, %s170
      %p179 = scmp.eq.s32.totalorder %s33, 0
      %p180 = por %p178, %p179
      %p181 = scmp.ne.s32.totalorder %s169, %s170
      %p182 = scmp.eq.s32.totalorder %s34, 1
      %p183 = por %p181, %p182
      %p185 = scmp.ne.s32.totalorder %s170, %s184
      %p186 = scmp.eq.s32.totalorder %s34, 0
      %p187 = por %p185, %p186
      %s189 = sadd.s32 %s188, 1
      %p192 = scmp.eq.s32.totalorder %s28, 1
      %p193 = scmp.ne.s32.totalorder %s188, %s190
      %p194 = scmp.eq.s32.totalorder %s28, 0
      %p195 = por %p193, %p194
      %p196 = scmp.ne.s32.totalorder %s188, %s190
      %p197 = scmp.eq.s32.totalorder %s33, 1
      %p198 = por %p196, %p197
      %p199 = scmp.ne.s32.totalorder %s190, %s191
      %p200 = scmp.eq.s32.totalorder %s33, 0
      %p201 = por %p199, %p200
      %p202 = scmp.ne.s32.totalorder %s190, %s191
      %p203 = scmp.eq.s32.totalorder %s34, 1
      %p204 = por %p202, %p203
      %p206 = scmp.ne.s32.totalorder %s191, %s205
      %p207 = scmp.eq.s32.totalorder %s34, 0
      %p208 = por %p206, %p207
      %s210 = sadd.s32 %s209, 1
      %p213 = scmp.eq.s32.totalorder %s28, 1
      %p214 = scmp.ne.s32.totalorder %s209, %s211
      %p215 = scmp.eq.s32.totalorder %s28, 0
      %p216 = por %p214, %p215
      %p217 = scmp.ne.s32.totalorder %s209, %s211
      %p218 = scmp.eq.s32.totalorder %s33, 1
      %p219 = por %p217, %p218
      %p220 = scmp.ne.s32.totalorder %s211, %s212
      %p221 = scmp.eq.s32.totalorder %s33, 0
      %p222 = por %p220, %p221
      %p223 = scmp.ne.s32.totalorder %s211, %s212
      %p224 = scmp.eq.s32.totalorder %s34, 1
      %p225 = por %p223, %p224
      %p227 = scmp.ne.s32.totalorder %s212, %s226
      %p228 = scmp.eq.s32.totalorder %s34, 0
      %p229 = por %p227, %p228
      %s231 = sadd.s32 %s230, 1
      %p234 = scmp.eq.s32.totalorder %s28, 1
      %p235 = scmp.ne.s32.totalorder %s230, %s232
      %p236 = scmp.eq.s32.totalorder %s28, 0
      %p237 = por %p235, %p236
      %p238 = scmp.ne.s32.totalorder %s230, %s232
      %p239 = scmp.eq.s32.totalorder %s33, 1
      %p240 = por %p238, %p239
      %p241 = scmp.ne.s32.totalorder %s232, %s233
      %p242 = scmp.eq.s32.totalorder %s33, 0
      %p243 = por %p241, %p242
      %p244 = scmp.ne.s32.totalorder %s232, %s233
      %p245 = scmp.eq.s32.totalorder %s34, 1
      %p246 = por %p244, %p245
      %p248 = scmp.ne.s32.totalorder %s233, %s247
      %p249 = scmp.eq.s32.totalorder %s34, 0
      %p250 = por %p248, %p249
      %s252 = sadd.s32 %s251, 1
      %p255 = scmp.eq.s32.totalorder %s28, 1
      %p256 = scmp.ne.s32.totalorder %s251, %s253
      %p257 = scmp.eq.s32.totalorder %s28, 0
      %p258 = por %p256, %p257
      %p259 = scmp.ne.s32.totalorder %s251, %s253
      %p260 = scmp.eq.s32.totalorder %s33, 1
      %p261 = por %p259, %p260
      %p262 = scmp.ne.s32.totalorder %s253, %s254
      %p263 = scmp.eq.s32.totalorder %s33, 0
      %p264 = por %p262, %p263
      %p265 = scmp.ne.s32.totalorder %s253, %s254
      %p266 = scmp.eq.s32.totalorder %s34, 1
      %p267 = por %p265, %p266
      %p269 = scmp.ne.s32.totalorder %s254, %s268
      %p270 = scmp.eq.s32.totalorder %s34, 0
      %p271 = por %p269, %p270
      %s273 = sadd.s32 %s272, 1
      %p276 = scmp.eq.s32.totalorder %s28, 1
      %p277 = scmp.ne.s32.totalorder %s272, %s274
      %p278 = scmp.eq.s32.totalorder %s28, 0
      %p279 = por %p277, %p278
      %p280 = scmp.ne.s32.totalorder %s272, %s274
      %p281 = scmp.eq.s32.totalorder %s33, 1
      %p282 = por %p280, %p281
      %p283 = scmp.ne.s32.totalorder %s274, %s275
      %p284 = scmp.eq.s32.totalorder %s33, 0
      %p285 = por %p283, %p284
      %p286 = scmp.ne.s32.totalorder %s274, %s275
      %p287 = scmp.eq.s32.totalorder %s34, 1
      %p288 = por %p286, %p287
      %p290 = scmp.ne.s32.totalorder %s275, %s289
      %p291 = scmp.eq.s32.totalorder %s34, 0
      %p292 = por %p290, %p291
      %s294 = sadd.s32 %s293, 1
      %p297 = scmp.eq.s32.totalorder %s28, 1
      %p298 = scmp.ne.s32.totalorder %s293, %s295
      %p299 = scmp.eq.s32.totalorder %s28, 0
      %p300 = por %p298, %p299
      %p301 = scmp.ne.s32.totalorder %s293, %s295
      %p302 = scmp.eq.s32.totalorder %s33, 1
      %p303 = por %p301, %p302
      %p304 = scmp.ne.s32.totalorder %s295, %s296
      %p305 = scmp.eq.s32.totalorder %s33, 0
      %p306 = por %p304, %p305
      %p307 = scmp.ne.s32.totalorder %s295, %s296
      %p308 = scmp.eq.s32.totalorder %s34, 1
      %p309 = por %p307, %p308
      %p311 = scmp.ne.s32.totalorder %s296, %s310
      %p312 = scmp.eq.s32.totalorder %s34, 0
      %p313 = por %p311, %p312
      %s315 = sadd.s32 %s314, 1
      %p318 = scmp.eq.s32.totalorder %s28, 1
      %p319 = scmp.ne.s32.totalorder %s314, %s316
      %p320 = scmp.eq.s32.totalorder %s28, 0
      %p321 = por %p319, %p320
      %p322 = scmp.ne.s32.totalorder %s314, %s316
      %p323 = scmp.eq.s32.totalorder %s33, 1
      %p324 = por %p322, %p323
      %p325 = scmp.ne.s32.totalorder %s316, %s317
      %p326 = scmp.eq.s32.totalorder %s33, 0
      %p327 = por %p325, %p326
      %p328 = scmp.ne.s32.totalorder %s316, %s317
      %p329 = scmp.eq.s32.totalorder %s34, 1
      %p330 = por %p328, %p329
      %p332 = scmp.ne.s32.totalorder %s317, %s331
      %p333 = scmp.eq.s32.totalorder %s34, 0
      %p334 = por %p332, %p333
      %s336 = sadd.s32 %s335, 1
      %p339 = scmp.eq.s32.totalorder %s28, 1
      %p340 = scmp.ne.s32.totalorder %s335, %s337
      %p341 = scmp.eq.s32.totalorder %s28, 0
      %p342 = por %p340, %p341
      %p343 = scmp.ne.s32.totalorder %s335, %s337
      %p344 = scmp.eq.s32.totalorder %s33, 1
      %p345 = por %p343, %p344
      %p346 = scmp.ne.s32.totalorder %s337, %s338
      %p347 = scmp.eq.s32.totalorder %s33, 0
      %p348 = por %p346, %p347
      %p349 = scmp.ne.s32.totalorder %s337, %s338
      %p350 = scmp.eq.s32.totalorder %s34, 1
      %p351 = por %p349, %p350
      %p353 = scmp.ne.s32.totalorder %s338, %s352
      %p354 = scmp.eq.s32.totalorder %s34, 0
      %p355 = por %p353, %p354
      %s357 = sadd.s32 %s356, 1
      %p360 = scmp.eq.s32.totalorder %s28, 1
      %p361 = scmp.ne.s32.totalorder %s356, %s358
      %p362 = scmp.eq.s32.totalorder %s28, 0
      %p363 = por %p361, %p362
      %p364 = scmp.ne.s32.totalorder %s356, %s358
      %p365 = scmp.eq.s32.totalorder %s33, 1
      %p366 = por %p364, %p365
      %p367 = scmp.ne.s32.totalorder %s358, %s359
      %p368 = scmp.eq.s32.totalorder %s33, 0
      %p369 = por %p367, %p368
      %p370 = scmp.ne.s32.totalorder %s358, %s359
      %p371 = scmp.eq.s32.totalorder %s34, 1
      %p372 = por %p370, %p371
      %p374 = scmp.ne.s32.totalorder %s359, %s373
      %p375 = scmp.eq.s32.totalorder %s34, 0
      %p376 = por %p374, %p375
      %s378 = sadd.s32 %s377, 1
      %p381 = scmp.eq.s32.totalorder %s28, 1
      %p382 = scmp.ne.s32.totalorder %s377, %s379
      %p383 = scmp.eq.s32.totalorder %s28, 0
      %p384 = por %p382, %p383
      %p385 = scmp.ne.s32.totalorder %s377, %s379
      %p386 = scmp.eq.s32.totalorder %s33, 1
      %p387 = por %p385, %p386
      %p388 = scmp.ne.s32.totalorder %s379, %s380
      %p389 = scmp.eq.s32.totalorder %s33, 0
      %p390 = por %p388, %p389
      %p391 = scmp.ne.s32.totalorder %s379, %s380
      %p392 = scmp.eq.s32.totalorder %s34, 1
      %p393 = por %p391, %p392
      %p395 = scmp.ne.s32.totalorder %s380, %s394
      %p396 = scmp.eq.s32.totalorder %s34, 0
      %p397 = por %p395, %p396
      %s399 = sadd.s32 %s398, 1
      %p402 = scmp.eq.s32.totalorder %s28, 1
      %p403 = scmp.ne.s32.totalorder %s398, %s400
      %p404 = scmp.eq.s32.totalorder %s28, 0
      %p405 = por %p403, %p404
      %p406 = scmp.ne.s32.totalorder %s398, %s400
      %p407 = scmp.eq.s32.totalorder %s33, 1
      %p408 = por %p406, %p407
      %p409 = scmp.ne.s32.totalorder %s400, %s401
      %p410 = scmp.eq.s32.totalorder %s33, 0
      %p411 = por %p409, %p410
      %p412 = scmp.ne.s32.totalorder %s400, %s401
      %p413 = scmp.eq.s32.totalorder %s34, 1
      %p414 = por %p412, %p413
      %p416 = scmp.ne.s32.totalorder %s401, %s415
      %p417 = scmp.eq.s32.totalorder %s34, 0
      %p418 = por %p416, %p417
      %s420 = sadd.s32 %s419, 1
      %p423 = scmp.eq.s32.totalorder %s28, 1
      %p424 = scmp.ne.s32.totalorder %s419, %s421
      %p425 = scmp.eq.s32.totalorder %s28, 0
      %p426 = por %p424, %p425
      %p427 = scmp.ne.s32.totalorder %s419, %s421
      %p428 = scmp.eq.s32.totalorder %s33, 1
      %p429 = por %p427, %p428
      %p430 = scmp.ne.s32.totalorder %s421, %s422
      %p431 = scmp.eq.s32.totalorder %s33, 0
      %p432 = por %p430, %p431
      %p433 = scmp.ne.s32.totalorder %s421, %s422
      %p434 = scmp.eq.s32.totalorder %s34, 1
      %p435 = por %p433, %p434
      %p437 = scmp.ne.s32.totalorder %s422, %s436
      %p438 = scmp.eq.s32.totalorder %s34, 0
      %p439 = por %p437, %p438
      %s440 = ssub.s32 %s28, %s35
      %p441 = scmp.eq.s32.totalorder %s440, 0
      %s443 = sadd.s32 %s442, 1
      %s444 = scalar_select %p441, %s442, %s443
      %p447 = pneg %p441
      %p448 = scmp.eq.s32.totalorder %s28, 1
      %p449 = por %p447, %p448
      %p450 = scmp.ne.s32.totalorder %s442, %s445
      %p451 = scmp.eq.s32.totalorder %s28, 0
      %p452 = por %p450, %p451
      %p453 = scmp.ne.s32.totalorder %s442, %s445
      %p454 = scmp.eq.s32.totalorder %s33, 1
      %p455 = por %p453, %p454
      %p456 = scmp.ne.s32.totalorder %s445, %s446
      %p457 = scmp.eq.s32.totalorder %s33, 0
      %p458 = por %p456, %p457
      %p459 = scmp.ne.s32.totalorder %s445, %s446
      %p460 = scmp.eq.s32.totalorder %s34, 1
      %p461 = por %p459, %p460
      %p463 = scmp.ne.s32.totalorder %s446, %s462
      %p464 = scmp.eq.s32.totalorder %s34, 0
      %p465 = por %p463, %p464
      %p466 = scmp.le.s32.totalorder 1, %s28
      %p467 = scmp.lt.s32.totalorder %s28, 3
      %p468 = pnand %p466, %p467
      %p469 = pneg %p468
      // Predicated region
      $region9: #{net_forward.1} parent=5 // pred_check
        _
      $region10: #{net_forward.1} parent=5 // pred_check_branch
        %471 = sbr.rel (%p468) target = $region12
      $region11: #{net_forward.1} parent=5 // pred_region
        %s472 = ssub.s32 %s28, 1
        // Predicated region
        $region13: #{net_forward.1} parent=11 // pred_check
          %p473 = pneg %p75
        $region14: #{net_forward.1} parent=11 // pred_check_branch
          %475 = sbr.rel (%p473) target = $region16
        $region15: #{net_forward.1} parent=11 // pred_region
          _
        $region16: #{net_forward.1} parent=11 // pred_fallthru
          _
        // Predicated region
        $region17: #{net_forward.1} parent=11 // pred_check
          %p476 = pneg %p96
        $region18: #{net_forward.1} parent=11 // pred_check_branch
          %478 = sbr.rel (%p476) target = $region20
        $region19: #{net_forward.1} parent=11 // pred_region
          _
        $region20: #{net_forward.1} parent=11 // pred_fallthru
          _
        // Predicated region
        $region21: #{net_forward.1} parent=11 // pred_check
          %p479 = pneg %p117
        $region22: #{net_forward.1} parent=11 // pred_check_branch
          %481 = sbr.rel (%p479) target = $region24
        $region23: #{net_forward.1} parent=11 // pred_region
          _
        $region24: #{net_forward.1} parent=11 // pred_fallthru
          _
        // Predicated region
        $region25: #{net_forward.1} parent=11 // pred_check
          %p482 = pneg %p138
        $region26: #{net_forward.1} parent=11 // pred_check_branch
          %484 = sbr.rel (%p482) target = $region28
        $region27: #{net_forward.1} parent=11 // pred_region
          _
        $region28: #{net_forward.1} parent=11 // pred_fallthru
          _
        // Predicated region
        $region29: #{net_forward.1} parent=11 // pred_check
          %p485 = pneg %p159
        $region30: #{net_forward.1} parent=11 // pred_check_branch
          %487 = sbr.rel (%p485) target = $region32
        $region31: #{net_forward.1} parent=11 // pred_region
          _
        $region32: #{net_forward.1} parent=11 // pred_fallthru
          _
        // Predicated region
        $region33: #{net_forward.1} parent=11 // pred_check
          %p488 = pneg %p180
        $region34: #{net_forward.1} parent=11 // pred_check_branch
          %490 = sbr.rel (%p488) target = $region36
        $region35: #{net_forward.1} parent=11 // pred_region
          _
        $region36: #{net_forward.1} parent=11 // pred_fallthru
          _
        // Predicated region
        $region37: #{net_forward.1} parent=11 // pred_check
          %p491 = pneg %p201
        $region38: #{net_forward.1} parent=11 // pred_check_branch
          %493 = sbr.rel (%p491) target = $region40
        $region39: #{net_forward.1} parent=11 // pred_region
          _
        $region40: #{net_forward.1} parent=11 // pred_fallthru
          _
        // Predicated region
        $region41: #{net_forward.1} parent=11 // pred_check
          %p494 = pneg %p222
        $region42: #{net_forward.1} parent=11 // pred_check_branch
          %496 = sbr.rel (%p494) target = $region44
        $region43: #{net_forward.1} parent=11 // pred_region
          _
        $region44: #{net_forward.1} parent=11 // pred_fallthru
          _
        // Predicated region
        $region45: #{net_forward.1} parent=11 // pred_check
          %p497 = pneg %p243
        $region46: #{net_forward.1} parent=11 // pred_check_branch
          %499 = sbr.rel (%p497) target = $region48
        $region47: #{net_forward.1} parent=11 // pred_region
          _
        $region48: #{net_forward.1} parent=11 // pred_fallthru
          _
        // Predicated region
        $region49: #{net_forward.1} parent=11 // pred_check
          %p500 = pneg %p264
        $region50: #{net_forward.1} parent=11 // pred_check_branch
          %502 = sbr.rel (%p500) target = $region52
        $region51: #{net_forward.1} parent=11 // pred_region
          _
        $region52: #{net_forward.1} parent=11 // pred_fallthru
          _
        // Predicated region
        $region53: #{net_forward.1} parent=11 // pred_check
          %p503 = pneg %p285
        $region54: #{net_forward.1} parent=11 // pred_check_branch
          %505 = sbr.rel (%p503) target = $region56
        $region55: #{net_forward.1} parent=11 // pred_region
          _
        $region56: #{net_forward.1} parent=11 // pred_fallthru
          _
        // Predicated region
        $region57: #{net_forward.1} parent=11 // pred_check
          %p506 = pneg %p306
        $region58: #{net_forward.1} parent=11 // pred_check_branch
          %508 = sbr.rel (%p506) target = $region60
        $region59: #{net_forward.1} parent=11 // pred_region
          _
        $region60: #{net_forward.1} parent=11 // pred_fallthru
          _
        // Predicated region
        $region61: #{net_forward.1} parent=11 // pred_check
          %p509 = pneg %p327
        $region62: #{net_forward.1} parent=11 // pred_check_branch
          %511 = sbr.rel (%p509) target = $region64
        $region63: #{net_forward.1} parent=11 // pred_region
          _
        $region64: #{net_forward.1} parent=11 // pred_fallthru
          _
        // Predicated region
        $region65: #{net_forward.1} parent=11 // pred_check
          %p512 = pneg %p348
        $region66: #{net_forward.1} parent=11 // pred_check_branch
          %514 = sbr.rel (%p512) target = $region68
        $region67: #{net_forward.1} parent=11 // pred_region
          _
        $region68: #{net_forward.1} parent=11 // pred_fallthru
          _
        // Predicated region
        $region69: #{net_forward.1} parent=11 // pred_check
          %p515 = pneg %p369
        $region70: #{net_forward.1} parent=11 // pred_check_branch
          %517 = sbr.rel (%p515) target = $region72
        $region71: #{net_forward.1} parent=11 // pred_region
          _
        $region72: #{net_forward.1} parent=11 // pred_fallthru
          _
        // Predicated region
        $region73: #{net_forward.1} parent=11 // pred_check
          %p518 = pneg %p390
        $region74: #{net_forward.1} parent=11 // pred_check_branch
          %520 = sbr.rel (%p518) target = $region76
        $region75: #{net_forward.1} parent=11 // pred_region
          _
        $region76: #{net_forward.1} parent=11 // pred_fallthru
          _
        // Predicated region
        $region77: #{net_forward.1} parent=11 // pred_check
          %p521 = pneg %p411
        $region78: #{net_forward.1} parent=11 // pred_check_branch
          %523 = sbr.rel (%p521) target = $region80
        $region79: #{net_forward.1} parent=11 // pred_region
          _
        $region80: #{net_forward.1} parent=11 // pred_fallthru
          _
        // Predicated region
        $region81: #{net_forward.1} parent=11 // pred_check
          %p524 = pneg %p432
        $region82: #{net_forward.1} parent=11 // pred_check_branch
          %526 = sbr.rel (%p524) target = $region84
        $region83: #{net_forward.1} parent=11 // pred_region
          _
        $region84: #{net_forward.1} parent=11 // pred_fallthru
          _
      $region12: #{net_forward.1} parent=5 // pred_fallthru
        _
      %p527 = scmp.lt.s32.totalorder %s28, 2
      // Predicated region
      $region85: #{net_forward.1} parent=5 // pred_check
        %p528 = pneg %p527
      $region86: #{net_forward.1} parent=5 // pred_check_branch
        %530 = sbr.rel (%p528) target = $region88
      $region87: #{net_forward.1} parent=5 // pred_region
        // Predicated region
        $region89: #{net_forward.1} parent=87 // pred_check
          %p531 = pneg %p48
        $region90: #{net_forward.1} parent=87 // pred_check_branch
          %533 = sbr.rel (%p531) target = $region92
        $region91: #{net_forward.1} parent=87 // pred_region
          %p534 = scmp.lt.s32.totalorder %s28, 1
          %s535 = scalar_select %p534, %s28, 1
          %s536 = smul.addr %s535, 4
          %s537 = smul.addr %s536, 8
          %s538 = scalar_lea.vmem %s0, %s537
        $region92: #{net_forward.1} parent=87 // pred_fallthru
          _
      $region88: #{net_forward.1} parent=5 // pred_fallthru
        _
      %p539 = scmp.le.s32.totalorder 1, %s28
      %p540 = scmp.lt.s32.totalorder %s28, 3
      %p541 = pnand %p539, %p540
      %p542 = pneg %p541
      // Predicated region
      $region93: #{net_forward.1} parent=5 // pred_check
        _
      $region94: #{net_forward.1} parent=5 // pred_check_branch
        %544 = sbr.rel (%p541) target = $region96
      $region95: #{net_forward.1} parent=5 // pred_region
        %s545 = ssub.s32 %s28, 1
        %p546 = scmp.lt.s32.totalorder %s33, 1
        %s547 = scalar_select %p546, %s33, 1
        %s548 = smul.addr %s547, 4
        %s549 = smul.addr %s548, 8
        %s550 = scalar_lea.vmem %s0, %s549
        %p551 = pneg %p54
        %p552 = pneg %p51
        %p553 = pneg %p75
        %p554 = pneg %p72
        %p555 = pneg %p96
        %p556 = pneg %p93
        %p557 = pneg %p117
        %p558 = pneg %p114
        %p559 = pneg %p138
        %p560 = pneg %p135
        %p561 = pneg %p159
        %p562 = pneg %p156
        %p563 = pneg %p180
        %p564 = pneg %p177
        %p565 = pneg %p201
        %p566 = pneg %p198
        %p567 = pneg %p222
        %p568 = pneg %p219
        %p569 = pneg %p243
        %p570 = pneg %p240
        %p571 = pneg %p264
        %p572 = pneg %p261
        %p573 = pneg %p285
        %p574 = pneg %p282
        %p575 = pneg %p306
        %p576 = pneg %p303
        %p577 = pneg %p327
        %p578 = pneg %p324
        %p579 = pneg %p348
        %p580 = pneg %p345
        %p581 = pneg %p369
        %p582 = pneg %p366
        %p583 = pneg %p390
        %p584 = pneg %p387
        %p585 = pneg %p411
        %p586 = pneg %p408
        %p587 = pneg %p432
        %p588 = pneg %p429
        %p589 = pneg %p458
        %p590 = pneg %p455
        %s591 = sand.u32 %s445, 1
        %s592 = scalar_lea.sflag [#allocation5], %s591
        %s593 = sand.u32 %s445, 1
        %s594 = scalar_lea.vmem [#allocation4], %s593
        %p595 = scmp.lt.s32.totalorder %s33, 1
        %s596 = scalar_select %p595, %s33, 1
        %s597 = smul.addr %s596, 4
        %s598 = smul.addr %s597, 8
        %s599 = scalar_lea.vmem %s0, %s598
        %v600 = vld [vmem:[%s599] sm:$0xff]
        %v601 = vld [vmem:[%s599 + $0x8] sm:$0xff]
        %v602 = vld [vmem:[%s599 + $0x10] sm:$0xff]
        %v603 = vld [vmem:[%s599 + $0x18] sm:$0xf]
        %v604 = vld [vmem:[%s1] sm:$0xff]
        %v605 = vld [vmem:[%s1 + $0x8] sm:$0xff]
        %v606 = vld [vmem:[%s1 + $0x10] sm:$0xff]
        %v607 = vld [vmem:[%s1 + $0x18] sm:$0xff]
        %v608 = vld [vmem:[%s1 + $0x20] sm:$0xff]
        %v609 = vld [vmem:[%s1 + $0x28] sm:$0xff]
        %v610 = vld [vmem:[%s1 + $0x30] sm:$0xff]
        %v611 = vld [vmem:[%s1 + $0x38] sm:$0xff]
        %v612 = vld [vmem:[%s1 + $0x40] sm:$0xff]
        %v613 = vld [vmem:[%s1 + $0x48] sm:$0xff]
        %v614 = vld [vmem:[%s1 + $0x50] sm:$0xff]
        %v615 = vld [vmem:[%s1 + $0x58] sm:$0xff]
        %v616 = vld [vmem:[%s1 + $0x60] sm:$0xff]
        %v617 = vld [vmem:[%s1 + $0x68] sm:$0xff]
        %v618 = vld [vmem:[%s1 + $0x70] sm:$0xff]
        %v619 = vld [vmem:[%s1 + $0x78] sm:$0xff]
        %v620 = vld [vmem:[%s1 + $0x80] sm:$0xff]
        %v621 = vld [vmem:[%s1 + $0x88] sm:$0xff]
        %v622 = vld [vmem:[%s1 + $0x90] sm:$0xff]
        %v623 = vld [vmem:[%s1 + $0x98] sm:$0xff]
        %v624 = vld [vmem:[%s1 + $0xa0] sm:$0xff]
        %v625 = vld [vmem:[%s1 + $0xa8] sm:$0xff]
        %v626 = vld [vmem:[%s1 + $0xb0] sm:$0xff]
        %v627 = vld [vmem:[%s1 + $0xb8] sm:$0xff]
        %v628 = vld [vmem:[%s599 + $0x1] sm:$0xff]
        %v629 = vld [vmem:[%s599 + $0x9] sm:$0xff]
        %v630 = vld [vmem:[%s599 + $0x11] sm:$0xff]
        %v631 = vld [vmem:[%s599 + $0x19] sm:$0xf]
        %s632 = scalar_lea.vmem %s1, 192
        %v633 = vld [vmem:[%s632] sm:$0xff]
        %v634 = vld [vmem:[%s632 + $0x8] sm:$0xff]
        %v635 = vld [vmem:[%s632 + $0x10] sm:$0xff]
        %v636 = vld [vmem:[%s632 + $0x18] sm:$0xff]
        %v637 = vld [vmem:[%s632 + $0x20] sm:$0xff]
        %v638 = vld [vmem:[%s632 + $0x28] sm:$0xff]
        %v639 = vld [vmem:[%s632 + $0x30] sm:$0xff]
        %v640 = vld [vmem:[%s632 + $0x38] sm:$0xff]
        %v641 = vld [vmem:[%s632 + $0x40] sm:$0xff]
        %v642 = vld [vmem:[%s632 + $0x48] sm:$0xff]
        %v643 = vld [vmem:[%s632 + $0x50] sm:$0xff]
        %v644 = vld [vmem:[%s632 + $0x58] sm:$0xff]
        %v645 = vld [vmem:[%s632 + $0x60] sm:$0xff]
        %v646 = vld [vmem:[%s632 + $0x68] sm:$0xff]
        %v647 = vld [vmem:[%s632 + $0x70] sm:$0xff]
        %v648 = vld [vmem:[%s632 + $0x78] sm:$0xff]
        %v649 = vld [vmem:[%s632 + $0x80] sm:$0xff]
        %v650 = vld [vmem:[%s632 + $0x88] sm:$0xff]
        %v651 = vld [vmem:[%s632 + $0x90] sm:$0xff]
        %v652 = vld [vmem:[%s632 + $0x98] sm:$0xff]
        %v653 = vld [vmem:[%s632 + $0xa0] sm:$0xff]
        %v654 = vld [vmem:[%s632 + $0xa8] sm:$0xff]
        %v655 = vld [vmem:[%s632 + $0xb0] sm:$0xff]
        %v656 = vld [vmem:[%s632 + $0xb8] sm:$0xff]
        %vm657 = vcmask 785408
        %v659 = vsel %vm657, %v628, 0
        %v662 = vsel %vm657, %v629, 0
        %v665 = vsel %vm657, %v630, 0
        %v668 = vsel %vm657, %v631, 0
        %670 = vmatprep.subr.mxu0 %v634
        %671 = vmatpush1.msra.mxu0 %v633
        %672 = vmatprep.subr.mxu0 %v636
        %673 = vmatpush1.msra.mxu0 %v635
        %674 = vmatprep.subr.mxu0 %v638
        %675 = vmatpush1.msra.mxu0 %v637
        %676 = vmatprep.subr.mxu0 %v640
        %677 = vmatpush1.msra.mxu0 %v639
        %678 = vmatprep.subr.mxu0 %v642
        %679 = vmatpush1.msra.mxu0 %v641
        %680 = vmatprep.subr.mxu0 %v644
        %681 = vmatpush1.msra.mxu0 %v643
        %682 = vmatprep.subr.mxu0 %v646
        %683 = vmatpush1.msra.mxu0 %v645
        %684 = vmatprep.subr.mxu0 %v648
        %685 = vmatpush1.msra.mxu0 %v647
        %686 = vmatprep.subr.mxu0 %v650
        %687 = vmatpush1.msra.mxu0 %v649
        %688 = vmatprep.subr.mxu0 %v652
        %689 = vmatpush1.msra.mxu0 %v651
        %690 = vmatprep.subr.mxu0 %v654
        %691 = vmatpush1.msra.mxu0 %v653
        %692 = vmatprep.subr.mxu0 %v656
        %693 = vmatpush1.msra.mxu0 %v655
        %694 = vmatprep.subr.mxu0 0.0
        %695 = vmatpush1.msra.mxu0 0.0
        %696 = vmatprep.subr.mxu0 0.0
        %697 = vmatpush1.msra.mxu0 0.0
        %698 = vmatprep.subr.mxu0 0.0
        %699 = vmatpush1.msra.mxu0 0.0
        %700 = vmatprep.subr.mxu0 0.0
        %701 = vmatpush1.msra.mxu0 0.0
        %702 = vmatprep.subr.mxu0 0.0
        %703 = vmatpush1.msra.mxu0 0.0
        %704 = vmatprep.subr.mxu0 0.0
        %705 = vmatpush1.msra.mxu0 0.0
        %706 = vmatprep.subr.mxu0 0.0
        %707 = vmatpush1.msra.mxu0 0.0
        %708 = vmatprep.subr.mxu0 0.0
        %709 = vmatpush1.msra.mxu0 0.0
        %710 = vmatprep.subr.mxu0 0.0
        %711 = vmatpush1.msra.mxu0 0.0
        %712 = vmatprep.subr.mxu0 0.0
        %713 = vmatpush1.msra.mxu0 0.0
        %714 = vmatprep.subr.mxu0 0.0
        %715 = vmatpush1.msra.mxu0 0.0
        %716 = vmatprep.subr.mxu0 0.0
        %717 = vmatpush1.msra.mxu0 0.0
        %718 = vmatprep.subr.mxu0 0.0
        %719 = vmatpush1.msra.mxu0 0.0
        %720 = vmatprep.subr.mxu0 0.0
        %721 = vmatpush1.msra.mxu0 0.0
        %722 = vmatprep.subr.mxu0 0.0
        %723 = vmatpush1.msra.mxu0 0.0
        %724 = vmatprep.subr.mxu0 0.0
        %725 = vmatpush1.msra.mxu0 0.0
        %726 = vmatprep.subr.mxu0 0.0
        %727 = vmatpush1.msra.mxu0 0.0
        %728 = vmatprep.subr.mxu0 0.0
        %729 = vmatpush1.msra.mxu0 0.0
        %730 = vmatprep.subr.mxu0 0.0
        %731 = vmatpush1.msra.mxu0 0.0
        %732 = vmatprep.subr.mxu0 0.0
        %733 = vmatpush1.msra.mxu0 0.0
        %734 = vmatprep.mubr.f32.mxu0 0.0
        %735 = vmatmul.mubr.f32.gmra.mrb[0].mxu0 %v659
        %v736 = vpop.f32.mrb[0].mxu0
        %v737 = vadd.f32 0.0, %v736
        %v738 = vpop.f32.mrb[0].mxu0
        %v739 = vadd.f32 0.0, %v738
        %740 = vmatprep.mubr.f32.mxu0 0.0
        %741 = vmatmul.mubr.f32.gmra.mrb[0].mxu0 %v662
        %v742 = vpop.f32.mrb[0].mxu0
        %v743 = vadd.f32 0.0, %v742
        %v744 = vpop.f32.mrb[0].mxu0
        %v745 = vadd.f32 0.0, %v744
        %746 = vmatprep.mubr.f32.mxu0 0.0
        %747 = vmatmul.mubr.f32.gmra.mrb[0].mxu0 %v665
        %v748 = vpop.f32.mrb[0].mxu0
        %v749 = vadd.f32 0.0, %v748
        %v750 = vpop.f32.mrb[0].mxu0
        %v751 = vadd.f32 0.0, %v750
        %752 = vmatprep.mubr.f32.mxu0 0.0
        %753 = vmatmul.mubr.f32.gmra.mrb[0].mxu0 %v668
        %v754 = vpop.f32.mrb[0].mxu0
        %v755 = vadd.f32 0.0, %v754
        %v756 = vpop.f32.mrb[0].mxu0
        %v757 = vadd.f32 0.0, %v756
        %758 = vdwg.mxu0
        %v760 = vsel %vm657, %v600, 0
        %v763 = vsel %vm657, %v601, 0
        %v766 = vsel %vm657, %v602, 0
        %v769 = vsel %vm657, %v603, 0
        %771 = vmatprep.subr.mxu0 %v605
        %772 = vmatpush1.msra.mxu0 %v604
        %773 = vmatprep.subr.mxu0 %v607
        %774 = vmatpush1.msra.mxu0 %v606
        %775 = vmatprep.subr.mxu0 %v609
        %776 = vmatpush1.msra.mxu0 %v608
        %777 = vmatprep.subr.mxu0 %v611
        %778 = vmatpush1.msra.mxu0 %v610
        %779 = vmatprep.subr.mxu0 %v613
        %780 = vmatpush1.msra.mxu0 %v612
        %781 = vmatprep.subr.mxu0 %v615
        %782 = vmatpush1.msra.mxu0 %v614
        %783 = vmatprep.subr.mxu0 %v617
        %784 = vmatpush1.msra.mxu0 %v616
        %785 = vmatprep.subr.mxu0 %v619
        %786 = vmatpush1.msra.mxu0 %v618
        %787 = vmatprep.subr.mxu0 %v621
        %788 = vmatpush1.msra.mxu0 %v620
        %789 = vmatprep.subr.mxu0 %v623
        %790 = vmatpush1.msra.mxu0 %v622
        %791 = vmatprep.subr.mxu0 %v625
        %792 = vmatpush1.msra.mxu0 %v624
        %793 = vmatprep.subr.mxu0 %v627
        %794 = vmatpush1.msra.mxu0 %v626
        %795 = vmatprep.subr.mxu0 0.0
        %796 = vmatpush1.msra.mxu0 0.0
        %797 = vmatprep.subr.mxu0 0.0
        %798 = vmatpush1.msra.mxu0 0.0
        %799 = vmatprep.subr.mxu0 0.0
        %800 = vmatpush1.msra.mxu0 0.0
        %801 = vmatprep.subr.mxu0 0.0
        %802 = vmatpush1.msra.mxu0 0.0
        %803 = vmatprep.subr.mxu0 0.0
        %804 = vmatpush1.msra.mxu0 0.0
        %805 = vmatprep.subr.mxu0 0.0
        %806 = vmatpush1.msra.mxu0 0.0
        %807 = vmatprep.subr.mxu0 0.0
        %808 = vmatpush1.msra.mxu0 0.0
        %809 = vmatprep.subr.mxu0 0.0
        %810 = vmatpush1.msra.mxu0 0.0
        %811 = vmatprep.subr.mxu0 0.0
        %812 = vmatpush1.msra.mxu0 0.0
        %813 = vmatprep.subr.mxu0 0.0
        %814 = vmatpush1.msra.mxu0 0.0
        %815 = vmatprep.subr.mxu0 0.0
        %816 = vmatpush1.msra.mxu0 0.0
        %817 = vmatprep.subr.mxu0 0.0
        %818 = vmatpush1.msra.mxu0 0.0
        %819 = vmatprep.subr.mxu0 0.0
        %820 = vmatpush1.msra.mxu0 0.0
        %821 = vmatprep.subr.mxu0 0.0
        %822 = vmatpush1.msra.mxu0 0.0
        %823 = vmatprep.subr.mxu0 0.0
        %824 = vmatpush1.msra.mxu0 0.0
        %825 = vmatprep.subr.mxu0 0.0
        %826 = vmatpush1.msra.mxu0 0.0
        %827 = vmatprep.subr.mxu0 0.0
        %828 = vmatpush1.msra.mxu0 0.0
        %829 = vmatprep.subr.mxu0 0.0
        %830 = vmatpush1.msra.mxu0 0.0
        %831 = vmatprep.subr.mxu0 0.0
        %832 = vmatpush1.msra.mxu0 0.0
        %833 = vmatprep.subr.mxu0 0.0
        %834 = vmatpush1.msra.mxu0 0.0
        %835 = vmatprep.mubr.f32.mxu0 0.0
        %836 = vmatmul.mubr.f32.gmra.mrb[0].mxu0 %v760
        %v837 = vpop.f32.mrb[0].mxu0
        %v838 = vadd.f32 %v737, %v837
        %v839 = vpop.f32.mrb[0].mxu0
        %v840 = vadd.f32 %v739, %v839
        %841 = vmatprep.mubr.f32.mxu0 0.0
        %842 = vmatmul.mubr.f32.gmra.mrb[0].mxu0 %v763
        %v843 = vpop.f32.mrb[0].mxu0
        %v844 = vadd.f32 %v743, %v843
        %v845 = vpop.f32.mrb[0].mxu0
        %v846 = vadd.f32 %v745, %v845
        %847 = vmatprep.mubr.f32.mxu0 0.0
        %848 = vmatmul.mubr.f32.gmra.mrb[0].mxu0 %v766
        %v849 = vpop.f32.mrb[0].mxu0
        %v850 = vadd.f32 %v749, %v849
        %v851 = vpop.f32.mrb[0].mxu0
        %v852 = vadd.f32 %v751, %v851
        %853 = vmatprep.mubr.f32.mxu0 0.0
        %854 = vmatmul.mubr.f32.gmra.mrb[0].mxu0 %v769
        %v855 = vpop.f32.mrb[0].mxu0
        %v856 = vadd.f32 %v755, %v855
        %v857 = vpop.f32.mrb[0].mxu0
        %v858 = vadd.f32 %v757, %v857
        %859 = vdwg.mxu0
        %v860 = vld [vmem:[%s599 + $0x2] sm:$0xff]
        %v861 = vld [vmem:[%s599 + $0xa] sm:$0xff]
        %v862 = vld [vmem:[%s599 + $0x12] sm:$0xff]
        %v863 = vld [vmem:[%s599 + $0x1a] sm:$0xf]
        %s864 = scalar_lea.vmem %s1, 384
        %v865 = vld [vmem:[%s864] sm:$0xff]
        %v866 = vld [vmem:[%s864 + $0x8] sm:$0xff]
        %v867 = vld [vmem:[%s864 + $0x10] sm:$0xff]
        %v868 = vld [vmem:[%s864 + $0x18] sm:$0xff]
        %v869 = vld [vmem:[%s864 + $0x20] sm:$0xff]
        %v870 = vld [vmem:[%s864 + $0x28] sm:$0xff]
        %v871 = vld [vmem:[%s864 + $0x30] sm:$0xff]
        %v872 = vld [vmem:[%s864 + $0x38] sm:$0xff]
        %v873 = vld [vmem:[%s864 + $0x40] sm:$0xff]
        %v874 = vld [vmem:[%s864 + $0x48] sm:$0xff]
        %v875 = vld [vmem:[%s864 + $0x50] sm:$0xff]
        %v876 = vld [vmem:[%s864 + $0x58] sm:$0xff]
        %v877 = vld [vmem:[%s864 + $0x60] sm:$0xff]
        %v878 = vld [vmem:[%s864 + $0x68] sm:$0xff]
        %v879 = vld [vmem:[%s864 + $0x70] sm:$0xff]
        %v880 = vld [vmem:[%s864 + $0x78] sm:$0xff]
        %v881 = vld [vmem:[%s864 + $0x80] sm:$0xff]
        %v882 = vld [vmem:[%s864 + $0x88] sm:$0xff]
        %v883 = vld [vmem:[%s864 + $0x90] sm:$0xff]
        %v884 = vld [vmem:[%s864 + $0x98] sm:$0xff]
        %v885 = vld [vmem:[%s864 + $0xa0] sm:$0xff]
        %v886 = vld [vmem:[%s864 + $0xa8] sm:$0xff]
        %v887 = vld [vmem:[%s864 + $0xb0] sm:$0xff]
        %v888 = vld [vmem:[%s864 + $0xb8] sm:$0xff]
        %v890 = vsel %vm657, %v860, 0
        %v893 = vsel %vm657, %v861, 0
        %v896 = vsel %vm657, %v862, 0
        %v899 = vsel %vm657, %v863, 0
        %901 = vmatprep.subr.mxu0 %v866
        %902 = vmatpush1.msra.mxu0 %v865
        %903 = vmatprep.subr.mxu0 %v868
        %904 = vmatpush1.msra.mxu0 %v867
        %905 = vmatprep.subr.mxu0 %v870
        %906 = vmatpush1.msra.mxu0 %v869
        %907 = vmatprep.subr.mxu0 %v872
        %908 = vmatpush1.msra.mxu0 %v871
        %909 = vmatprep.subr.mxu0 %v874
        %910 = vmatpush1.msra.mxu0 %v873
        %911 = vmatprep.subr.mxu0 %v876
        %912 = vmatpush1.msra.mxu0 %v875
        %913 = vmatprep.subr.mxu0 %v878
        %914 = vmatpush1.msra.mxu0 %v877
        %915 = vmatprep.subr.mxu0 %v880
        %916 = vmatpush1.msra.mxu0 %v879
        %917 = vmatprep.subr.mxu0 %v882
        %918 = vmatpush1.msra.mxu0 %v881
        %919 = vmatprep.subr.mxu0 %v884
        %920 = vmatpush1.msra.mxu0 %v883
        %921 = vmatprep.subr.mxu0 %v886
        %922 = vmatpush1.msra.mxu0 %v885
        %923 = vmatprep.subr.mxu0 %v888
        %924 = vmatpush1.msra.mxu0 %v887
        %925 = vmatprep.subr.mxu0 0.0
        %926 = vmatpush1.msra.mxu0 0.0
        %927 = vmatprep.subr.mxu0 0.0
        %928 = vmatpush1.msra.mxu0 0.0
        %929 = vmatprep.subr.mxu0 0.0
        %930 = vmatpush1.msra.mxu0 0.0
        %931 = vmatprep.subr.mxu0 0.0
        %932 = vmatpush1.msra.mxu0 0.0
        %933 = vmatprep.subr.mxu0 0.0
        %934 = vmatpush1.msra.mxu0 0.0
        %935 = vmatprep.subr.mxu0 0.0
        %936 = vmatpush1.msra.mxu0 0.0
        %937 = vmatprep.subr.mxu0 0.0
        %938 = vmatpush1.msra.mxu0 0.0
        %939 = vmatprep.subr.mxu0 0.0
        %940 = vmatpush1.msra.mxu0 0.0
        %941 = vmatprep.subr.mxu0 0.0
        %942 = vmatpush1.msra.mxu0 0.0
        %943 = vmatprep.subr.mxu0 0.0
        %944 = vmatpush1.msra.mxu0 0.0
        %945 = vmatprep.subr.mxu0 0.0
        %946 = vmatpush1.msra.mxu0 0.0
        %947 = vmatprep.subr.mxu0 0.0
        %948 = vmatpush1.msra.mxu0 0.0
        %949 = vmatprep.subr.mxu0 0.0
        %950 = vmatpush1.msra.mxu0 0.0
        %951 = vmatprep.subr.mxu0 0.0
        %952 = vmatpush1.msra.mxu0 0.0
        %953 = vmatprep.subr.mxu0 0.0
        %954 = vmatpush1.msra.mxu0 0.0
        %955 = vmatprep.subr.mxu0 0.0
        %956 = vmatpush1.msra.mxu0 0.0
        %957 = vmatprep.subr.mxu0 0.0
        %958 = vmatpush1.msra.mxu0 0.0
        %959 = vmatprep.subr.mxu0 0.0
        %960 = vmatpush1.msra.mxu0 0.0
        %961 = vmatprep.subr.mxu0 0.0
        %962 = vmatpush1.msra.mxu0 0.0
        %963 = vmatprep.subr.mxu0 0.0
        %964 = vmatpush1.msra.mxu0 0.0
        %965 = vmatprep.mubr.f32.mxu0 0.0
        %966 = vmatmul.mubr.f32.gmra.mrb[0].mxu0 %v890
        %v967 = vpop.f32.mrb[0].mxu0
        %v968 = vadd.f32 0.0, %v967
        %v969 = vpop.f32.mrb[0].mxu0
        %v970 = vadd.f32 0.0, %v969
        %971 = vmatprep.mubr.f32.mxu0 0.0
        %972 = vmatmul.mubr.f32.gmra.mrb[0].mxu0 %v893
        %v973 = vpop.f32.mrb[0].mxu0
        %v974 = vadd.f32 0.0, %v973
        %v975 = vpop.f32.mrb[0].mxu0
        %v976 = vadd.f32 0.0, %v975
        %977 = vmatprep.mubr.f32.mxu0 0.0
        %978 = vmatmul.mubr.f32.gmra.mrb[0].mxu0 %v896
        %v979 = vpop.f32.mrb[0].mxu0
        %v980 = vadd.f32 0.0, %v979
        %v981 = vpop.f32.mrb[0].mxu0
        %v982 = vadd.f32 0.0, %v981
        %983 = vmatprep.mubr.f32.mxu0 0.0
        %984 = vmatmul.mubr.f32.gmra.mrb[0].mxu0 %v899
        %v985 = vpop.f32.mrb[0].mxu0
        %v986 = vadd.f32 0.0, %v985
        %v987 = vpop.f32.mrb[0].mxu0
        %v988 = vadd.f32 0.0, %v987
        %989 = vdwg.mxu0
        %v990 = vadd.f32 %v838, %v968
        %v991 = vadd.f32 %v840, %v970
        %v992 = vadd.f32 %v844, %v974
        %v993 = vadd.f32 %v846, %v976
        %v994 = vadd.f32 %v850, %v980
        %v995 = vadd.f32 %v852, %v982
        %v996 = vadd.f32 %v856, %v986
        %v997 = vadd.f32 %v858, %v988
        %v998 = vld [vmem:[%s599 + $0x3] sm:$0xff]
        %v999 = vld [vmem:[%s599 + $0xb] sm:$0xff]
        %v1000 = vld [vmem:[%s599 + $0x13] sm:$0xff]
        %v1001 = vld [vmem:[%s599 + $0x1b] sm:$0xf]
        %s1002 = scalar_lea.vmem %s1, 576
        %v1003 = vld [vmem:[%s1002] sm:$0xff]
        %v1004 = vld [vmem:[%s1002 + $0x8] sm:$0xff]
        %v1005 = vld [vmem:[%s1002 + $0x10] sm:$0xff]
        %v1006 = vld [vmem:[%s1002 + $0x18] sm:$0xff]
        %v1007 = vld [vmem:[%s1002 + $0x20] sm:$0xff]
        %v1008 = vld [vmem:[%s1002 + $0x28] sm:$0xff]
        %v1009 = vld [vmem:[%s1002 + $0x30] sm:$0xff]
        %v1010 = vld [vmem:[%s1002 + $0x38] sm:$0xff]
        %v1011 = vld [vmem:[%s1002 + $0x40] sm:$0xff]
        %v1012 = vld [vmem:[%s1002 + $0x48] sm:$0xff]
        %v1013 = vld [vmem:[%s1002 + $0x50] sm:$0xff]
        %v1014 = vld [vmem:[%s1002 + $0x58] sm:$0xff]
        %v1015 = vld [vmem:[%s1002 + $0x60] sm:$0xff]
        %v1016 = vld [vmem:[%s1002 + $0x68] sm:$0xff]
        %v1017 = vld [vmem:[%s1002 + $0x70] sm:$0xff]
        %v1018 = vld [vmem:[%s1002 + $0x78] sm:$0xff]
        %v1019 = vld [vmem:[%s1002 + $0x80] sm:$0xff]
        %v1020 = vld [vmem:[%s1002 + $0x88] sm:$0xff]
        %v1021 = vld [vmem:[%s1002 + $0x90] sm:$0xff]
        %v1022 = vld [vmem:[%s1002 + $0x98] sm:$0xff]
        %v1023 = vld [vmem:[%s1002 + $0xa0] sm:$0xff]
        %v1024 = vld [vmem:[%s1002 + $0xa8] sm:$0xff]
        %v1025 = vld [vmem:[%s1002 + $0xb0] sm:$0xff]
        %v1026 = vld [vmem:[%s1002 + $0xb8] sm:$0xff]
        %v1028 = vsel %vm657, %v998, 0
        %v1031 = vsel %vm657, %v999, 0
        %v1034 = vsel %vm657, %v1000, 0
        %v1037 = vsel %vm657, %v1001, 0
        %1039 = vmatprep.subr.mxu0 %v1004
        %1040 = vmatpush1.msra.mxu0 %v1003
        %1041 = vmatprep.subr.mxu0 %v1006
        %1042 = vmatpush1.msra.mxu0 %v1005
        %1043 = vmatprep.subr.mxu0 %v1008
        %1044 = vmatpush1.msra.mxu0 %v1007
        %1045 = vmatprep.subr.mxu0 %v1010
        %1046 = vmatpush1.msra.mxu0 %v1009
        %1047 = vmatprep.subr.mxu0 %v1012
        %1048 = vmatpush1.msra.mxu0 %v1011
        %1049 = vmatprep.subr.mxu0 %v1014
        %1050 = vmatpush1.msra.mxu0 %v1013
        %1051 = vmatprep.subr.mxu0 %v1016
        %1052 = vmatpush1.msra.mxu0 %v1015
        %1053 = vmatprep.subr.mxu0 %v1018
        %1054 = vmatpush1.msra.mxu0 %v1017
        %1055 = vmatprep.subr.mxu0 %v1020
        %1056 = vmatpush1.msra.mxu0 %v1019
        %1057 = vmatprep.subr.mxu0 %v1022
        %1058 = vmatpush1.msra.mxu0 %v1021
        %1059 = vmatprep.subr.mxu0 %v1024
        %1060 = vmatpush1.msra.mxu0 %v1023
        %1061 = vmatprep.subr.mxu0 %v1026
        %1062 = vmatpush1.msra.mxu0 %v1025
        %1063 = vmatprep.subr.mxu0 0.0
        %1064 = vmatpush1.msra.mxu0 0.0
        %1065 = vmatprep.subr.mxu0 0.0
        %1066 = vmatpush1.msra.mxu0 0.0
        %1067 = vmatprep.subr.mxu0 0.0
        %1068 = vmatpush1.msra.mxu0 0.0
        %1069 = vmatprep.subr.mxu0 0.0
        %1070 = vmatpush1.msra.mxu0 0.0
        %1071 = vmatprep.subr.mxu0 0.0
        %1072 = vmatpush1.msra.mxu0 0.0
        %1073 = vmatprep.subr.mxu0 0.0
        %1074 = vmatpush1.msra.mxu0 0.0
        %1075 = vmatprep.subr.mxu0 0.0
        %1076 = vmatpush1.msra.mxu0 0.0
        %1077 = vmatprep.subr.mxu0 0.0
        %1078 = vmatpush1.msra.mxu0 0.0
        %1079 = vmatprep.subr.mxu0 0.0
        %1080 = vmatpush1.msra.mxu0 0.0
        %1081 = vmatprep.subr.mxu0 0.0
        %1082 = vmatpush1.msra.mxu0 0.0
        %1083 = vmatprep.subr.mxu0 0.0
        %1084 = vmatpush1.msra.mxu0 0.0
        %1085 = vmatprep.subr.mxu0 0.0
        %1086 = vmatpush1.msra.mxu0 0.0
        %1087 = vmatprep.subr.mxu0 0.0
        %1088 = vmatpush1.msra.mxu0 0.0
        %1089 = vmatprep.subr.mxu0 0.0
        %1090 = vmatpush1.msra.mxu0 0.0
        %1091 = vmatprep.subr.mxu0 0.0
        %1092 = vmatpush1.msra.mxu0 0.0
        %1093 = vmatprep.subr.mxu0 0.0
        %1094 = vmatpush1.msra.mxu0 0.0
        %1095 = vmatprep.subr.mxu0 0.0
        %1096 = vmatpush1.msra.mxu0 0.0
        %1097 = vmatprep.subr.mxu0 0.0
        %1098 = vmatpush1.msra.mxu0 0.0
        %1099 = vmatprep.subr.mxu0 0.0
        %1100 = vmatpush1.msra.mxu0 0.0
        %1101 = vmatprep.subr.mxu0 0.0
        %1102 = vmatpush1.msra.mxu0 0.0
        %1103 = vmatprep.mubr.f32.mxu0 0.0
        %1104 = vmatmul.mubr.f32.gmra.mrb[0].mxu0 %v1028
        %v1105 = vpop.f32.mrb[0].mxu0
        %v1106 = vadd.f32 0.0, %v1105
        %v1107 = vpop.f32.mrb[0].mxu0
        %v1108 = vadd.f32 0.0, %v1107
        %1109 = vmatprep.mubr.f32.mxu0 0.0
        %1110 = vmatmul.mubr.f32.gmra.mrb[0].mxu0 %v1031
        %v1111 = vpop.f32.mrb[0].mxu0
        %v1112 = vadd.f32 0.0, %v1111
        %v1113 = vpop.f32.mrb[0].mxu0
        %v1114 = vadd.f32 0.0, %v1113
        %1115 = vmatprep.mubr.f32.mxu0 0.0
        %1116 = vmatmul.mubr.f32.gmra.mrb[0].mxu0 %v1034
        %v1117 = vpop.f32.mrb[0].mxu0
        %v1118 = vadd.f32 0.0, %v1117
        %v1119 = vpop.f32.mrb[0].mxu0
        %v1120 = vadd.f32 0.0, %v1119
        %1121 = vmatprep.mubr.f32.mxu0 0.0
        %1122 = vmatmul.mubr.f32.gmra.mrb[0].mxu0 %v1037
        %v1123 = vpop.f32.mrb[0].mxu0
        %v1124 = vadd.f32 0.0, %v1123
        %v1125 = vpop.f32.mrb[0].mxu0
        %v1126 = vadd.f32 0.0, %v1125
        %1127 = vdwg.mxu0
        %v1128 = vadd.f32 %v990, %v1106
        %v1129 = vadd.f32 %v991, %v1108
        %v1130 = vadd.f32 %v992, %v1112
        %v1131 = vadd.f32 %v993, %v1114
        %v1132 = vadd.f32 %v994, %v1118
        %v1133 = vadd.f32 %v995, %v1120
        %v1134 = vadd.f32 %v996, %v1124
        %v1135 = vadd.f32 %v997, %v1126
        %v1136 = vld [vmem:[%s599 + $0x4] sm:$0xff]
        %v1137 = vld [vmem:[%s599 + $0xc] sm:$0xff]
        %v1138 = vld [vmem:[%s599 + $0x14] sm:$0xff]
        %v1139 = vld [vmem:[%s599 + $0x1c] sm:$0xf]
        %s1140 = scalar_lea.vmem %s1, 768
        %v1141 = vld [vmem:[%s1140] sm:$0xff]
        %v1142 = vld [vmem:[%s1140 + $0x8] sm:$0xff]
        %v1143 = vld [vmem:[%s1140 + $0x10] sm:$0xff]
        %v1144 = vld [vmem:[%s1140 + $0x18] sm:$0xff]
        %v1145 = vld [vmem:[%s1140 + $0x20] sm:$0xff]
        %v1146 = vld [vmem:[%s1140 + $0x28] sm:$0xff]
        %v1147 = vld [vmem:[%s1140 + $0x30] sm:$0xff]
        %v1148 = vld [vmem:[%s1140 + $0x38] sm:$0xff]
        %v1149 = vld [vmem:[%s1140 + $0x40] sm:$0xff]
        %v1150 = vld [vmem:[%s1140 + $0x48] sm:$0xff]
        %v1151 = vld [vmem:[%s1140 + $0x50] sm:$0xff]
        %v1152 = vld [vmem:[%s1140 + $0x58] sm:$0xff]
        %v1153 = vld [vmem:[%s1140 + $0x60] sm:$0xff]
        %v1154 = vld [vmem:[%s1140 + $0x68] sm:$0xff]
        %v1155 = vld [vmem:[%s1140 + $0x70] sm:$0xff]
        %v1156 = vld [vmem:[%s1140 + $0x78] sm:$0xff]
        %v1157 = vld [vmem:[%s1140 + $0x80] sm:$0xff]
        %v1158 = vld [vmem:[%s1140 + $0x88] sm:$0xff]
        %v1159 = vld [vmem:[%s1140 + $0x90] sm:$0xff]
        %v1160 = vld [vmem:[%s1140 + $0x98] sm:$0xff]
        %v1161 = vld [vmem:[%s1140 + $0xa0] sm:$0xff]
        %v1162 = vld [vmem:[%s1140 + $0xa8] sm:$0xff]
        %v1163 = vld [vmem:[%s1140 + $0xb0] sm:$0xff]
        %v1164 = vld [vmem:[%s1140 + $0xb8] sm:$0xff]
        %v1166 = vsel %vm657, %v1136, 0
        %v1169 = vsel %vm657, %v1137, 0
        %v1172 = vsel %vm657, %v1138, 0
        %v1175 = vsel %vm657, %v1139, 0
        %1177 = vmatprep.subr.mxu0 %v1142
        %1178 = vmatpush1.msra.mxu0 %v1141
        %1179 = vmatprep.subr.mxu0 %v1144
        %1180 = vmatpush1.msra.mxu0 %v1143
        %1181 = vmatprep.subr.mxu0 %v1146
        %1182 = vmatpush1.msra.mxu0 %v1145
        %1183 = vmatprep.subr.mxu0 %v1148
        %1184 = vmatpush1.msra.mxu0 %v1147
        %1185 = vmatprep.subr.mxu0 %v1150
        %1186 = vmatpush1.msra.mxu0 %v1149
        %1187 = vmatprep.subr.mxu0 %v1152
        %1188 = vmatpush1.msra.mxu0 %v1151
        %1189 = vmatprep.subr.mxu0 %v1154
        %1190 = vmatpush1.msra.mxu0 %v1153
        %1191 = vmatprep.subr.mxu0 %v1156
        %1192 = vmatpush1.msra.mxu0 %v1155
        %1193 = vmatprep.subr.mxu0 %v1158
        %1194 = vmatpush1.msra.mxu0 %v1157
        %1195 = vmatprep.subr.mxu0 %v1160
        %1196 = vmatpush1.msra.mxu0 %v1159
        %1197 = vmatprep.subr.mxu0 %v1162
        %1198 = vmatpush1.msra.mxu0 %v1161
        %1199 = vmatprep.subr.mxu0 %v1164
        %1200 = vmatpush1.msra.mxu0 %v1163
        %1201 = vmatprep.subr.mxu0 0.0
        %1202 = vmatpush1.msra.mxu0 0.0
        %1203 = vmatprep.subr.mxu0 0.0
        %1204 = vmatpush1.msra.mxu0 0.0
        %1205 = vmatprep.subr.mxu0 0.0
        %1206 = vmatpush1.msra.mxu0 0.0
        %1207 = vmatprep.subr.mxu0 0.0
        %1208 = vmatpush1.msra.mxu0 0.0
        %1209 = vmatprep.subr.mxu0 0.0
        %1210 = vmatpush1.msra.mxu0 0.0
        %1211 = vmatprep.subr.mxu0 0.0
        %1212 = vmatpush1.msra.mxu0 0.0
        %1213 = vmatprep.subr.mxu0 0.0
        %1214 = vmatpush1.msra.mxu0 0.0
        %1215 = vmatprep.subr.mxu0 0.0
        %1216 = vmatpush1.msra.mxu0 0.0
        %1217 = vmatprep.subr.mxu0 0.0
        %1218 = vmatpush1.msra.mxu0 0.0
        %1219 = vmatprep.subr.mxu0 0.0
        %1220 = vmatpush1.msra.mxu0 0.0
        %1221 = vmatprep.subr.mxu0 0.0
        %1222 = vmatpush1.msra.mxu0 0.0
        %1223 = vmatprep.subr.mxu0 0.0
        %1224 = vmatpush1.msra.mxu0 0.0
        %1225 = vmatprep.subr.mxu0 0.0
        %1226 = vmatpush1.msra.mxu0 0.0
        %1227 = vmatprep.subr.mxu0 0.0
        %1228 = vmatpush1.msra.mxu0 0.0
        %1229 = vmatprep.subr.mxu0 0.0
        %1230 = vmatpush1.msra.mxu0 0.0
        %1231 = vmatprep.subr.mxu0 0.0
        %1232 = vmatpush1.msra.mxu0 0.0
        %1233 = vmatprep.subr.mxu0 0.0
        %1234 = vmatpush1.msra.mxu0 0.0
        %1235 = vmatprep.subr.mxu0 0.0
        %1236 = vmatpush1.msra.mxu0 0.0
        %1237 = vmatprep.subr.mxu0 0.0
        %1238 = vmatpush1.msra.mxu0 0.0
        %1239 = vmatprep.subr.mxu0 0.0
        %1240 = vmatpush1.msra.mxu0 0.0
        %1241 = vmatprep.mubr.f32.mxu0 0.0
        %1242 = vmatmul.mubr.f32.gmra.mrb[0].mxu0 %v1166
        %v1243 = vpop.f32.mrb[0].mxu0
        %v1244 = vadd.f32 0.0, %v1243
        %v1245 = vpop.f32.mrb[0].mxu0
        %v1246 = vadd.f32 0.0, %v1245
        %1247 = vmatprep.mubr.f32.mxu0 0.0
        %1248 = vmatmul.mubr.f32.gmra.mrb[0].mxu0 %v1169
        %v1249 = vpop.f32.mrb[0].mxu0
        %v1250 = vadd.f32 0.0, %v1249
        %v1251 = vpop.f32.mrb[0].mxu0
        %v1252 = vadd.f32 0.0, %v1251
        %1253 = vmatprep.mubr.f32.mxu0 0.0
        %1254 = vmatmul.mubr.f32.gmra.mrb[0].mxu0 %v1172
        %v1255 = vpop.f32.mrb[0].mxu0
        %v1256 = vadd.f32 0.0, %v1255
        %v1257 = vpop.f32.mrb[0].mxu0
        %v1258 = vadd.f32 0.0, %v1257
        %1259 = vmatprep.mubr.f32.mxu0 0.0
        %1260 = vmatmul.mubr.f32.gmra.mrb[0].mxu0 %v1175
        %v1261 = vpop.f32.mrb[0].mxu0
        %v1262 = vadd.f32 0.0, %v1261
        %v1263 = vpop.f32.mrb[0].mxu0
        %v1264 = vadd.f32 0.0, %v1263
        %1265 = vdwg.mxu0
        %v1266 = vadd.f32 %v1128, %v1244
        %v1267 = vadd.f32 %v1129, %v1246
        %v1268 = vadd.f32 %v1130, %v1250
        %v1269 = vadd.f32 %v1131, %v1252
        %v1270 = vadd.f32 %v1132, %v1256
        %v1271 = vadd.f32 %v1133, %v1258
        %v1272 = vadd.f32 %v1134, %v1262
        %v1273 = vadd.f32 %v1135, %v1264
        %v1274 = vld [vmem:[%s2] sm:$0x3]
        %v1276 = vlaneseq
        %v1277 = vshrl.u32 %v1276, 7
        %v1278 = vsub.s32 0, %v1277
        %v1279 = vrot.slane %v1274, %v1278
        %v1280 = vlaneseq
        %v1281 = vshrl.u32 %v1280, 7
        %v1282 = vsub.s32 1, %v1281
        %v1283 = vrot.slane %v1274, %v1282
        %v1286 = vadd.f32 %v1266, %v1279
        %v1287 = vadd.f32 %v1267, %v1283
        %v1288 = vadd.f32 %v1268, %v1279
        %v1289 = vadd.f32 %v1269, %v1283
        %v1290 = vadd.f32 %v1270, %v1279
        %v1291 = vadd.f32 %v1271, %v1283
        %v1292 = vadd.f32 %v1272, %v1279
        %v1293 = vadd.f32 %v1273, %v1283
        %v1294 = vmax.f32 %v1286, 0.0
        %v1295 = vmax.f32 %v1287, 0.0
        %v1296 = vmax.f32 %v1288, 0.0
        %v1297 = vmax.f32 %v1289, 0.0
        %v1298 = vmax.f32 %v1290, 0.0
        %v1299 = vmax.f32 %v1291, 0.0
        %v1300 = vmax.f32 %v1292, 0.0
        %v1301 = vmax.f32 %v1293, 0.0
        %v1302 = vld [vmem:[%s3] sm:$0xff]
        %v1303 = vld [vmem:[%s3 + $0x8] sm:$0x3f]
        %vm1304 = vcmask 228352
        %v1306 = vsel %vm1304, %v1302, 0
        %v1309 = vsel %vm1304, %v1303, 0
        %vm1311 = vcmask 1043456
        %v1313 = vsel %vm1311, %v1300, 0
        %v1316 = vsel %vm1311, %v1301, 0
        %1318 = vmatprep.subr.mxu0 %v1295
        %1319 = vmatpush1.msra.mxu0 %v1294
        %1320 = vmatprep.subr.mxu0 %v1297
        %1321 = vmatpush1.msra.mxu0 %v1296
        %1322 = vmatprep.subr.mxu0 %v1299
        %1323 = vmatpush1.msra.mxu0 %v1298
        %1324 = vmatprep.subr.mxu0 %v1316
        %1325 = vmatpush1.msra.mxu0 %v1313
        %1326 = vmatprep.subr.mxu0 0.0
        %1327 = vmatpush1.msra.mxu0 0.0
        %1328 = vmatprep.subr.mxu0 0.0
        %1329 = vmatpush1.msra.mxu0 0.0
        %1330 = vmatprep.subr.mxu0 0.0
        %1331 = vmatpush1.msra.mxu0 0.0
        %1332 = vmatprep.subr.mxu0 0.0
        %1333 = vmatpush1.msra.mxu0 0.0
        %1334 = vmatprep.subr.mxu0 0.0
        %1335 = vmatpush1.msra.mxu0 0.0
        %1336 = vmatprep.subr.mxu0 0.0
        %1337 = vmatpush1.msra.mxu0 0.0
        %1338 = vmatprep.subr.mxu0 0.0
        %1339 = vmatpush1.msra.mxu0 0.0
        %1340 = vmatprep.subr.mxu0 0.0
        %1341 = vmatpush1.msra.mxu0 0.0
        %1342 = vmatprep.subr.mxu0 0.0
        %1343 = vmatpush1.msra.mxu0 0.0
        %1344 = vmatprep.subr.mxu0 0.0
        %1345 = vmatpush1.msra.mxu0 0.0
        %1346 = vmatprep.subr.mxu0 0.0
        %1347 = vmatpush1.msra.mxu0 0.0
        %1348 = vmatprep.subr.mxu0 0.0
        %1349 = vmatpush1.msra.mxu0 0.0
        %1350 = vmatprep.subr.mxu0 0.0
        %1351 = vmatpush1.msra.mxu0 0.0
        %1352 = vmatprep.subr.mxu0 0.0
        %1353 = vmatpush1.msra.mxu0 0.0
        %1354 = vmatprep.subr.mxu0 0.0
        %1355 = vmatpush1.msra.mxu0 0.0
        %1356 = vmatprep.subr.mxu0 0.0
        %1357 = vmatpush1.msra.mxu0 0.0
        %1358 = vmatprep.subr.mxu0 0.0
        %1359 = vmatpush1.msra.mxu0 0.0
        %1360 = vmatprep.subr.mxu0 0.0
        %1361 = vmatpush1.msra.mxu0 0.0
        %1362 = vmatprep.subr.mxu0 0.0
        %1363 = vmatpush1.msra.mxu0 0.0
        %1364 = vmatprep.subr.mxu0 0.0
        %1365 = vmatpush1.msra.mxu0 0.0
        %1366 = vmatprep.subr.mxu0 0.0
        %1367 = vmatpush1.msra.mxu0 0.0
        %1368 = vmatprep.subr.mxu0 0.0
        %1369 = vmatpush1.msra.mxu0 0.0
        %1370 = vmatprep.subr.mxu0 0.0
        %1371 = vmatpush1.msra.mxu0 0.0
        %1372 = vmatprep.subr.mxu0 0.0
        %1373 = vmatpush1.msra.mxu0 0.0
        %1374 = vmatprep.subr.mxu0 0.0
        %1375 = vmatpush1.msra.mxu0 0.0
        %1376 = vmatprep.subr.mxu0 0.0
        %1377 = vmatpush1.msra.mxu0 0.0
        %1378 = vmatprep.subr.mxu0 0.0
        %1379 = vmatpush1.msra.mxu0 0.0
        %1380 = vmatprep.subr.mxu0 0.0
        %1381 = vmatpush1.msra.mxu0 0.0
        %1382 = vmatprep.mubr.f32.mxu0 0.0
        %1383 = vmatmul.mubr.f32.gmra.mrb[0].mxu0 %v1306
        %v1384 = vpop.f32.mrb[0].mxu0
        %v1385 = vadd.f32 0.0, %v1384
        %v1386 = vpop.f32.mrb[0].mxu0
        %v1387 = vadd.f32 0.0, %v1386
        %1388 = vmatprep.mubr.f32.mxu0 0.0
        %1389 = vmatmul.mubr.f32.gmra.mrb[0].mxu0 %v1309
        %v1390 = vpop.f32.mrb[0].mxu0
        %v1391 = vadd.f32 0.0, %v1390
        %v1392 = vpop.f32.mrb[0].mxu0
        %v1393 = vadd.f32 0.0, %v1392
        %1394 = vdwg.mxu0
        %v1395 = vld [vmem:[%s4] sm:$0xff]
        %v1396 = vld [vmem:[%s4 + $0x8] sm:$0x3f]
        %v1398 = vsel %vm1304, %v1395, 0
        %v1401 = vsel %vm1304, %v1396, 0
        %1403 = vmatprep.subr.mxu0 %v1295
        %1404 = vmatpush1.msra.mxu0 %v1294
        %1405 = vmatprep.subr.mxu0 %v1297
        %1406 = vmatpush1.msra.mxu0 %v1296
        %1407 = vmatprep.subr.mxu0 %v1299
        %1408 = vmatpush1.msra.mxu0 %v1298
        %1409 = vmatprep.subr.mxu0 %v1316
        %1410 = vmatpush1.msra.mxu0 %v1313
        %1411 = vmatprep.subr.mxu0 0.0
        %1412 = vmatpush1.msra.mxu0 0.0
        %1413 = vmatprep.subr.mxu0 0.0
        %1414 = vmatpush1.msra.mxu0 0.0
        %1415 = vmatprep.subr.mxu0 0.0
        %1416 = vmatpush1.msra.mxu0 0.0
        %1417 = vmatprep.subr.mxu0 0.0
        %1418 = vmatpush1.msra.mxu0 0.0
        %1419 = vmatprep.subr.mxu0 0.0
        %1420 = vmatpush1.msra.mxu0 0.0
        %1421 = vmatprep.subr.mxu0 0.0
        %1422 = vmatpush1.msra.mxu0 0.0
        %1423 = vmatprep.subr.mxu0 0.0
        %1424 = vmatpush1.msra.mxu0 0.0
        %1425 = vmatprep.subr.mxu0 0.0
        %1426 = vmatpush1.msra.mxu0 0.0
        %1427 = vmatprep.subr.mxu0 0.0
        %1428 = vmatpush1.msra.mxu0 0.0
        %1429 = vmatprep.subr.mxu0 0.0
        %1430 = vmatpush1.msra.mxu0 0.0
        %1431 = vmatprep.subr.mxu0 0.0
        %1432 = vmatpush1.msra.mxu0 0.0
        %1433 = vmatprep.subr.mxu0 0.0
        %1434 = vmatpush1.msra.mxu0 0.0
        %1435 = vmatprep.subr.mxu0 0.0
        %1436 = vmatpush1.msra.mxu0 0.0
        %1437 = vmatprep.subr.mxu0 0.0
        %1438 = vmatpush1.msra.mxu0 0.0
        %1439 = vmatprep.subr.mxu0 0.0
        %1440 = vmatpush1.msra.mxu0 0.0
        %1441 = vmatprep.subr.mxu0 0.0
        %1442 = vmatpush1.msra.mxu0 0.0
        %1443 = vmatprep.subr.mxu0 0.0
        %1444 = vmatpush1.msra.mxu0 0.0
        %1445 = vmatprep.subr.mxu0 0.0
        %1446 = vmatpush1.msra.mxu0 0.0
        %1447 = vmatprep.subr.mxu0 0.0
        %1448 = vmatpush1.msra.mxu0 0.0
        %1449 = vmatprep.subr.mxu0 0.0
        %1450 = vmatpush1.msra.mxu0 0.0
        %1451 = vmatprep.subr.mxu0 0.0
        %1452 = vmatpush1.msra.mxu0 0.0
        %1453 = vmatprep.subr.mxu0 0.0
        %1454 = vmatpush1.msra.mxu0 0.0
        %1455 = vmatprep.subr.mxu0 0.0
        %1456 = vmatpush1.msra.mxu0 0.0
        %1457 = vmatprep.subr.mxu0 0.0
        %1458 = vmatpush1.msra.mxu0 0.0
        %1459 = vmatprep.subr.mxu0 0.0
        %1460 = vmatpush1.msra.mxu0 0.0
        %1461 = vmatprep.subr.mxu0 0.0
        %1462 = vmatpush1.msra.mxu0 0.0
        %1463 = vmatprep.subr.mxu0 0.0
        %1464 = vmatpush1.msra.mxu0 0.0
        %1465 = vmatprep.subr.mxu0 0.0
        %1466 = vmatpush1.msra.mxu0 0.0
        %1467 = vmatprep.mubr.f32.mxu0 0.0
        %1468 = vmatmul.mubr.f32.gmra.mrb[0].mxu0 %v1398
        %v1469 = vpop.f32.mrb[0].mxu0
        %v1470 = vadd.f32 0.0, %v1469
        %v1471 = vpop.f32.mrb[0].mxu0
        %v1472 = vadd.f32 0.0, %v1471
        %1473 = vmatprep.mubr.f32.mxu0 0.0
        %1474 = vmatmul.mubr.f32.gmra.mrb[0].mxu0 %v1401
        %v1475 = vpop.f32.mrb[0].mxu0
        %v1476 = vadd.f32 0.0, %v1475
        %v1477 = vpop.f32.mrb[0].mxu0
        %v1478 = vadd.f32 0.0, %v1477
        %1479 = vdwg.mxu0
        %v1480 = vmax.f32 %v1385, %v1470
        %v1481 = vmax.f32 %v1387, %v1472
        %v1482 = vmax.f32 %v1391, %v1476
        %v1483 = vmax.f32 %v1393, %v1478
        %v1484 = vld [vmem:[%s5] sm:$0xff]
        %v1485 = vld [vmem:[%s5 + $0x8] sm:$0xff]
        %v1486 = vld [vmem:[%s5 + $0x10] sm:$0xff]
        %v1487 = vld [vmem:[%s5 + $0x18] sm:$0xff]
        %v1488 = vld [vmem:[%s5 + $0x20] sm:$0xff]
        %v1489 = vld [vmem:[%s5 + $0x28] sm:$0xff]
        %v1490 = vld [vmem:[%s5 + $0x30] sm:$0xff]
        %v1491 = vld [vmem:[%s5 + $0x38] sm:$0xff]
        %v1492 = vld [vmem:[%s5 + $0x40] sm:$0xff]
        %v1493 = vld [vmem:[%s5 + $0x48] sm:$0xff]
        %v1494 = vld [vmem:[%s5 + $0x50] sm:$0xff]
        %v1495 = vld [vmem:[%s5 + $0x58] sm:$0xff]
        %v1496 = vld [vmem:[%s5 + $0x60] sm:$0xff]
        %v1497 = vld [vmem:[%s5 + $0x68] sm:$0xff]
        %v1498 = vld [vmem:[%s5 + $0x70] sm:$0xff]
        %v1499 = vld [vmem:[%s5 + $0x78] sm:$0xff]
        %v1500 = vld [vmem:[%s5 + $0x80] sm:$0xff]
        %v1501 = vld [vmem:[%s5 + $0x88] sm:$0xff]
        %v1502 = vld [vmem:[%s5 + $0x90] sm:$0xff]
        %v1503 = vld [vmem:[%s5 + $0x98] sm:$0xff]
        %v1504 = vld [vmem:[%s5 + $0xa0] sm:$0xff]
        %vm1505 = vcmask 326656
        %v1507 = vsel %vm1505, %v1481, 0
        %v1510 = vsel %vm1505, %v1483, 0
        %1512 = vmatprep.subr.mxu0 0.0
        %1513 = vmatpush1.msra.mxu0 %v1484
        %1514 = vmatprep.subr.mxu0 0.0
        %1515 = vmatpush1.msra.mxu0 %v1485
        %1516 = vmatprep.subr.mxu0 0.0
        %1517 = vmatpush1.msra.mxu0 %v1486
        %1518 = vmatprep.subr.mxu0 0.0
        %1519 = vmatpush1.msra.mxu0 %v1487
        %1520 = vmatprep.subr.mxu0 0.0
        %1521 = vmatpush1.msra.mxu0 %v1488
        %1522 = vmatprep.subr.mxu0 0.0
        %1523 = vmatpush1.msra.mxu0 %v1489
        %1524 = vmatprep.subr.mxu0 0.0
        %1525 = vmatpush1.msra.mxu0 %v1490
        %1526 = vmatprep.subr.mxu0 0.0
        %1527 = vmatpush1.msra.mxu0 %v1491
        %1528 = vmatprep.subr.mxu0 0.0
        %1529 = vmatpush1.msra.mxu0 %v1492
        %1530 = vmatprep.subr.mxu0 0.0
        %1531 = vmatpush1.msra.mxu0 %v1493
        %1532 = vmatprep.subr.mxu0 0.0
        %1533 = vmatpush1.msra.mxu0 %v1494
        %1534 = vmatprep.subr.mxu0 0.0
        %1535 = vmatpush1.msra.mxu0 %v1495
        %1536 = vmatprep.subr.mxu0 0.0
        %1537 = vmatpush1.msra.mxu0 %v1496
        %1538 = vmatprep.subr.mxu0 0.0
        %1539 = vmatpush1.msra.mxu0 %v1497
        %1540 = vmatprep.subr.mxu0 0.0
        %1541 = vmatpush1.msra.mxu0 %v1498
        %1542 = vmatprep.subr.mxu0 0.0
        %1543 = vmatpush1.msra.mxu0 %v1499
        %1544 = vmatprep.subr.mxu0 0.0
        %1545 = vmatpush1.msra.mxu0 %v1500
        %1546 = vmatprep.subr.mxu0 0.0
        %1547 = vmatpush1.msra.mxu0 %v1501
        %1548 = vmatprep.subr.mxu0 0.0
        %1549 = vmatpush1.msra.mxu0 %v1502
        %1550 = vmatprep.subr.mxu0 0.0
        %1551 = vmatpush1.msra.mxu0 %v1503
        %1552 = vmatprep.subr.mxu0 0.0
        %1553 = vmatpush1.msra.mxu0 %v1504
        %1554 = vmatprep.subr.mxu0 0.0
        %1555 = vmatpush1.msra.mxu0 0.0
        %1556 = vmatprep.subr.mxu0 0.0
        %1557 = vmatpush1.msra.mxu0 0.0
        %1558 = vmatprep.subr.mxu0 0.0
        %1559 = vmatpush1.msra.mxu0 0.0
        %1560 = vmatprep.subr.mxu0 0.0
        %1561 = vmatpush1.msra.mxu0 0.0
        %1562 = vmatprep.subr.mxu0 0.0
        %1563 = vmatpush1.msra.mxu0 0.0
        %1564 = vmatprep.subr.mxu0 0.0
        %1565 = vmatpush1.msra.mxu0 0.0
        %1566 = vmatprep.subr.mxu0 0.0
        %1567 = vmatpush1.msra.mxu0 0.0
        %1568 = vmatprep.subr.mxu0 0.0
        %1569 = vmatpush1.msra.mxu0 0.0
        %1570 = vmatprep.subr.mxu0 0.0
        %1571 = vmatpush1.msra.mxu0 0.0
        %1572 = vmatprep.subr.mxu0 0.0
        %1573 = vmatpush1.msra.mxu0 0.0
        %1574 = vmatprep.subr.mxu0 0.0
        %1575 = vmatpush1.msra.mxu0 0.0
        %1576 = vmatprep.mubr.f32.mxu0 %v1507
        %1577 = vmatmul.mubr.f32.gmra.mrb[0].mxu0 %v1480
        %v1578 = vpop.f32.mrb[0].mxu0
        %v1579 = vadd.f32 0.0, %v1578
        %v1580 = vpop.f32.mrb[0].mxu0
        %1581 = vmatprep.mubr.f32.mxu0 %v1510
        %1582 = vmatmul.mubr.f32.gmra.mrb[0].mxu0 %v1482
        %v1583 = vpop.f32.mrb[0].mxu0
        %v1584 = vadd.f32 0.0, %v1583
        %v1585 = vpop.f32.mrb[0].mxu0
        %1586 = vdwg.mxu0
        %v1587 = vld [vmem:[%s6] sm:$0xff]
        %v1588 = vld [vmem:[%s6 + $0x8] sm:$0xff]
        %v1589 = vld [vmem:[%s6 + $0x10] sm:$0xff]
        %v1590 = vld [vmem:[%s6 + $0x18] sm:$0xff]
        %v1591 = vld [vmem:[%s6 + $0x20] sm:$0xff]
        %v1592 = vld [vmem:[%s6 + $0x28] sm:$0xff]
        %v1593 = vld [vmem:[%s6 + $0x30] sm:$0xff]
        %v1594 = vld [vmem:[%s6 + $0x38] sm:$0xff]
        %v1595 = vld [vmem:[%s6 + $0x40] sm:$0xff]
        %v1596 = vld [vmem:[%s6 + $0x48] sm:$0xff]
        %v1597 = vld [vmem:[%s6 + $0x50] sm:$0xff]
        %v1598 = vld [vmem:[%s6 + $0x58] sm:$0xff]
        %v1599 = vld [vmem:[%s6 + $0x60] sm:$0xff]
        %v1600 = vld [vmem:[%s6 + $0x68] sm:$0xff]
        %v1601 = vld [vmem:[%s6 + $0x70] sm:$0xff]
        %v1602 = vld [vmem:[%s6 + $0x78] sm:$0xff]
        %v1603 = vld [vmem:[%s6 + $0x80] sm:$0xff]
        %v1604 = vld [vmem:[%s6 + $0x88] sm:$0xff]
        %v1605 = vld [vmem:[%s6 + $0x90] sm:$0xff]
        %v1606 = vld [vmem:[%s6 + $0x98] sm:$0xff]
        %v1607 = vld [vmem:[%s6 + $0xa0] sm:$0xff]
        %1608 = vmatprep.subr.mxu0 0.0
        %1609 = vmatpush1.msra.mxu0 %v1587
        %1610 = vmatprep.subr.mxu0 0.0
        %1611 = vmatpush1.msra.mxu0 %v1588
        %1612 = vmatprep.subr.mxu0 0.0
        %1613 = vmatpush1.msra.mxu0 %v1589
        %1614 = vmatprep.subr.mxu0 0.0
        %1615 = vmatpush1.msra.mxu0 %v1590
        %1616 = vmatprep.subr.mxu0 0.0
        %1617 = vmatpush1.msra.mxu0 %v1591
        %1618 = vmatprep.subr.mxu0 0.0
        %1619 = vmatpush1.msra.mxu0 %v1592
        %1620 = vmatprep.subr.mxu0 0.0
        %1621 = vmatpush1.msra.mxu0 %v1593
        %1622 = vmatprep.subr.mxu0 0.0
        %1623 = vmatpush1.msra.mxu0 %v1594
        %1624 = vmatprep.subr.mxu0 0.0
        %1625 = vmatpush1.msra.mxu0 %v1595
        %1626 = vmatprep.subr.mxu0 0.0
        %1627 = vmatpush1.msra.mxu0 %v1596
        %1628 = vmatprep.subr.mxu0 0.0
        %1629 = vmatpush1.msra.mxu0 %v1597
        %1630 = vmatprep.subr.mxu0 0.0
        %1631 = vmatpush1.msra.mxu0 %v1598
        %1632 = vmatprep.subr.mxu0 0.0
        %1633 = vmatpush1.msra.mxu0 %v1599
        %1634 = vmatprep.subr.mxu0 0.0
        %1635 = vmatpush1.msra.mxu0 %v1600
        %1636 = vmatprep.subr.mxu0 0.0
        %1637 = vmatpush1.msra.mxu0 %v1601
        %1638 = vmatprep.subr.mxu0 0.0
        %1639 = vmatpush1.msra.mxu0 %v1602
        %1640 = vmatprep.subr.mxu0 0.0
        %1641 = vmatpush1.msra.mxu0 %v1603
        %1642 = vmatprep.subr.mxu0 0.0
        %1643 = vmatpush1.msra.mxu0 %v1604
        %1644 = vmatprep.subr.mxu0 0.0
        %1645 = vmatpush1.msra.mxu0 %v1605
        %1646 = vmatprep.subr.mxu0 0.0
        %1647 = vmatpush1.msra.mxu0 %v1606
        %1648 = vmatprep.subr.mxu0 0.0
        %1649 = vmatpush1.msra.mxu0 %v1607
        %1650 = vmatprep.subr.mxu0 0.0
        %1651 = vmatpush1.msra.mxu0 0.0
        %1652 = vmatprep.subr.mxu0 0.0
        %1653 = vmatpush1.msra.mxu0 0.0
        %1654 = vmatprep.subr.mxu0 0.0
        %1655 = vmatpush1.msra.mxu0 0.0
        %1656 = vmatprep.subr.mxu0 0.0
        %1657 = vmatpush1.msra.mxu0 0.0
        %1658 = vmatprep.subr.mxu0 0.0
        %1659 = vmatpush1.msra.mxu0 0.0
        %1660 = vmatprep.subr.mxu0 0.0
        %1661 = vmatpush1.msra.mxu0 0.0
        %1662 = vmatprep.subr.mxu0 0.0
        %1663 = vmatpush1.msra.mxu0 0.0
        %1664 = vmatprep.subr.mxu0 0.0
        %1665 = vmatpush1.msra.mxu0 0.0
        %1666 = vmatprep.subr.mxu0 0.0
        %1667 = vmatpush1.msra.mxu0 0.0
        %1668 = vmatprep.subr.mxu0 0.0
        %1669 = vmatpush1.msra.mxu0 0.0
        %1670 = vmatprep.subr.mxu0 0.0
        %1671 = vmatpush1.msra.mxu0 0.0
        %1672 = vmatprep.mubr.f32.mxu0 %v1507
        %1673 = vmatmul.mubr.f32.gmra.mrb[0].mxu0 %v1480
        %v1674 = vpop.f32.mrb[0].mxu0
        %v1675 = vadd.f32 0.0, %v1674
        %v1676 = vpop.f32.mrb[0].mxu0
        %1677 = vmatprep.mubr.f32.mxu0 %v1510
        %1678 = vmatmul.mubr.f32.gmra.mrb[0].mxu0 %v1482
        %v1679 = vpop.f32.mrb[0].mxu0
        %v1680 = vadd.f32 0.0, %v1679
        %v1681 = vpop.f32.mrb[0].mxu0
        %1682 = vdwg.mxu0
        %v1683 = vmax.f32 %v1579, %v1675
        %v1684 = vmax.f32 %v1584, %v1680
        %vm1685 = vcmask 687104
        %1686 = vst.msk [vmem:[#allocation2] sm:$0xff] %vm1685, %v1683
        %vm1687 = vcmask 685056
        %1688 = vst.msk [vmem:[#allocation2 + $0x8] sm:$0x3f] %vm1687, %v1684
        %v1689 = vld [vmem:[#allocation2] sm:$0xff]
        %v1690 = vld [vmem:[#allocation2 + $0x8] sm:$0x3]
        %v1691 = vld [vmem:[%s7] sm:$0xff]
        %v1692 = vld [vmem:[%s7 + $0x8] sm:$0xff]
        %v1693 = vld [vmem:[%s7 + $0x10] sm:$0xff]
        %v1694 = vld [vmem:[%s7 + $0x18] sm:$0xff]
        %v1695 = vld [vmem:[%s7 + $0x20] sm:$0xff]
        %v1696 = vld [vmem:[%s7 + $0x28] sm:$0xff]
        %v1697 = vld [vmem:[%s7 + $0x30] sm:$0xff]
        %v1698 = vld [vmem:[%s7 + $0x38] sm:$0xff]
        %v1699 = vld [vmem:[%s7 + $0x40] sm:$0xff]
        %v1700 = vld [vmem:[%s7 + $0x48] sm:$0xff]
        %v1701 = vld [vmem:[%s7 + $0x50] sm:$0xff]
        %v1702 = vld [vmem:[%s7 + $0x58] sm:$0xff]
        %v1703 = vld [vmem:[%s7 + $0x60] sm:$0xff]
        %v1704 = vld [vmem:[%s7 + $0x68] sm:$0xff]
        %v1705 = vld [vmem:[%s7 + $0x70] sm:$0xff]
        %v1706 = vld [vmem:[%s7 + $0x78] sm:$0xff]
        %v1707 = vld [vmem:[%s7 + $0x80] sm:$0xff]
        %v1708 = vld [vmem:[%s7 + $0x88] sm:$0xff]
        %v1709 = vld [vmem:[%s7 + $0x90] sm:$0xff]
        %v1710 = vld [vmem:[%s7 + $0x98] sm:$0xff]
        %v1711 = vld [vmem:[%s7 + $0xa0] sm:$0xf]
        %v1712 = vld [vmem:[%s7 + $0xa8] sm:$0xf]
        %v1713 = vld [vmem:[#allocation2 + $0x1] sm:$0xff]
        %v1714 = vld [vmem:[#allocation2 + $0x9] sm:$0x3]
        %s1715 = scalar_lea.vmem %s7, 176
        %v1716 = vld [vmem:[%s1715] sm:$0xff]
        %v1717 = vld [vmem:[%s1715 + $0x8] sm:$0xff]
        %v1718 = vld [vmem:[%s1715 + $0x10] sm:$0xff]
        %v1719 = vld [vmem:[%s1715 + $0x18] sm:$0xff]
        %v1720 = vld [vmem:[%s1715 + $0x20] sm:$0xff]
        %v1721 = vld [vmem:[%s1715 + $0x28] sm:$0xff]
        %v1722 = vld [vmem:[%s1715 + $0x30] sm:$0xff]
        %v1723 = vld [vmem:[%s1715 + $0x38] sm:$0xff]
        %v1724 = vld [vmem:[%s1715 + $0x40] sm:$0xff]
        %v1725 = vld [vmem:[%s1715 + $0x48] sm:$0xff]
        %v1726 = vld [vmem:[%s1715 + $0x50] sm:$0xff]
        %v1727 = vld [vmem:[%s1715 + $0x58] sm:$0xff]
        %v1728 = vld [vmem:[%s1715 + $0x60] sm:$0xff]
        %v1729 = vld [vmem:[%s1715 + $0x68] sm:$0xff]
        %v1730 = vld [vmem:[%s1715 + $0x70] sm:$0xff]
        %v1731 = vld [vmem:[%s1715 + $0x78] sm:$0xff]
        %v1732 = vld [vmem:[%s1715 + $0x80] sm:$0xff]
        %v1733 = vld [vmem:[%s1715 + $0x88] sm:$0xff]
        %v1734 = vld [vmem:[%s1715 + $0x90] sm:$0xff]
        %v1735 = vld [vmem:[%s1715 + $0x98] sm:$0xff]
        %v1736 = vld [vmem:[%s1715 + $0xa0] sm:$0xf]
        %v1737 = vld [vmem:[%s1715 + $0xa8] sm:$0xf]
        %v1739 = vsel %vm1685, %v1713, 0
        %v1742 = vsel %vm1685, %v1714, 0
        %v1745 = vsel %vm1311, %v1736, 0
        %v1748 = vsel %vm1311, %v1737, 0
        %1750 = vmatprep.subr.mxu0 %v1717
        %1751 = vmatpush1.msra.mxu0 %v1716
        %1752 = vmatprep.subr.mxu0 %v1719
        %1753 = vmatpush1.msra.mxu0 %v1718
        %1754 = vmatprep.subr.mxu0 %v1721
        %1755 = vmatpush1.msra.mxu0 %v1720
        %1756 = vmatprep.subr.mxu0 %v1723
        %1757 = vmatpush1.msra.mxu0 %v1722
        %1758 = vmatprep.subr.mxu0 %v1725
        %1759 = vmatpush1.msra.mxu0 %v1724
        %1760 = vmatprep.subr.mxu0 %v1727
        %1761 = vmatpush1.msra.mxu0 %v1726
        %1762 = vmatprep.subr.mxu0 %v1729
        %1763 = vmatpush1.msra.mxu0 %v1728
        %1764 = vmatprep.subr.mxu0 %v1731
        %1765 = vmatpush1.msra.mxu0 %v1730
        %1766 = vmatprep.subr.mxu0 %v1733
        %1767 = vmatpush1.msra.mxu0 %v1732
        %1768 = vmatprep.subr.mxu0 %v1735
        %1769 = vmatpush1.msra.mxu0 %v1734
        %1770 = vmatprep.subr.mxu0 %v1748
        %1771 = vmatpush1.msra.mxu0 %v1745
        %1772 = vmatprep.subr.mxu0 0.0
        %1773 = vmatpush1.msra.mxu0 0.0
        %1774 = vmatprep.subr.mxu0 0.0
        %1775 = vmatpush1.msra.mxu0 0.0
        %1776 = vmatprep.subr.mxu0 0.0
        %1777 = vmatpush1.msra.mxu0 0.0
        %1778 = vmatprep.subr.mxu0 0.0
        %1779 = vmatpush1.msra.mxu0 0.0
        %1780 = vmatprep.subr.mxu0 0.0
        %1781 = vmatpush1.msra.mxu0 0.0
        %1782 = vmatprep.subr.mxu0 0.0
        %1783 = vmatpush1.msra.mxu0 0.0
        %1784 = vmatprep.subr.mxu0 0.0
        %1785 = vmatpush1.msra.mxu0 0.0
        %1786 = vmatprep.subr.mxu0 0.0
        %1787 = vmatpush1.msra.mxu0 0.0
        %1788 = vmatprep.subr.mxu0 0.0
        %1789 = vmatpush1.msra.mxu0 0.0
        %1790 = vmatprep.subr.mxu0 0.0
        %1791 = vmatpush1.msra.mxu0 0.0
        %1792 = vmatprep.subr.mxu0 0.0
        %1793 = vmatpush1.msra.mxu0 0.0
        %1794 = vmatprep.subr.mxu0 0.0
        %1795 = vmatpush1.msra.mxu0 0.0
        %1796 = vmatprep.subr.mxu0 0.0
        %1797 = vmatpush1.msra.mxu0 0.0
        %1798 = vmatprep.subr.mxu0 0.0
        %1799 = vmatpush1.msra.mxu0 0.0
        %1800 = vmatprep.subr.mxu0 0.0
        %1801 = vmatpush1.msra.mxu0 0.0
        %1802 = vmatprep.subr.mxu0 0.0
        %1803 = vmatpush1.msra.mxu0 0.0
        %1804 = vmatprep.subr.mxu0 0.0
        %1805 = vmatpush1.msra.mxu0 0.0
        %1806 = vmatprep.subr.mxu0 0.0
        %1807 = vmatpush1.msra.mxu0 0.0
        %1808 = vmatprep.subr.mxu0 0.0
        %1809 = vmatpush1.msra.mxu0 0.0
        %1810 = vmatprep.subr.mxu0 0.0
        %1811 = vmatpush1.msra.mxu0 0.0
        %1812 = vmatprep.subr.mxu0 0.0
        %1813 = vmatpush1.msra.mxu0 0.0
        %1814 = vmatprep.mubr.f32.mxu0 0.0
        %1815 = vmatmul.mubr.f32.gmra.mrb[0].mxu0 %v1739
        %v1816 = vpop.f32.mrb[0].mxu0
        %v1817 = vadd.f32 0.0, %v1816
        %v1818 = vpop.f32.mrb[0].mxu0
        %v1819 = vadd.f32 0.0, %v1818
        %1820 = vmatprep.mubr.f32.mxu0 0.0
        %1821 = vmatmul.mubr.f32.gmra.mrb[0].mxu0 %v1742
        %v1822 = vpop.f32.mrb[0].mxu0
        %v1823 = vadd.f32 0.0, %v1822
        %v1824 = vpop.f32.mrb[0].mxu0
        %v1825 = vadd.f32 0.0, %v1824
        %1826 = vdwg.mxu0
        %v1828 = vsel %vm1685, %v1689, 0
        %v1831 = vsel %vm1685, %v1690, 0
        %v1834 = vsel %vm1311, %v1711, 0
        %v1837 = vsel %vm1311, %v1712, 0
        %1839 = vmatprep.subr.mxu0 %v1692
        %1840 = vmatpush1.msra.mxu0 %v1691
        %1841 = vmatprep.subr.mxu0 %v1694
        %1842 = vmatpush1.msra.mxu0 %v1693
        %1843 = vmatprep.subr.mxu0 %v1696
        %1844 = vmatpush1.msra.mxu0 %v1695
        %1845 = vmatprep.subr.mxu0 %v1698
        %1846 = vmatpush1.msra.mxu0 %v1697
        %1847 = vmatprep.subr.mxu0 %v1700
        %1848 = vmatpush1.msra.mxu0 %v1699
        %1849 = vmatprep.subr.mxu0 %v1702
        %1850 = vmatpush1.msra.mxu0 %v1701
        %1851 = vmatprep.subr.mxu0 %v1704
        %1852 = vmatpush1.msra.mxu0 %v1703
        %1853 = vmatprep.subr.mxu0 %v1706
        %1854 = vmatpush1.msra.mxu0 %v1705
        %1855 = vmatprep.subr.mxu0 %v1708
        %1856 = vmatpush1.msra.mxu0 %v1707
        %1857 = vmatprep.subr.mxu0 %v1710
        %1858 = vmatpush1.msra.mxu0 %v1709
        %1859 = vmatprep.subr.mxu0 %v1837
        %1860 = vmatpush1.msra.mxu0 %v1834
        %1861 = vmatprep.subr.mxu0 0.0
        %1862 = vmatpush1.msra.mxu0 0.0
        %1863 = vmatprep.subr.mxu0 0.0
        %1864 = vmatpush1.msra.mxu0 0.0
        %1865 = vmatprep.subr.mxu0 0.0
        %1866 = vmatpush1.msra.mxu0 0.0
        %1867 = vmatprep.subr.mxu0 0.0
        %1868 = vmatpush1.msra.mxu0 0.0
        %1869 = vmatprep.subr.mxu0 0.0
        %1870 = vmatpush1.msra.mxu0 0.0
        %1871 = vmatprep.subr.mxu0 0.0
        %1872 = vmatpush1.msra.mxu0 0.0
        %1873 = vmatprep.subr.mxu0 0.0
        %1874 = vmatpush1.msra.mxu0 0.0
        %1875 = vmatprep.subr.mxu0 0.0
        %1876 = vmatpush1.msra.mxu0 0.0
        %1877 = vmatprep.subr.mxu0 0.0
        %1878 = vmatpush1.msra.mxu0 0.0
        %1879 = vmatprep.subr.mxu0 0.0
        %1880 = vmatpush1.msra.mxu0 0.0
        %1881 = vmatprep.subr.mxu0 0.0
        %1882 = vmatpush1.msra.mxu0 0.0
        %1883 = vmatprep.subr.mxu0 0.0
        %1884 = vmatpush1.msra.mxu0 0.0
        %1885 = vmatprep.subr.mxu0 0.0
        %1886 = vmatpush1.msra.mxu0 0.0
        %1887 = vmatprep.subr.mxu0 0.0
        %1888 = vmatpush1.msra.mxu0 0.0
        %1889 = vmatprep.subr.mxu0 0.0
        %1890 = vmatpush1.msra.mxu0 0.0
        %1891 = vmatprep.subr.mxu0 0.0
        %1892 = vmatpush1.msra.mxu0 0.0
        %1893 = vmatprep.subr.mxu0 0.0
        %1894 = vmatpush1.msra.mxu0 0.0
        %1895 = vmatprep.subr.mxu0 0.0
        %1896 = vmatpush1.msra.mxu0 0.0
        %1897 = vmatprep.subr.mxu0 0.0
        %1898 = vmatpush1.msra.mxu0 0.0
        %1899 = vmatprep.subr.mxu0 0.0
        %1900 = vmatpush1.msra.mxu0 0.0
        %1901 = vmatprep.subr.mxu0 0.0
        %1902 = vmatpush1.msra.mxu0 0.0
        %1903 = vmatprep.mubr.f32.mxu0 0.0
        %1904 = vmatmul.mubr.f32.gmra.mrb[0].mxu0 %v1828
        %v1905 = vpop.f32.mrb[0].mxu0
        %v1906 = vadd.f32 %v1817, %v1905
        %v1907 = vpop.f32.mrb[0].mxu0
        %v1908 = vadd.f32 %v1819, %v1907
        %1909 = vmatprep.mubr.f32.mxu0 0.0
        %1910 = vmatmul.mubr.f32.gmra.mrb[0].mxu0 %v1831
        %v1911 = vpop.f32.mrb[0].mxu0
        %v1912 = vadd.f32 %v1823, %v1911
        %v1913 = vpop.f32.mrb[0].mxu0
        %v1914 = vadd.f32 %v1825, %v1913
        %1915 = vdwg.mxu0
        %v1916 = vld [vmem:[#allocation2 + $0x2] sm:$0xff]
        %v1917 = vld [vmem:[#allocation2 + $0xa] sm:$0x3]
        %s1918 = scalar_lea.vmem %s7, 352
        %v1919 = vld [vmem:[%s1918] sm:$0xff]
        %v1920 = vld [vmem:[%s1918 + $0x8] sm:$0xff]
        %v1921 = vld [vmem:[%s1918 + $0x10] sm:$0xff]
        %v1922 = vld [vmem:[%s1918 + $0x18] sm:$0xff]
        %v1923 = vld [vmem:[%s1918 + $0x20] sm:$0xff]
        %v1924 = vld [vmem:[%s1918 + $0x28] sm:$0xff]
        %v1925 = vld [vmem:[%s1918 + $0x30] sm:$0xff]
        %v1926 = vld [vmem:[%s1918 + $0x38] sm:$0xff]
        %v1927 = vld [vmem:[%s1918 + $0x40] sm:$0xff]
        %v1928 = vld [vmem:[%s1918 + $0x48] sm:$0xff]
        %v1929 = vld [vmem:[%s1918 + $0x50] sm:$0xff]
        %v1930 = vld [vmem:[%s1918 + $0x58] sm:$0xff]
        %v1931 = vld [vmem:[%s1918 + $0x60] sm:$0xff]
        %v1932 = vld [vmem:[%s1918 + $0x68] sm:$0xff]
        %v1933 = vld [vmem:[%s1918 + $0x70] sm:$0xff]
        %v1934 = vld [vmem:[%s1918 + $0x78] sm:$0xff]
        %v1935 = vld [vmem:[%s1918 + $0x80] sm:$0xff]
        %v1936 = vld [vmem:[%s1918 + $0x88] sm:$0xff]
        %v1937 = vld [vmem:[%s1918 + $0x90] sm:$0xff]
        %v1938 = vld [vmem:[%s1918 + $0x98] sm:$0xff]
        %v1939 = vld [vmem:[%s1918 + $0xa0] sm:$0xf]
        %v1940 = vld [vmem:[%s1918 + $0xa8] sm:$0xf]
        %v1942 = vsel %vm1685, %v1916, 0
        %v1945 = vsel %vm1685, %v1917, 0
        %v1948 = vsel %vm1311, %v1939, 0
        %v1951 = vsel %vm1311, %v1940, 0
        %1953 = vmatprep.subr.mxu0 %v1920
        %1954 = vmatpush1.msra.mxu0 %v1919
        %1955 = vmatprep.subr.mxu0 %v1922
        %1956 = vmatpush1.msra.mxu0 %v1921
        %1957 = vmatprep.subr.mxu0 %v1924
        %1958 = vmatpush1.msra.mxu0 %v1923
        %1959 = vmatprep.subr.mxu0 %v1926
        %1960 = vmatpush1.msra.mxu0 %v1925
        %1961 = vmatprep.subr.mxu0 %v1928
        %1962 = vmatpush1.msra.mxu0 %v1927
        %1963 = vmatprep.subr.mxu0 %v1930
        %1964 = vmatpush1.msra.mxu0 %v1929
        %1965 = vmatprep.subr.mxu0 %v1932
        %1966 = vmatpush1.msra.mxu0 %v1931
        %1967 = vmatprep.subr.mxu0 %v1934
        %1968 = vmatpush1.msra.mxu0 %v1933
        %1969 = vmatprep.subr.mxu0 %v1936
        %1970 = vmatpush1.msra.mxu0 %v1935
        %1971 = vmatprep.subr.mxu0 %v1938
        %1972 = vmatpush1.msra.mxu0 %v1937
        %1973 = vmatprep.subr.mxu0 %v1951
        %1974 = vmatpush1.msra.mxu0 %v1948
        %1975 = vmatprep.subr.mxu0 0.0
        %1976 = vmatpush1.msra.mxu0 0.0
        %1977 = vmatprep.subr.mxu0 0.0
        %1978 = vmatpush1.msra.mxu0 0.0
        %1979 = vmatprep.subr.mxu0 0.0
        %1980 = vmatpush1.msra.mxu0 0.0
        %1981 = vmatprep.subr.mxu0 0.0
        %1982 = vmatpush1.msra.mxu0 0.0
        %1983 = vmatprep.subr.mxu0 0.0
        %1984 = vmatpush1.msra.mxu0 0.0
        %1985 = vmatprep.subr.mxu0 0.0
        %1986 = vmatpush1.msra.mxu0 0.0
        %1987 = vmatprep.subr.mxu0 0.0
        %1988 = vmatpush1.msra.mxu0 0.0
        %1989 = vmatprep.subr.mxu0 0.0
        %1990 = vmatpush1.msra.mxu0 0.0
        %1991 = vmatprep.subr.mxu0 0.0
        %1992 = vmatpush1.msra.mxu0 0.0
        %1993 = vmatprep.subr.mxu0 0.0
        %1994 = vmatpush1.msra.mxu0 0.0
        %1995 = vmatprep.subr.mxu0 0.0
        %1996 = vmatpush1.msra.mxu0 0.0
        %1997 = vmatprep.subr.mxu0 0.0
        %1998 = vmatpush1.msra.mxu0 0.0
        %1999 = vmatprep.subr.mxu0 0.0
        %2000 = vmatpush1.msra.mxu0 0.0
        %2001 = vmatprep.subr.mxu0 0.0
        %2002 = vmatpush1.msra.mxu0 0.0
        %2003 = vmatprep.subr.mxu0 0.0
        %2004 = vmatpush1.msra.mxu0 0.0
        %2005 = vmatprep.subr.mxu0 0.0
        %2006 = vmatpush1.msra.mxu0 0.0
        %2007 = vmatprep.subr.mxu0 0.0
        %2008 = vmatpush1.msra.mxu0 0.0
        %2009 = vmatprep.subr.mxu0 0.0
        %2010 = vmatpush1.msra.mxu0 0.0
        %2011 = vmatprep.subr.mxu0 0.0
        %2012 = vmatpush1.msra.mxu0 0.0
        %2013 = vmatprep.subr.mxu0 0.0
        %2014 = vmatpush1.msra.mxu0 0.0
        %2015 = vmatprep.subr.mxu0 0.0
        %2016 = vmatpush1.msra.mxu0 0.0
        %2017 = vmatprep.mubr.f32.mxu0 0.0
        %2018 = vmatmul.mubr.f32.gmra.mrb[0].mxu0 %v1942
        %v2019 = vpop.f32.mrb[0].mxu0
        %v2020 = vadd.f32 0.0, %v2019
        %v2021 = vpop.f32.mrb[0].mxu0
        %v2022 = vadd.f32 0.0, %v2021
        %2023 = vmatprep.mubr.f32.mxu0 0.0
        %2024 = vmatmul.mubr.f32.gmra.mrb[0].mxu0 %v1945
        %v2025 = vpop.f32.mrb[0].mxu0
        %v2026 = vadd.f32 0.0, %v2025
        %v2027 = vpop.f32.mrb[0].mxu0
        %v2028 = vadd.f32 0.0, %v2027
        %2029 = vdwg.mxu0
        %v2030 = vadd.f32 %v1906, %v2020
        %v2031 = vadd.f32 %v1908, %v2022
        %v2032 = vadd.f32 %v1912, %v2026
        %v2033 = vadd.f32 %v1914, %v2028
        %v2034 = vld [vmem:[#allocation2 + $0x3] sm:$0xff]
        %v2035 = vld [vmem:[#allocation2 + $0xb] sm:$0x3]
        %s2036 = scalar_lea.vmem %s7, 528
        %v2037 = vld [vmem:[%s2036] sm:$0xff]
        %v2038 = vld [vmem:[%s2036 + $0x8] sm:$0xff]
        %v2039 = vld [vmem:[%s2036 + $0x10] sm:$0xff]
        %v2040 = vld [vmem:[%s2036 + $0x18] sm:$0xff]
        %v2041 = vld [vmem:[%s2036 + $0x20] sm:$0xff]
        %v2042 = vld [vmem:[%s2036 + $0x28] sm:$0xff]
        %v2043 = vld [vmem:[%s2036 + $0x30] sm:$0xff]
        %v2044 = vld [vmem:[%s2036 + $0x38] sm:$0xff]
        %v2045 = vld [vmem:[%s2036 + $0x40] sm:$0xff]
        %v2046 = vld [vmem:[%s2036 + $0x48] sm:$0xff]
        %v2047 = vld [vmem:[%s2036 + $0x50] sm:$0xff]
        %v2048 = vld [vmem:[%s2036 + $0x58] sm:$0xff]
        %v2049 = vld [vmem:[%s2036 + $0x60] sm:$0xff]
        %v2050 = vld [vmem:[%s2036 + $0x68] sm:$0xff]
        %v2051 = vld [vmem:[%s2036 + $0x70] sm:$0xff]
        %v2052 = vld [vmem:[%s2036 + $0x78] sm:$0xff]
        %v2053 = vld [vmem:[%s2036 + $0x80] sm:$0xff]
        %v2054 = vld [vmem:[%s2036 + $0x88] sm:$0xff]
        %v2055 = vld [vmem:[%s2036 + $0x90] sm:$0xff]
        %v2056 = vld [vmem:[%s2036 + $0x98] sm:$0xff]
        %v2057 = vld [vmem:[%s2036 + $0xa0] sm:$0xf]
        %v2058 = vld [vmem:[%s2036 + $0xa8] sm:$0xf]
        %v2060 = vsel %vm1685, %v2034, 0
        %v2063 = vsel %vm1685, %v2035, 0
        %v2066 = vsel %vm1311, %v2057, 0
        %v2069 = vsel %vm1311, %v2058, 0
        %2071 = vmatprep.subr.mxu0 %v2038
        %2072 = vmatpush1.msra.mxu0 %v2037
        %2073 = vmatprep.subr.mxu0 %v2040
        %2074 = vmatpush1.msra.mxu0 %v2039
        %2075 = vmatprep.subr.mxu0 %v2042
        %2076 = vmatpush1.msra.mxu0 %v2041
        %2077 = vmatprep.subr.mxu0 %v2044
        %2078 = vmatpush1.msra.mxu0 %v2043
        %2079 = vmatprep.subr.mxu0 %v2046
        %2080 = vmatpush1.msra.mxu0 %v2045
        %2081 = vmatprep.subr.mxu0 %v2048
        %2082 = vmatpush1.msra.mxu0 %v2047
        %2083 = vmatprep.subr.mxu0 %v2050
        %2084 = vmatpush1.msra.mxu0 %v2049
        %2085 = vmatprep.subr.mxu0 %v2052
        %2086 = vmatpush1.msra.mxu0 %v2051
        %2087 = vmatprep.subr.mxu0 %v2054
        %2088 = vmatpush1.msra.mxu0 %v2053
        %2089 = vmatprep.subr.mxu0 %v2056
        %2090 = vmatpush1.msra.mxu0 %v2055
        %2091 = vmatprep.subr.mxu0 %v2069
        %2092 = vmatpush1.msra.mxu0 %v2066
        %2093 = vmatprep.subr.mxu0 0.0
        %2094 = vmatpush1.msra.mxu0 0.0
        %2095 = vmatprep.subr.mxu0 0.0
        %2096 = vmatpush1.msra.mxu0 0.0
        %2097 = vmatprep.subr.mxu0 0.0
        %2098 = vmatpush1.msra.mxu0 0.0
        %2099 = vmatprep.subr.mxu0 0.0
        %2100 = vmatpush1.msra.mxu0 0.0
        %2101 = vmatprep.subr.mxu0 0.0
        %2102 = vmatpush1.msra.mxu0 0.0
        %2103 = vmatprep.subr.mxu0 0.0
        %2104 = vmatpush1.msra.mxu0 0.0
        %2105 = vmatprep.subr.mxu0 0.0
        %2106 = vmatpush1.msra.mxu0 0.0
        %2107 = vmatprep.subr.mxu0 0.0
        %2108 = vmatpush1.msra.mxu0 0.0
        %2109 = vmatprep.subr.mxu0 0.0
        %2110 = vmatpush1.msra.mxu0 0.0
        %2111 = vmatprep.subr.mxu0 0.0
        %2112 = vmatpush1.msra.mxu0 0.0
        %2113 = vmatprep.subr.mxu0 0.0
        %2114 = vmatpush1.msra.mxu0 0.0
        %2115 = vmatprep.subr.mxu0 0.0
        %2116 = vmatpush1.msra.mxu0 0.0
        %2117 = vmatprep.subr.mxu0 0.0
        %2118 = vmatpush1.msra.mxu0 0.0
        %2119 = vmatprep.subr.mxu0 0.0
        %2120 = vmatpush1.msra.mxu0 0.0
        %2121 = vmatprep.subr.mxu0 0.0
        %2122 = vmatpush1.msra.mxu0 0.0
        %2123 = vmatprep.subr.mxu0 0.0
        %2124 = vmatpush1.msra.mxu0 0.0
        %2125 = vmatprep.subr.mxu0 0.0
        %2126 = vmatpush1.msra.mxu0 0.0
        %2127 = vmatprep.subr.mxu0 0.0
        %2128 = vmatpush1.msra.mxu0 0.0
        %2129 = vmatprep.subr.mxu0 0.0
        %2130 = vmatpush1.msra.mxu0 0.0
        %2131 = vmatprep.subr.mxu0 0.0
        %2132 = vmatpush1.msra.mxu0 0.0
        %2133 = vmatprep.subr.mxu0 0.0
        %2134 = vmatpush1.msra.mxu0 0.0
        %2135 = vmatprep.mubr.f32.mxu0 0.0
        %2136 = vmatmul.mubr.f32.gmra.mrb[0].mxu0 %v2060
        %v2137 = vpop.f32.mrb[0].mxu0
        %v2138 = vadd.f32 0.0, %v2137
        %v2139 = vpop.f32.mrb[0].mxu0
        %v2140 = vadd.f32 0.0, %v2139
        %2141 = vmatprep.mubr.f32.mxu0 0.0
        %2142 = vmatmul.mubr.f32.gmra.mrb[0].mxu0 %v2063
        %v2143 = vpop.f32.mrb[0].mxu0
        %v2144 = vadd.f32 0.0, %v2143
        %v2145 = vpop.f32.mrb[0].mxu0
        %v2146 = vadd.f32 0.0, %v2145
        %2147 = vdwg.mxu0
        %v2148 = vadd.f32 %v2030, %v2138
        %v2149 = vadd.f32 %v2031, %v2140
        %v2150 = vadd.f32 %v2032, %v2144
        %v2151 = vadd.f32 %v2033, %v2146
        %v2152 = vld [vmem:[#allocation2 + $0x4] sm:$0xff]
        %v2153 = vld [vmem:[#allocation2 + $0xc] sm:$0x3]
        %s2154 = scalar_lea.vmem %s7, 704
        %v2155 = vld [vmem:[%s2154] sm:$0xff]
        %v2156 = vld [vmem:[%s2154 + $0x8] sm:$0xff]
        %v2157 = vld [vmem:[%s2154 + $0x10] sm:$0xff]
        %v2158 = vld [vmem:[%s2154 + $0x18] sm:$0xff]
        %v2159 = vld [vmem:[%s2154 + $0x20] sm:$0xff]
        %v2160 = vld [vmem:[%s2154 + $0x28] sm:$0xff]
        %v2161 = vld [vmem:[%s2154 + $0x30] sm:$0xff]
        %v2162 = vld [vmem:[%s2154 + $0x38] sm:$0xff]
        %v2163 = vld [vmem:[%s2154 + $0x40] sm:$0xff]
        %v2164 = vld [vmem:[%s2154 + $0x48] sm:$0xff]
        %v2165 = vld [vmem:[%s2154 + $0x50] sm:$0xff]
        %v2166 = vld [vmem:[%s2154 + $0x58] sm:$0xff]
        %v2167 = vld [vmem:[%s2154 + $0x60] sm:$0xff]
        %v2168 = vld [vmem:[%s2154 + $0x68] sm:$0xff]
        %v2169 = vld [vmem:[%s2154 + $0x70] sm:$0xff]
        %v2170 = vld [vmem:[%s2154 + $0x78] sm:$0xff]
        %v2171 = vld [vmem:[%s2154 + $0x80] sm:$0xff]
        %v2172 = vld [vmem:[%s2154 + $0x88] sm:$0xff]
        %v2173 = vld [vmem:[%s2154 + $0x90] sm:$0xff]
        %v2174 = vld [vmem:[%s2154 + $0x98] sm:$0xff]
        %v2175 = vld [vmem:[%s2154 + $0xa0] sm:$0xf]
        %v2176 = vld [vmem:[%s2154 + $0xa8] sm:$0xf]
        %v2178 = vsel %vm1685, %v2152, 0
        %v2181 = vsel %vm1685, %v2153, 0
        %v2184 = vsel %vm1311, %v2175, 0
        %v2187 = vsel %vm1311, %v2176, 0
        %2189 = vmatprep.subr.mxu0 %v2156
        %2190 = vmatpush1.msra.mxu0 %v2155
        %2191 = vmatprep.subr.mxu0 %v2158
        %2192 = vmatpush1.msra.mxu0 %v2157
        %2193 = vmatprep.subr.mxu0 %v2160
        %2194 = vmatpush1.msra.mxu0 %v2159
        %2195 = vmatprep.subr.mxu0 %v2162
        %2196 = vmatpush1.msra.mxu0 %v2161
        %2197 = vmatprep.subr.mxu0 %v2164
        %2198 = vmatpush1.msra.mxu0 %v2163
        %2199 = vmatprep.subr.mxu0 %v2166
        %2200 = vmatpush1.msra.mxu0 %v2165
        %2201 = vmatprep.subr.mxu0 %v2168
        %2202 = vmatpush1.msra.mxu0 %v2167
        %2203 = vmatprep.subr.mxu0 %v2170
        %2204 = vmatpush1.msra.mxu0 %v2169
        %2205 = vmatprep.subr.mxu0 %v2172
        %2206 = vmatpush1.msra.mxu0 %v2171
        %2207 = vmatprep.subr.mxu0 %v2174
        %2208 = vmatpush1.msra.mxu0 %v2173
        %2209 = vmatprep.subr.mxu0 %v2187
        %2210 = vmatpush1.msra.mxu0 %v2184
        %2211 = vmatprep.subr.mxu0 0.0
        %2212 = vmatpush1.msra.mxu0 0.0
        %2213 = vmatprep.subr.mxu0 0.0
        %2214 = vmatpush1.msra.mxu0 0.0
        %2215 = vmatprep.subr.mxu0 0.0
        %2216 = vmatpush1.msra.mxu0 0.0
        %2217 = vmatprep.subr.mxu0 0.0
        %2218 = vmatpush1.msra.mxu0 0.0
        %2219 = vmatprep.subr.mxu0 0.0
        %2220 = vmatpush1.msra.mxu0 0.0
        %2221 = vmatprep.subr.mxu0 0.0
        %2222 = vmatpush1.msra.mxu0 0.0
        %2223 = vmatprep.subr.mxu0 0.0
        %2224 = vmatpush1.msra.mxu0 0.0
        %2225 = vmatprep.subr.mxu0 0.0
        %2226 = vmatpush1.msra.mxu0 0.0
        %2227 = vmatprep.subr.mxu0 0.0
        %2228 = vmatpush1.msra.mxu0 0.0
        %2229 = vmatprep.subr.mxu0 0.0
        %2230 = vmatpush1.msra.mxu0 0.0
        %2231 = vmatprep.subr.mxu0 0.0
        %2232 = vmatpush1.msra.mxu0 0.0
        %2233 = vmatprep.subr.mxu0 0.0
        %2234 = vmatpush1.msra.mxu0 0.0
        %2235 = vmatprep.subr.mxu0 0.0
        %2236 = vmatpush1.msra.mxu0 0.0
        %2237 = vmatprep.subr.mxu0 0.0
        %2238 = vmatpush1.msra.mxu0 0.0
        %2239 = vmatprep.subr.mxu0 0.0
        %2240 = vmatpush1.msra.mxu0 0.0
        %2241 = vmatprep.subr.mxu0 0.0
        %2242 = vmatpush1.msra.mxu0 0.0
        %2243 = vmatprep.subr.mxu0 0.0
        %2244 = vmatpush1.msra.mxu0 0.0
        %2245 = vmatprep.subr.mxu0 0.0
        %2246 = vmatpush1.msra.mxu0 0.0
        %2247 = vmatprep.subr.mxu0 0.0
        %2248 = vmatpush1.msra.mxu0 0.0
        %2249 = vmatprep.subr.mxu0 0.0
        %2250 = vmatpush1.msra.mxu0 0.0
        %2251 = vmatprep.subr.mxu0 0.0
        %2252 = vmatpush1.msra.mxu0 0.0
        %2253 = vmatprep.mubr.f32.mxu0 0.0
        %2254 = vmatmul.mubr.f32.gmra.mrb[0].mxu0 %v2178
        %v2255 = vpop.f32.mrb[0].mxu0
        %v2256 = vadd.f32 0.0, %v2255
        %v2257 = vpop.f32.mrb[0].mxu0
        %v2258 = vadd.f32 0.0, %v2257
        %2259 = vmatprep.mubr.f32.mxu0 0.0
        %2260 = vmatmul.mubr.f32.gmra.mrb[0].mxu0 %v2181
        %v2261 = vpop.f32.mrb[0].mxu0
        %v2262 = vadd.f32 0.0, %v2261
        %v2263 = vpop.f32.mrb[0].mxu0
        %v2264 = vadd.f32 0.0, %v2263
        %2265 = vdwg.mxu0
        %v2266 = vadd.f32 %v2148, %v2256
        %v2267 = vadd.f32 %v2149, %v2258
        %v2268 = vadd.f32 %v2150, %v2262
        %v2269 = vadd.f32 %v2151, %v2264
        %v2270 = vld [vmem:[%s8] sm:$0x3]
        %v2272 = vlaneseq
        %v2273 = vshrl.u32 %v2272, 7
        %v2274 = vsub.s32 0, %v2273
        %v2275 = vrot.slane %v2270, %v2274
        %v2276 = vlaneseq
        %v2277 = vshrl.u32 %v2276, 7
        %v2278 = vsub.s32 1, %v2277
        %v2279 = vrot.slane %v2270, %v2278
        %v2282 = vadd.f32 %v2266, %v2275
        %v2283 = vadd.f32 %v2267, %v2279
        %v2284 = vadd.f32 %v2268, %v2275
        %v2285 = vadd.f32 %v2269, %v2279
        %v2286 = vmax.f32 %v2282, 0.0
        %v2287 = vmax.f32 %v2283, 0.0
        %v2288 = vmax.f32 %v2284, 0.0
        %v2289 = vmax.f32 %v2285, 0.0
        %v2290 = vld [vmem:[%s9] sm:$0x1f]
        %vm2291 = vcmask 80896
        %v2293 = vsel %vm2291, %v2290, 0
        %vm2295 = vcmask 1041408
        %v2297 = vsel %vm2295, %v2288, 0
        %v2300 = vsel %vm2295, %v2289, 0
        %2302 = vmatprep.subr.mxu0 %v2287
        %2303 = vmatpush1.msra.mxu0 %v2286
        %2304 = vmatprep.subr.mxu0 %v2300
        %2305 = vmatpush1.msra.mxu0 %v2297
        %2306 = vmatprep.subr.mxu0 0.0
        %2307 = vmatpush1.msra.mxu0 0.0
        %2308 = vmatprep.subr.mxu0 0.0
        %2309 = vmatpush1.msra.mxu0 0.0
        %2310 = vmatprep.subr.mxu0 0.0
        %2311 = vmatpush1.msra.mxu0 0.0
        %2312 = vmatprep.subr.mxu0 0.0
        %2313 = vmatpush1.msra.mxu0 0.0
        %2314 = vmatprep.subr.mxu0 0.0
        %2315 = vmatpush1.msra.mxu0 0.0
        %2316 = vmatprep.subr.mxu0 0.0
        %2317 = vmatpush1.msra.mxu0 0.0
        %2318 = vmatprep.subr.mxu0 0.0
        %2319 = vmatpush1.msra.mxu0 0.0
        %2320 = vmatprep.subr.mxu0 0.0
        %2321 = vmatpush1.msra.mxu0 0.0
        %2322 = vmatprep.subr.mxu0 0.0
        %2323 = vmatpush1.msra.mxu0 0.0
        %2324 = vmatprep.subr.mxu0 0.0
        %2325 = vmatpush1.msra.mxu0 0.0
        %2326 = vmatprep.subr.mxu0 0.0
        %2327 = vmatpush1.msra.mxu0 0.0
        %2328 = vmatprep.subr.mxu0 0.0
        %2329 = vmatpush1.msra.mxu0 0.0
        %2330 = vmatprep.subr.mxu0 0.0
        %2331 = vmatpush1.msra.mxu0 0.0
        %2332 = vmatprep.subr.mxu0 0.0
        %2333 = vmatpush1.msra.mxu0 0.0
        %2334 = vmatprep.subr.mxu0 0.0
        %2335 = vmatpush1.msra.mxu0 0.0
        %2336 = vmatprep.subr.mxu0 0.0
        %2337 = vmatpush1.msra.mxu0 0.0
        %2338 = vmatprep.subr.mxu0 0.0
        %2339 = vmatpush1.msra.mxu0 0.0
        %2340 = vmatprep.subr.mxu0 0.0
        %2341 = vmatpush1.msra.mxu0 0.0
        %2342 = vmatprep.subr.mxu0 0.0
        %2343 = vmatpush1.msra.mxu0 0.0
        %2344 = vmatprep.subr.mxu0 0.0
        %2345 = vmatpush1.msra.mxu0 0.0
        %2346 = vmatprep.subr.mxu0 0.0
        %2347 = vmatpush1.msra.mxu0 0.0
        %2348 = vmatprep.subr.mxu0 0.0
        %2349 = vmatpush1.msra.mxu0 0.0
        %2350 = vmatprep.subr.mxu0 0.0
        %2351 = vmatpush1.msra.mxu0 0.0
        %2352 = vmatprep.subr.mxu0 0.0
        %2353 = vmatpush1.msra.mxu0 0.0
        %2354 = vmatprep.subr.mxu0 0.0
        %2355 = vmatpush1.msra.mxu0 0.0
        %2356 = vmatprep.subr.mxu0 0.0
        %2357 = vmatpush1.msra.mxu0 0.0
        %2358 = vmatprep.subr.mxu0 0.0
        %2359 = vmatpush1.msra.mxu0 0.0
        %2360 = vmatprep.subr.mxu0 0.0
        %2361 = vmatpush1.msra.mxu0 0.0
        %2362 = vmatprep.subr.mxu0 0.0
        %2363 = vmatpush1.msra.mxu0 0.0
        %2364 = vmatprep.subr.mxu0 0.0
        %2365 = vmatpush1.msra.mxu0 0.0
        %2366 = vmatprep.mubr.f32.mxu0 0.0
        %2367 = vmatmul.mubr.f32.gmra.mrb[0].mxu0 %v2293
        %v2368 = vpop.f32.mrb[0].mxu0
        %v2369 = vadd.f32 0.0, %v2368
        %v2370 = vpop.f32.mrb[0].mxu0
        %v2371 = vadd.f32 0.0, %v2370
        %2372 = vdwg.mxu0
        %v2373 = vld [vmem:[%s10] sm:$0x1f]
        %v2375 = vsel %vm2291, %v2373, 0
        %2377 = vmatprep.subr.mxu0 %v2287
        %2378 = vmatpush1.msra.mxu0 %v2286
        %2379 = vmatprep.subr.mxu0 %v2300
        %2380 = vmatpush1.msra.mxu0 %v2297
        %2381 = vmatprep.subr.mxu0 0.0
        %2382 = vmatpush1.msra.mxu0 0.0
        %2383 = vmatprep.subr.mxu0 0.0
        %2384 = vmatpush1.msra.mxu0 0.0
        %2385 = vmatprep.subr.mxu0 0.0
        %2386 = vmatpush1.msra.mxu0 0.0
        %2387 = vmatprep.subr.mxu0 0.0
        %2388 = vmatpush1.msra.mxu0 0.0
        %2389 = vmatprep.subr.mxu0 0.0
        %2390 = vmatpush1.msra.mxu0 0.0
        %2391 = vmatprep.subr.mxu0 0.0
        %2392 = vmatpush1.msra.mxu0 0.0
        %2393 = vmatprep.subr.mxu0 0.0
        %2394 = vmatpush1.msra.mxu0 0.0
        %2395 = vmatprep.subr.mxu0 0.0
        %2396 = vmatpush1.msra.mxu0 0.0
        %2397 = vmatprep.subr.mxu0 0.0
        %2398 = vmatpush1.msra.mxu0 0.0
        %2399 = vmatprep.subr.mxu0 0.0
        %2400 = vmatpush1.msra.mxu0 0.0
        %2401 = vmatprep.subr.mxu0 0.0
        %2402 = vmatpush1.msra.mxu0 0.0
        %2403 = vmatprep.subr.mxu0 0.0
        %2404 = vmatpush1.msra.mxu0 0.0
        %2405 = vmatprep.subr.mxu0 0.0
        %2406 = vmatpush1.msra.mxu0 0.0
        %2407 = vmatprep.subr.mxu0 0.0
        %2408 = vmatpush1.msra.mxu0 0.0
        %2409 = vmatprep.subr.mxu0 0.0
        %2410 = vmatpush1.msra.mxu0 0.0
        %2411 = vmatprep.subr.mxu0 0.0
        %2412 = vmatpush1.msra.mxu0 0.0
        %2413 = vmatprep.subr.mxu0 0.0
        %2414 = vmatpush1.msra.mxu0 0.0
        %2415 = vmatprep.subr.mxu0 0.0
        %2416 = vmatpush1.msra.mxu0 0.0
        %2417 = vmatprep.subr.mxu0 0.0
        %2418 = vmatpush1.msra.mxu0 0.0
        %2419 = vmatprep.subr.mxu0 0.0
        %2420 = vmatpush1.msra.mxu0 0.0
        %2421 = vmatprep.subr.mxu0 0.0
        %2422 = vmatpush1.msra.mxu0 0.0
        %2423 = vmatprep.subr.mxu0 0.0
        %2424 = vmatpush1.msra.mxu0 0.0
        %2425 = vmatprep.subr.mxu0 0.0
        %2426 = vmatpush1.msra.mxu0 0.0
        %2427 = vmatprep.subr.mxu0 0.0
        %2428 = vmatpush1.msra.mxu0 0.0
        %2429 = vmatprep.subr.mxu0 0.0
        %2430 = vmatpush1.msra.mxu0 0.0
        %2431 = vmatprep.subr.mxu0 0.0
        %2432 = vmatpush1.msra.mxu0 0.0
        %2433 = vmatprep.subr.mxu0 0.0
        %2434 = vmatpush1.msra.mxu0 0.0
        %2435 = vmatprep.subr.mxu0 0.0
        %2436 = vmatpush1.msra.mxu0 0.0
        %2437 = vmatprep.subr.mxu0 0.0
        %2438 = vmatpush1.msra.mxu0 0.0
        %2439 = vmatprep.subr.mxu0 0.0
        %2440 = vmatpush1.msra.mxu0 0.0
        %2441 = vmatprep.mubr.f32.mxu0 0.0
        %2442 = vmatmul.mubr.f32.gmra.mrb[0].mxu0 %v2375
        %v2443 = vpop.f32.mrb[0].mxu0
        %v2444 = vadd.f32 0.0, %v2443
        %v2445 = vpop.f32.mrb[0].mxu0
        %v2446 = vadd.f32 0.0, %v2445
        %2447 = vdwg.mxu0
        %v2448 = vmax.f32 %v2369, %v2444
        %v2449 = vmax.f32 %v2371, %v2446
        %v2450 = vld [vmem:[%s11] sm:$0xff]
        %v2451 = vld [vmem:[%s11 + $0x8] sm:$0xff]
        %v2452 = vld [vmem:[%s11 + $0x10] sm:$0xff]
        %v2453 = vld [vmem:[%s11 + $0x18] sm:$0xff]
        %v2454 = vld [vmem:[%s11 + $0x20] sm:$0xff]
        %v2455 = vld [vmem:[%s11 + $0x28] sm:$0xff]
        %v2456 = vld [vmem:[%s11 + $0x30] sm:$0xff]
        %v2457 = vld [vmem:[%s11 + $0x38] sm:$0xff]
        %v2458 = vld [vmem:[%s11 + $0x40] sm:$0xff]
        %v2459 = vld [vmem:[%s11 + $0x48] sm:$0xff]
        %v2460 = vld [vmem:[%s11 + $0x50] sm:$0xff]
        %v2461 = vld [vmem:[%s11 + $0x58] sm:$0xff]
        %v2462 = vld [vmem:[%s11 + $0x60] sm:$0xff]
        %v2463 = vld [vmem:[%s11 + $0x68] sm:$0xff]
        %v2464 = vld [vmem:[%s11 + $0x70] sm:$0xff]
        %v2465 = vld [vmem:[%s11 + $0x78] sm:$0xff]
        %v2466 = vld [vmem:[%s11 + $0x80] sm:$0xff]
        %v2467 = vld [vmem:[%s11 + $0x88] sm:$0xff]
        %v2468 = vld [vmem:[%s11 + $0x90] sm:$0xff]
        %v2469 = vld [vmem:[%s11 + $0x98] sm:$0xff]
        %vm2470 = vcmask 261120
        %v2472 = vsel %vm2470, %v2449, 0
        %2474 = vmatprep.subr.mxu0 0.0
        %2475 = vmatpush1.msra.mxu0 %v2450
        %2476 = vmatprep.subr.mxu0 0.0
        %2477 = vmatpush1.msra.mxu0 %v2451
        %2478 = vmatprep.subr.mxu0 0.0
        %2479 = vmatpush1.msra.mxu0 %v2452
        %2480 = vmatprep.subr.mxu0 0.0
        %2481 = vmatpush1.msra.mxu0 %v2453
        %2482 = vmatprep.subr.mxu0 0.0
        %2483 = vmatpush1.msra.mxu0 %v2454
        %2484 = vmatprep.subr.mxu0 0.0
        %2485 = vmatpush1.msra.mxu0 %v2455
        %2486 = vmatprep.subr.mxu0 0.0
        %2487 = vmatpush1.msra.mxu0 %v2456
        %2488 = vmatprep.subr.mxu0 0.0
        %2489 = vmatpush1.msra.mxu0 %v2457
        %2490 = vmatprep.subr.mxu0 0.0
        %2491 = vmatpush1.msra.mxu0 %v2458
        %2492 = vmatprep.subr.mxu0 0.0
        %2493 = vmatpush1.msra.mxu0 %v2459
        %2494 = vmatprep.subr.mxu0 0.0
        %2495 = vmatpush1.msra.mxu0 %v2460
        %2496 = vmatprep.subr.mxu0 0.0
        %2497 = vmatpush1.msra.mxu0 %v2461
        %2498 = vmatprep.subr.mxu0 0.0
        %2499 = vmatpush1.msra.mxu0 %v2462
        %2500 = vmatprep.subr.mxu0 0.0
        %2501 = vmatpush1.msra.mxu0 %v2463
        %2502 = vmatprep.subr.mxu0 0.0
        %2503 = vmatpush1.msra.mxu0 %v2464
        %2504 = vmatprep.subr.mxu0 0.0
        %2505 = vmatpush1.msra.mxu0 %v2465
        %2506 = vmatprep.subr.mxu0 0.0
        %2507 = vmatpush1.msra.mxu0 %v2466
        %2508 = vmatprep.subr.mxu0 0.0
        %2509 = vmatpush1.msra.mxu0 %v2467
        %2510 = vmatprep.subr.mxu0 0.0
        %2511 = vmatpush1.msra.mxu0 %v2468
        %2512 = vmatprep.subr.mxu0 0.0
        %2513 = vmatpush1.msra.mxu0 %v2469
        %2514 = vmatprep.subr.mxu0 0.0
        %2515 = vmatpush1.msra.mxu0 0.0
        %2516 = vmatprep.subr.mxu0 0.0
        %2517 = vmatpush1.msra.mxu0 0.0
        %2518 = vmatprep.subr.mxu0 0.0
        %2519 = vmatpush1.msra.mxu0 0.0
        %2520 = vmatprep.subr.mxu0 0.0
        %2521 = vmatpush1.msra.mxu0 0.0
        %2522 = vmatprep.subr.mxu0 0.0
        %2523 = vmatpush1.msra.mxu0 0.0
        %2524 = vmatprep.subr.mxu0 0.0
        %2525 = vmatpush1.msra.mxu0 0.0
        %2526 = vmatprep.subr.mxu0 0.0
        %2527 = vmatpush1.msra.mxu0 0.0
        %2528 = vmatprep.subr.mxu0 0.0
        %2529 = vmatpush1.msra.mxu0 0.0
        %2530 = vmatprep.subr.mxu0 0.0
        %2531 = vmatpush1.msra.mxu0 0.0
        %2532 = vmatprep.subr.mxu0 0.0
        %2533 = vmatpush1.msra.mxu0 0.0
        %2534 = vmatprep.subr.mxu0 0.0
        %2535 = vmatpush1.msra.mxu0 0.0
        %2536 = vmatprep.subr.mxu0 0.0
        %2537 = vmatpush1.msra.mxu0 0.0
        %2538 = vmatprep.mubr.f32.mxu0 %v2472
        %2539 = vmatmul.mubr.f32.gmra.mrb[0].mxu0 %v2448
        %v2540 = vpop.f32.mrb[0].mxu0
        %v2541 = vadd.f32 0.0, %v2540
        %v2542 = vpop.f32.mrb[0].mxu0
        %2543 = vdwg.mxu0
        %v2544 = vld [vmem:[%s12] sm:$0xff]
        %v2545 = vld [vmem:[%s12 + $0x8] sm:$0xff]
        %v2546 = vld [vmem:[%s12 + $0x10] sm:$0xff]
        %v2547 = vld [vmem:[%s12 + $0x18] sm:$0xff]
        %v2548 = vld [vmem:[%s12 + $0x20] sm:$0xff]
        %v2549 = vld [vmem:[%s12 + $0x28] sm:$0xff]
        %v2550 = vld [vmem:[%s12 + $0x30] sm:$0xff]
        %v2551 = vld [vmem:[%s12 + $0x38] sm:$0xff]
        %v2552 = vld [vmem:[%s12 + $0x40] sm:$0xff]
        %v2553 = vld [vmem:[%s12 + $0x48] sm:$0xff]
        %v2554 = vld [vmem:[%s12 + $0x50] sm:$0xff]
        %v2555 = vld [vmem:[%s12 + $0x58] sm:$0xff]
        %v2556 = vld [vmem:[%s12 + $0x60] sm:$0xff]
        %v2557 = vld [vmem:[%s12 + $0x68] sm:$0xff]
        %v2558 = vld [vmem:[%s12 + $0x70] sm:$0xff]
        %v2559 = vld [vmem:[%s12 + $0x78] sm:$0xff]
        %v2560 = vld [vmem:[%s12 + $0x80] sm:$0xff]
        %v2561 = vld [vmem:[%s12 + $0x88] sm:$0xff]
        %v2562 = vld [vmem:[%s12 + $0x90] sm:$0xff]
        %v2563 = vld [vmem:[%s12 + $0x98] sm:$0xff]
        %2564 = vmatprep.subr.mxu0 0.0
        %2565 = vmatpush1.msra.mxu0 %v2544
        %2566 = vmatprep.subr.mxu0 0.0
        %2567 = vmatpush1.msra.mxu0 %v2545
        %2568 = vmatprep.subr.mxu0 0.0
        %2569 = vmatpush1.msra.mxu0 %v2546
        %2570 = vmatprep.subr.mxu0 0.0
        %2571 = vmatpush1.msra.mxu0 %v2547
        %2572 = vmatprep.subr.mxu0 0.0
        %2573 = vmatpush1.msra.mxu0 %v2548
        %2574 = vmatprep.subr.mxu0 0.0
        %2575 = vmatpush1.msra.mxu0 %v2549
        %2576 = vmatprep.subr.mxu0 0.0
        %2577 = vmatpush1.msra.mxu0 %v2550
        %2578 = vmatprep.subr.mxu0 0.0
        %2579 = vmatpush1.msra.mxu0 %v2551
        %2580 = vmatprep.subr.mxu0 0.0
        %2581 = vmatpush1.msra.mxu0 %v2552
        %2582 = vmatprep.subr.mxu0 0.0
        %2583 = vmatpush1.msra.mxu0 %v2553
        %2584 = vmatprep.subr.mxu0 0.0
        %2585 = vmatpush1.msra.mxu0 %v2554
        %2586 = vmatprep.subr.mxu0 0.0
        %2587 = vmatpush1.msra.mxu0 %v2555
        %2588 = vmatprep.subr.mxu0 0.0
        %2589 = vmatpush1.msra.mxu0 %v2556
        %2590 = vmatprep.subr.mxu0 0.0
        %2591 = vmatpush1.msra.mxu0 %v2557
        %2592 = vmatprep.subr.mxu0 0.0
        %2593 = vmatpush1.msra.mxu0 %v2558
        %2594 = vmatprep.subr.mxu0 0.0
        %2595 = vmatpush1.msra.mxu0 %v2559
        %2596 = vmatprep.subr.mxu0 0.0
        %2597 = vmatpush1.msra.mxu0 %v2560
        %2598 = vmatprep.subr.mxu0 0.0
        %2599 = vmatpush1.msra.mxu0 %v2561
        %2600 = vmatprep.subr.mxu0 0.0
        %2601 = vmatpush1.msra.mxu0 %v2562
        %2602 = vmatprep.subr.mxu0 0.0
        %2603 = vmatpush1.msra.mxu0 %v2563
        %2604 = vmatprep.subr.mxu0 0.0
        %2605 = vmatpush1.msra.mxu0 0.0
        %2606 = vmatprep.subr.mxu0 0.0
        %2607 = vmatpush1.msra.mxu0 0.0
        %2608 = vmatprep.subr.mxu0 0.0
        %2609 = vmatpush1.msra.mxu0 0.0
        %2610 = vmatprep.subr.mxu0 0.0
        %2611 = vmatpush1.msra.mxu0 0.0
        %2612 = vmatprep.subr.mxu0 0.0
        %2613 = vmatpush1.msra.mxu0 0.0
        %2614 = vmatprep.subr.mxu0 0.0
        %2615 = vmatpush1.msra.mxu0 0.0
        %2616 = vmatprep.subr.mxu0 0.0
        %2617 = vmatpush1.msra.mxu0 0.0
        %2618 = vmatprep.subr.mxu0 0.0
        %2619 = vmatpush1.msra.mxu0 0.0
        %2620 = vmatprep.subr.mxu0 0.0
        %2621 = vmatpush1.msra.mxu0 0.0
        %2622 = vmatprep.subr.mxu0 0.0
        %2623 = vmatpush1.msra.mxu0 0.0
        %2624 = vmatprep.subr.mxu0 0.0
        %2625 = vmatpush1.msra.mxu0 0.0
        %2626 = vmatprep.subr.mxu0 0.0
        %2627 = vmatpush1.msra.mxu0 0.0
        %2628 = vmatprep.mubr.f32.mxu0 %v2472
        %2629 = vmatmul.mubr.f32.gmra.mrb[0].mxu0 %v2448
        %v2630 = vpop.f32.mrb[0].mxu0
        %v2631 = vadd.f32 0.0, %v2630
        %v2632 = vpop.f32.mrb[0].mxu0
        %2633 = vdwg.mxu0
        %v2634 = vmax.f32 %v2541, %v2631
        %vm2635 = vcmask 651264
        %2636 = vst.msk [vmem:[#allocation3] sm:$0x1f] %vm2635, %v2634
        %v2637 = vld [vmem:[#allocation3] sm:$0x1]
        %v2638 = vld [vmem:[%s13] sm:$0xff]
        %v2639 = vld [vmem:[%s13 + $0x8] sm:$0xff]
        %v2640 = vld [vmem:[%s13 + $0x10] sm:$0xff]
        %v2641 = vld [vmem:[%s13 + $0x18] sm:$0xff]
        %v2642 = vld [vmem:[%s13 + $0x20] sm:$0xff]
        %v2643 = vld [vmem:[%s13 + $0x28] sm:$0xff]
        %v2644 = vld [vmem:[%s13 + $0x30] sm:$0xff]
        %v2645 = vld [vmem:[%s13 + $0x38] sm:$0xff]
        %v2646 = vld [vmem:[%s13 + $0x40] sm:$0xff]
        %v2647 = vld [vmem:[%s13 + $0x48] sm:$0xff]
        %v2648 = vld [vmem:[#allocation3 + $0x1] sm:$0x1]
        %s2649 = scalar_lea.vmem %s13, 80
        %v2650 = vld [vmem:[%s2649] sm:$0xff]
        %v2651 = vld [vmem:[%s2649 + $0x8] sm:$0xff]
        %v2652 = vld [vmem:[%s2649 + $0x10] sm:$0xff]
        %v2653 = vld [vmem:[%s2649 + $0x18] sm:$0xff]
        %v2654 = vld [vmem:[%s2649 + $0x20] sm:$0xff]
        %v2655 = vld [vmem:[%s2649 + $0x28] sm:$0xff]
        %v2656 = vld [vmem:[%s2649 + $0x30] sm:$0xff]
        %v2657 = vld [vmem:[%s2649 + $0x38] sm:$0xff]
        %v2658 = vld [vmem:[%s2649 + $0x40] sm:$0xff]
        %v2659 = vld [vmem:[%s2649 + $0x48] sm:$0xff]
        %vm2660 = vcmask 654336
        %v2662 = vsel %vm2660, %v2648, 0
        %2664 = vmatprep.subr.mxu0 0.0
        %2665 = vmatpush1.msra.mxu0 %v2650
        %2666 = vmatprep.subr.mxu0 0.0
        %2667 = vmatpush1.msra.mxu0 %v2651
        %2668 = vmatprep.subr.mxu0 0.0
        %2669 = vmatpush1.msra.mxu0 %v2652
        %2670 = vmatprep.subr.mxu0 0.0
        %2671 = vmatpush1.msra.mxu0 %v2653
        %2672 = vmatprep.subr.mxu0 0.0
        %2673 = vmatpush1.msra.mxu0 %v2654
        %2674 = vmatprep.subr.mxu0 0.0
        %2675 = vmatpush1.msra.mxu0 %v2655
        %2676 = vmatprep.subr.mxu0 0.0
        %2677 = vmatpush1.msra.mxu0 %v2656
        %2678 = vmatprep.subr.mxu0 0.0
        %2679 = vmatpush1.msra.mxu0 %v2657
        %2680 = vmatprep.subr.mxu0 0.0
        %2681 = vmatpush1.msra.mxu0 %v2658
        %2682 = vmatprep.subr.mxu0 0.0
        %2683 = vmatpush1.msra.mxu0 %v2659
        %2684 = vmatprep.subr.mxu0 0.0
        %2685 = vmatpush1.msra.mxu0 0.0
        %2686 = vmatprep.subr.mxu0 0.0
        %2687 = vmatpush1.msra.mxu0 0.0
        %2688 = vmatprep.subr.mxu0 0.0
        %2689 = vmatpush1.msra.mxu0 0.0
        %2690 = vmatprep.subr.mxu0 0.0
        %2691 = vmatpush1.msra.mxu0 0.0
        %2692 = vmatprep.subr.mxu0 0.0
        %2693 = vmatpush1.msra.mxu0 0.0
        %2694 = vmatprep.subr.mxu0 0.0
        %2695 = vmatpush1.msra.mxu0 0.0
        %2696 = vmatprep.subr.mxu0 0.0
        %2697 = vmatpush1.msra.mxu0 0.0
        %2698 = vmatprep.subr.mxu0 0.0
        %2699 = vmatpush1.msra.mxu0 0.0
        %2700 = vmatprep.subr.mxu0 0.0
        %2701 = vmatpush1.msra.mxu0 0.0
        %2702 = vmatprep.subr.mxu0 0.0
        %2703 = vmatpush1.msra.mxu0 0.0
        %2704 = vmatprep.subr.mxu0 0.0
        %2705 = vmatpush1.msra.mxu0 0.0
        %2706 = vmatprep.subr.mxu0 0.0
        %2707 = vmatpush1.msra.mxu0 0.0
        %2708 = vmatprep.subr.mxu0 0.0
        %2709 = vmatpush1.msra.mxu0 0.0
        %2710 = vmatprep.subr.mxu0 0.0
        %2711 = vmatpush1.msra.mxu0 0.0
        %2712 = vmatprep.subr.mxu0 0.0
        %2713 = vmatpush1.msra.mxu0 0.0
        %2714 = vmatprep.subr.mxu0 0.0
        %2715 = vmatpush1.msra.mxu0 0.0
        %2716 = vmatprep.subr.mxu0 0.0
        %2717 = vmatpush1.msra.mxu0 0.0
        %2718 = vmatprep.subr.mxu0 0.0
        %2719 = vmatpush1.msra.mxu0 0.0
        %2720 = vmatprep.subr.mxu0 0.0
        %2721 = vmatpush1.msra.mxu0 0.0
        %2722 = vmatprep.subr.mxu0 0.0
        %2723 = vmatpush1.msra.mxu0 0.0
        %2724 = vmatprep.subr.mxu0 0.0
        %2725 = vmatpush1.msra.mxu0 0.0
        %2726 = vmatprep.subr.mxu0 0.0
        %2727 = vmatpush1.msra.mxu0 0.0
        %2728 = vmatprep.mubr.f32.mxu0 0.0
        %2729 = vmatmul.mubr.f32.gmra.mrb[0].mxu0 %v2662
        %v2730 = vpop.f32.mrb[0].mxu0
        %v2731 = vadd.f32 0.0, %v2730
        %v2732 = vpop.f32.mrb[0].mxu0
        %2733 = vdwg.mxu0
        %v2735 = vsel %vm2660, %v2637, 0
        %2737 = vmatprep.subr.mxu0 0.0
        %2738 = vmatpush1.msra.mxu0 %v2638
        %2739 = vmatprep.subr.mxu0 0.0
        %2740 = vmatpush1.msra.mxu0 %v2639
        %2741 = vmatprep.subr.mxu0 0.0
        %2742 = vmatpush1.msra.mxu0 %v2640
        %2743 = vmatprep.subr.mxu0 0.0
        %2744 = vmatpush1.msra.mxu0 %v2641
        %2745 = vmatprep.subr.mxu0 0.0
        %2746 = vmatpush1.msra.mxu0 %v2642
        %2747 = vmatprep.subr.mxu0 0.0
        %2748 = vmatpush1.msra.mxu0 %v2643
        %2749 = vmatprep.subr.mxu0 0.0
        %2750 = vmatpush1.msra.mxu0 %v2644
        %2751 = vmatprep.subr.mxu0 0.0
        %2752 = vmatpush1.msra.mxu0 %v2645
        %2753 = vmatprep.subr.mxu0 0.0
        %2754 = vmatpush1.msra.mxu0 %v2646
        %2755 = vmatprep.subr.mxu0 0.0
        %2756 = vmatpush1.msra.mxu0 %v2647
        %2757 = vmatprep.subr.mxu0 0.0
        %2758 = vmatpush1.msra.mxu0 0.0
        %2759 = vmatprep.subr.mxu0 0.0
        %2760 = vmatpush1.msra.mxu0 0.0
        %2761 = vmatprep.subr.mxu0 0.0
        %2762 = vmatpush1.msra.mxu0 0.0
        %2763 = vmatprep.subr.mxu0 0.0
        %2764 = vmatpush1.msra.mxu0 0.0
        %2765 = vmatprep.subr.mxu0 0.0
        %2766 = vmatpush1.msra.mxu0 0.0
        %2767 = vmatprep.subr.mxu0 0.0
        %2768 = vmatpush1.msra.mxu0 0.0
        %2769 = vmatprep.subr.mxu0 0.0
        %2770 = vmatpush1.msra.mxu0 0.0
        %2771 = vmatprep.subr.mxu0 0.0
        %2772 = vmatpush1.msra.mxu0 0.0
        %2773 = vmatprep.subr.mxu0 0.0
        %2774 = vmatpush1.msra.mxu0 0.0
        %2775 = vmatprep.subr.mxu0 0.0
        %2776 = vmatpush1.msra.mxu0 0.0
        %2777 = vmatprep.subr.mxu0 0.0
        %2778 = vmatpush1.msra.mxu0 0.0
        %2779 = vmatprep.subr.mxu0 0.0
        %2780 = vmatpush1.msra.mxu0 0.0
        %2781 = vmatprep.subr.mxu0 0.0
        %2782 = vmatpush1.msra.mxu0 0.0
        %2783 = vmatprep.subr.mxu0 0.0
        %2784 = vmatpush1.msra.mxu0 0.0
        %2785 = vmatprep.subr.mxu0 0.0
        %2786 = vmatpush1.msra.mxu0 0.0
        %2787 = vmatprep.subr.mxu0 0.0
        %2788 = vmatpush1.msra.mxu0 0.0
        %2789 = vmatprep.subr.mxu0 0.0
        %2790 = vmatpush1.msra.mxu0 0.0
        %2791 = vmatprep.subr.mxu0 0.0
        %2792 = vmatpush1.msra.mxu0 0.0
        %2793 = vmatprep.subr.mxu0 0.0
        %2794 = vmatpush1.msra.mxu0 0.0
        %2795 = vmatprep.subr.mxu0 0.0
        %2796 = vmatpush1.msra.mxu0 0.0
        %2797 = vmatprep.subr.mxu0 0.0
        %2798 = vmatpush1.msra.mxu0 0.0
        %2799 = vmatprep.subr.mxu0 0.0
        %2800 = vmatpush1.msra.mxu0 0.0
        %2801 = vmatprep.mubr.f32.mxu0 0.0
        %2802 = vmatmul.mubr.f32.gmra.mrb[0].mxu0 %v2735
        %v2803 = vpop.f32.mrb[0].mxu0
        %v2804 = vadd.f32 %v2731, %v2803
        %v2805 = vpop.f32.mrb[0].mxu0
        %2806 = vdwg.mxu0
        %v2807 = vld [vmem:[#allocation3 + $0x2] sm:$0x1]
        %s2808 = scalar_lea.vmem %s13, 160
        %v2809 = vld [vmem:[%s2808] sm:$0xff]
        %v2810 = vld [vmem:[%s2808 + $0x8] sm:$0xff]
        %v2811 = vld [vmem:[%s2808 + $0x10] sm:$0xff]
        %v2812 = vld [vmem:[%s2808 + $0x18] sm:$0xff]
        %v2813 = vld [vmem:[%s2808 + $0x20] sm:$0xff]
        %v2814 = vld [vmem:[%s2808 + $0x28] sm:$0xff]
        %v2815 = vld [vmem:[%s2808 + $0x30] sm:$0xff]
        %v2816 = vld [vmem:[%s2808 + $0x38] sm:$0xff]
        %v2817 = vld [vmem:[%s2808 + $0x40] sm:$0xff]
        %v2818 = vld [vmem:[%s2808 + $0x48] sm:$0xff]
        %v2820 = vsel %vm2660, %v2807, 0
        %2822 = vmatprep.subr.mxu0 0.0
        %2823 = vmatpush1.msra.mxu0 %v2809
        %2824 = vmatprep.subr.mxu0 0.0
        %2825 = vmatpush1.msra.mxu0 %v2810
        %2826 = vmatprep.subr.mxu0 0.0
        %2827 = vmatpush1.msra.mxu0 %v2811
        %2828 = vmatprep.subr.mxu0 0.0
        %2829 = vmatpush1.msra.mxu0 %v2812
        %2830 = vmatprep.subr.mxu0 0.0
        %2831 = vmatpush1.msra.mxu0 %v2813
        %2832 = vmatprep.subr.mxu0 0.0
        %2833 = vmatpush1.msra.mxu0 %v2814
        %2834 = vmatprep.subr.mxu0 0.0
        %2835 = vmatpush1.msra.mxu0 %v2815
        %2836 = vmatprep.subr.mxu0 0.0
        %2837 = vmatpush1.msra.mxu0 %v2816
        %2838 = vmatprep.subr.mxu0 0.0
        %2839 = vmatpush1.msra.mxu0 %v2817
        %2840 = vmatprep.subr.mxu0 0.0
        %2841 = vmatpush1.msra.mxu0 %v2818
        %2842 = vmatprep.subr.mxu0 0.0
        %2843 = vmatpush1.msra.mxu0 0.0
        %2844 = vmatprep.subr.mxu0 0.0
        %2845 = vmatpush1.msra.mxu0 0.0
        %2846 = vmatprep.subr.mxu0 0.0
        %2847 = vmatpush1.msra.mxu0 0.0
        %2848 = vmatprep.subr.mxu0 0.0
        %2849 = vmatpush1.msra.mxu0 0.0
        %2850 = vmatprep.subr.mxu0 0.0
        %2851 = vmatpush1.msra.mxu0 0.0
        %2852 = vmatprep.subr.mxu0 0.0
        %2853 = vmatpush1.msra.mxu0 0.0
        %2854 = vmatprep.subr.mxu0 0.0
        %2855 = vmatpush1.msra.mxu0 0.0
        %2856 = vmatprep.subr.mxu0 0.0
        %2857 = vmatpush1.msra.mxu0 0.0
        %2858 = vmatprep.subr.mxu0 0.0
        %2859 = vmatpush1.msra.mxu0 0.0
        %2860 = vmatprep.subr.mxu0 0.0
        %2861 = vmatpush1.msra.mxu0 0.0
        %2862 = vmatprep.subr.mxu0 0.0
        %2863 = vmatpush1.msra.mxu0 0.0
        %2864 = vmatprep.subr.mxu0 0.0
        %2865 = vmatpush1.msra.mxu0 0.0
        %2866 = vmatprep.subr.mxu0 0.0
        %2867 = vmatpush1.msra.mxu0 0.0
        %2868 = vmatprep.subr.mxu0 0.0
        %2869 = vmatpush1.msra.mxu0 0.0
        %2870 = vmatprep.subr.mxu0 0.0
        %2871 = vmatpush1.msra.mxu0 0.0
        %2872 = vmatprep.subr.mxu0 0.0
        %2873 = vmatpush1.msra.mxu0 0.0
        %2874 = vmatprep.subr.mxu0 0.0
        %2875 = vmatpush1.msra.mxu0 0.0
        %2876 = vmatprep.subr.mxu0 0.0
        %2877 = vmatpush1.msra.mxu0 0.0
        %2878 = vmatprep.subr.mxu0 0.0
        %2879 = vmatpush1.msra.mxu0 0.0
        %2880 = vmatprep.subr.mxu0 0.0
        %2881 = vmatpush1.msra.mxu0 0.0
        %2882 = vmatprep.subr.mxu0 0.0
        %2883 = vmatpush1.msra.mxu0 0.0
        %2884 = vmatprep.subr.mxu0 0.0
        %2885 = vmatpush1.msra.mxu0 0.0
        %2886 = vmatprep.mubr.f32.mxu0 0.0
        %2887 = vmatmul.mubr.f32.gmra.mrb[0].mxu0 %v2820
        %v2888 = vpop.f32.mrb[0].mxu0
        %v2889 = vadd.f32 0.0, %v2888
        %v2890 = vpop.f32.mrb[0].mxu0
        %2891 = vdwg.mxu0
        %v2892 = vadd.f32 %v2804, %v2889
        %v2893 = vld [vmem:[#allocation3 + $0x3] sm:$0x1]
        %s2894 = scalar_lea.vmem %s13, 240
        %v2895 = vld [vmem:[%s2894] sm:$0xff]
        %v2896 = vld [vmem:[%s2894 + $0x8] sm:$0xff]
        %v2897 = vld [vmem:[%s2894 + $0x10] sm:$0xff]
        %v2898 = vld [vmem:[%s2894 + $0x18] sm:$0xff]
        %v2899 = vld [vmem:[%s2894 + $0x20] sm:$0xff]
        %v2900 = vld [vmem:[%s2894 + $0x28] sm:$0xff]
        %v2901 = vld [vmem:[%s2894 + $0x30] sm:$0xff]
        %v2902 = vld [vmem:[%s2894 + $0x38] sm:$0xff]
        %v2903 = vld [vmem:[%s2894 + $0x40] sm:$0xff]
        %v2904 = vld [vmem:[%s2894 + $0x48] sm:$0xff]
        %v2906 = vsel %vm2660, %v2893, 0
        %2908 = vmatprep.subr.mxu0 0.0
        %2909 = vmatpush1.msra.mxu0 %v2895
        %2910 = vmatprep.subr.mxu0 0.0
        %2911 = vmatpush1.msra.mxu0 %v2896
        %2912 = vmatprep.subr.mxu0 0.0
        %2913 = vmatpush1.msra.mxu0 %v2897
        %2914 = vmatprep.subr.mxu0 0.0
        %2915 = vmatpush1.msra.mxu0 %v2898
        %2916 = vmatprep.subr.mxu0 0.0
        %2917 = vmatpush1.msra.mxu0 %v2899
        %2918 = vmatprep.subr.mxu0 0.0
        %2919 = vmatpush1.msra.mxu0 %v2900
        %2920 = vmatprep.subr.mxu0 0.0
        %2921 = vmatpush1.msra.mxu0 %v2901
        %2922 = vmatprep.subr.mxu0 0.0
        %2923 = vmatpush1.msra.mxu0 %v2902
        %2924 = vmatprep.subr.mxu0 0.0
        %2925 = vmatpush1.msra.mxu0 %v2903
        %2926 = vmatprep.subr.mxu0 0.0
        %2927 = vmatpush1.msra.mxu0 %v2904
        %2928 = vmatprep.subr.mxu0 0.0
        %2929 = vmatpush1.msra.mxu0 0.0
        %2930 = vmatprep.subr.mxu0 0.0
        %2931 = vmatpush1.msra.mxu0 0.0
        %2932 = vmatprep.subr.mxu0 0.0
        %2933 = vmatpush1.msra.mxu0 0.0
        %2934 = vmatprep.subr.mxu0 0.0
        %2935 = vmatpush1.msra.mxu0 0.0
        %2936 = vmatprep.subr.mxu0 0.0
        %2937 = vmatpush1.msra.mxu0 0.0
        %2938 = vmatprep.subr.mxu0 0.0
        %2939 = vmatpush1.msra.mxu0 0.0
        %2940 = vmatprep.subr.mxu0 0.0
        %2941 = vmatpush1.msra.mxu0 0.0
        %2942 = vmatprep.subr.mxu0 0.0
        %2943 = vmatpush1.msra.mxu0 0.0
        %2944 = vmatprep.subr.mxu0 0.0
        %2945 = vmatpush1.msra.mxu0 0.0
        %2946 = vmatprep.subr.mxu0 0.0
        %2947 = vmatpush1.msra.mxu0 0.0
        %2948 = vmatprep.subr.mxu0 0.0
        %2949 = vmatpush1.msra.mxu0 0.0
        %2950 = vmatprep.subr.mxu0 0.0
        %2951 = vmatpush1.msra.mxu0 0.0
        %2952 = vmatprep.subr.mxu0 0.0
        %2953 = vmatpush1.msra.mxu0 0.0
        %2954 = vmatprep.subr.mxu0 0.0
        %2955 = vmatpush1.msra.mxu0 0.0
        %2956 = vmatprep.subr.mxu0 0.0
        %2957 = vmatpush1.msra.mxu0 0.0
        %2958 = vmatprep.subr.mxu0 0.0
        %2959 = vmatpush1.msra.mxu0 0.0
        %2960 = vmatprep.subr.mxu0 0.0
        %2961 = vmatpush1.msra.mxu0 0.0
        %2962 = vmatprep.subr.mxu0 0.0
        %2963 = vmatpush1.msra.mxu0 0.0
        %2964 = vmatprep.subr.mxu0 0.0
        %2965 = vmatpush1.msra.mxu0 0.0
        %2966 = vmatprep.subr.mxu0 0.0
        %2967 = vmatpush1.msra.mxu0 0.0
        %2968 = vmatprep.subr.mxu0 0.0
        %2969 = vmatpush1.msra.mxu0 0.0
        %2970 = vmatprep.subr.mxu0 0.0
        %2971 = vmatpush1.msra.mxu0 0.0
        %2972 = vmatprep.mubr.f32.mxu0 0.0
        %2973 = vmatmul.mubr.f32.gmra.mrb[0].mxu0 %v2906
        %v2974 = vpop.f32.mrb[0].mxu0
        %v2975 = vadd.f32 0.0, %v2974
        %v2976 = vpop.f32.mrb[0].mxu0
        %2977 = vdwg.mxu0
        %v2978 = vadd.f32 %v2892, %v2975
        %v2979 = vld [vmem:[#allocation3 + $0x4] sm:$0x1]
        %s2980 = scalar_lea.vmem %s13, 320
        %v2981 = vld [vmem:[%s2980] sm:$0xff]
        %v2982 = vld [vmem:[%s2980 + $0x8] sm:$0xff]
        %v2983 = vld [vmem:[%s2980 + $0x10] sm:$0xff]
        %v2984 = vld [vmem:[%s2980 + $0x18] sm:$0xff]
        %v2985 = vld [vmem:[%s2980 + $0x20] sm:$0xff]
        %v2986 = vld [vmem:[%s2980 + $0x28] sm:$0xff]
        %v2987 = vld [vmem:[%s2980 + $0x30] sm:$0xff]
        %v2988 = vld [vmem:[%s2980 + $0x38] sm:$0xff]
        %v2989 = vld [vmem:[%s2980 + $0x40] sm:$0xff]
        %v2990 = vld [vmem:[%s2980 + $0x48] sm:$0xff]
        %v2992 = vsel %vm2660, %v2979, 0
        %2994 = vmatprep.subr.mxu0 0.0
        %2995 = vmatpush1.msra.mxu0 %v2981
        %2996 = vmatprep.subr.mxu0 0.0
        %2997 = vmatpush1.msra.mxu0 %v2982
        %2998 = vmatprep.subr.mxu0 0.0
        %2999 = vmatpush1.msra.mxu0 %v2983
        %3000 = vmatprep.subr.mxu0 0.0
        %3001 = vmatpush1.msra.mxu0 %v2984
        %3002 = vmatprep.subr.mxu0 0.0
        %3003 = vmatpush1.msra.mxu0 %v2985
        %3004 = vmatprep.subr.mxu0 0.0
        %3005 = vmatpush1.msra.mxu0 %v2986
        %3006 = vmatprep.subr.mxu0 0.0
        %3007 = vmatpush1.msra.mxu0 %v2987
        %3008 = vmatprep.subr.mxu0 0.0
        %3009 = vmatpush1.msra.mxu0 %v2988
        %3010 = vmatprep.subr.mxu0 0.0
        %3011 = vmatpush1.msra.mxu0 %v2989
        %3012 = vmatprep.subr.mxu0 0.0
        %3013 = vmatpush1.msra.mxu0 %v2990
        %3014 = vmatprep.subr.mxu0 0.0
        %3015 = vmatpush1.msra.mxu0 0.0
        %3016 = vmatprep.subr.mxu0 0.0
        %3017 = vmatpush1.msra.mxu0 0.0
        %3018 = vmatprep.subr.mxu0 0.0
        %3019 = vmatpush1.msra.mxu0 0.0
        %3020 = vmatprep.subr.mxu0 0.0
        %3021 = vmatpush1.msra.mxu0 0.0
        %3022 = vmatprep.subr.mxu0 0.0
        %3023 = vmatpush1.msra.mxu0 0.0
        %3024 = vmatprep.subr.mxu0 0.0
        %3025 = vmatpush1.msra.mxu0 0.0
        %3026 = vmatprep.subr.mxu0 0.0
        %3027 = vmatpush1.msra.mxu0 0.0
        %3028 = vmatprep.subr.mxu0 0.0
        %3029 = vmatpush1.msra.mxu0 0.0
        %3030 = vmatprep.subr.mxu0 0.0
        %3031 = vmatpush1.msra.mxu0 0.0
        %3032 = vmatprep.subr.mxu0 0.0
        %3033 = vmatpush1.msra.mxu0 0.0
        %3034 = vmatprep.subr.mxu0 0.0
        %3035 = vmatpush1.msra.mxu0 0.0
        %3036 = vmatprep.subr.mxu0 0.0
        %3037 = vmatpush1.msra.mxu0 0.0
        %3038 = vmatprep.subr.mxu0 0.0
        %3039 = vmatpush1.msra.mxu0 0.0
        %3040 = vmatprep.subr.mxu0 0.0
        %3041 = vmatpush1.msra.mxu0 0.0
        %3042 = vmatprep.subr.mxu0 0.0
        %3043 = vmatpush1.msra.mxu0 0.0
        %3044 = vmatprep.subr.mxu0 0.0
        %3045 = vmatpush1.msra.mxu0 0.0
        %3046 = vmatprep.subr.mxu0 0.0
        %3047 = vmatpush1.msra.mxu0 0.0
        %3048 = vmatprep.subr.mxu0 0.0
        %3049 = vmatpush1.msra.mxu0 0.0
        %3050 = vmatprep.subr.mxu0 0.0
        %3051 = vmatpush1.msra.mxu0 0.0
        %3052 = vmatprep.subr.mxu0 0.0
        %3053 = vmatpush1.msra.mxu0 0.0
        %3054 = vmatprep.subr.mxu0 0.0
        %3055 = vmatpush1.msra.mxu0 0.0
        %3056 = vmatprep.subr.mxu0 0.0
        %3057 = vmatpush1.msra.mxu0 0.0
        %3058 = vmatprep.mubr.f32.mxu0 0.0
        %3059 = vmatmul.mubr.f32.gmra.mrb[0].mxu0 %v2992
        %v3060 = vpop.f32.mrb[0].mxu0
        %v3061 = vadd.f32 0.0, %v3060
        %v3062 = vpop.f32.mrb[0].mxu0
        %3063 = vdwg.mxu0
        %v3064 = vadd.f32 %v2978, %v3061
        %v3065 = vld [vmem:[%s14] sm:$0x1]
        %v3066 = vadd.f32 %v3064, %v3065
        %v3067 = vmax.f32 %v3066, 0.0
        %v3068 = vld [vmem:[%s15] sm:$0xff]
        %v3069 = vld [vmem:[%s15 + $0x8] sm:$0xff]
        %v3070 = vld [vmem:[%s15 + $0x10] sm:$0xff]
        %v3071 = vld [vmem:[%s15 + $0x18] sm:$0xff]
        %v3072 = vld [vmem:[%s15 + $0x20] sm:$0xff]
        %v3073 = vld [vmem:[%s15 + $0x28] sm:$0xff]
        %v3074 = vld [vmem:[%s15 + $0x30] sm:$0xff]
        %v3075 = vld [vmem:[%s15 + $0x38] sm:$0xff]
        %v3076 = vld [vmem:[%s15 + $0x40] sm:$0xff]
        %v3077 = vld [vmem:[%s15 + $0x48] sm:$0xff]
        %v3078 = vld [vmem:[%s15 + $0x50] sm:$0xff]
        %v3079 = vld [vmem:[%s15 + $0x58] sm:$0xff]
        %v3080 = vld [vmem:[%s15 + $0x60] sm:$0xff]
        %v3081 = vld [vmem:[%s15 + $0x68] sm:$0xff]
        %v3082 = vld [vmem:[%s15 + $0x70] sm:$0xff]
        %v3083 = vld [vmem:[%s16] sm:$0x1]
        %vm3084 = vcmask 982016
        %v3086 = vsel %vm3084, %v3067, 0
        %3088 = vmatprep.subr.mxu0 0.0
        %3089 = vmatpush1.msra.mxu0 %v3068
        %3090 = vmatprep.subr.mxu0 0.0
        %3091 = vmatpush1.msra.mxu0 %v3069
        %3092 = vmatprep.subr.mxu0 0.0
        %3093 = vmatpush1.msra.mxu0 %v3070
        %3094 = vmatprep.subr.mxu0 0.0
        %3095 = vmatpush1.msra.mxu0 %v3071
        %3096 = vmatprep.subr.mxu0 0.0
        %3097 = vmatpush1.msra.mxu0 %v3072
        %3098 = vmatprep.subr.mxu0 0.0
        %3099 = vmatpush1.msra.mxu0 %v3073
        %3100 = vmatprep.subr.mxu0 0.0
        %3101 = vmatpush1.msra.mxu0 %v3074
        %3102 = vmatprep.subr.mxu0 0.0
        %3103 = vmatpush1.msra.mxu0 %v3075
        %3104 = vmatprep.subr.mxu0 0.0
        %3105 = vmatpush1.msra.mxu0 %v3076
        %3106 = vmatprep.subr.mxu0 0.0
        %3107 = vmatpush1.msra.mxu0 %v3077
        %3108 = vmatprep.subr.mxu0 0.0
        %3109 = vmatpush1.msra.mxu0 %v3078
        %3110 = vmatprep.subr.mxu0 0.0
        %3111 = vmatpush1.msra.mxu0 %v3079
        %3112 = vmatprep.subr.mxu0 0.0
        %3113 = vmatpush1.msra.mxu0 %v3080
        %3114 = vmatprep.subr.mxu0 0.0
        %3115 = vmatpush1.msra.mxu0 %v3081
        %3116 = vmatprep.subr.mxu0 0.0
        %3117 = vmatpush1.msra.mxu0 %v3082
        %3118 = vmatprep.subr.mxu0 0.0
        %3119 = vmatpush1.msra.mxu0 0.0
        %3120 = vmatprep.subr.mxu0 0.0
        %3121 = vmatpush1.msra.mxu0 0.0
        %3122 = vmatprep.subr.mxu0 0.0
        %3123 = vmatpush1.msra.mxu0 0.0
        %3124 = vmatprep.subr.mxu0 0.0
        %3125 = vmatpush1.msra.mxu0 0.0
        %3126 = vmatprep.subr.mxu0 0.0
        %3127 = vmatpush1.msra.mxu0 0.0
        %3128 = vmatprep.subr.mxu0 0.0
        %3129 = vmatpush1.msra.mxu0 0.0
        %3130 = vmatprep.subr.mxu0 0.0
        %3131 = vmatpush1.msra.mxu0 0.0
        %3132 = vmatprep.subr.mxu0 0.0
        %3133 = vmatpush1.msra.mxu0 0.0
        %3134 = vmatprep.subr.mxu0 0.0
        %3135 = vmatpush1.msra.mxu0 0.0
        %3136 = vmatprep.subr.mxu0 0.0
        %3137 = vmatpush1.msra.mxu0 0.0
        %3138 = vmatprep.subr.mxu0 0.0
        %3139 = vmatpush1.msra.mxu0 0.0
        %3140 = vmatprep.subr.mxu0 0.0
        %3141 = vmatpush1.msra.mxu0 0.0
        %3142 = vmatprep.subr.mxu0 0.0
        %3143 = vmatpush1.msra.mxu0 0.0
        %3144 = vmatprep.subr.mxu0 0.0
        %3145 = vmatpush1.msra.mxu0 0.0
        %3146 = vmatprep.subr.mxu0 0.0
        %3147 = vmatpush1.msra.mxu0 0.0
        %3148 = vmatprep.subr.mxu0 0.0
        %3149 = vmatpush1.msra.mxu0 0.0
        %3150 = vmatprep.subr.mxu0 0.0
        %3151 = vmatpush1.msra.mxu0 0.0
        %3152 = vmatprep.mubr.f32.mxu0 0.0
        %3153 = vmatmul.mubr.f32.gmra.mrb[0].mxu0 %v3086
        %v3154 = vpop.f32.mrb[0].mxu0
        %v3155 = vadd.f32 %v3083, %v3154
        %v3156 = vpop.f32.mrb[0].mxu0
        %3157 = vdwg.mxu0
        %v3158 = vmax.f32 %v3155, 0.0
        %v3159 = vld [vmem:[%s17] sm:$0xff]
        %v3160 = vld [vmem:[%s17 + $0x8] sm:$0xff]
        %v3161 = vld [vmem:[%s17 + $0x10] sm:$0xff]
        %v3162 = vld [vmem:[%s17 + $0x18] sm:$0xff]
        %v3163 = vld [vmem:[%s17 + $0x20] sm:$0xff]
        %v3164 = vld [vmem:[%s17 + $0x28] sm:$0xff]
        %v3165 = vld [vmem:[%s17 + $0x30] sm:$0xff]
        %v3166 = vld [vmem:[%s17 + $0x38] sm:$0xff]
        %v3167 = vld [vmem:[%s17 + $0x40] sm:$0xff]
        %v3168 = vld [vmem:[%s17 + $0x48] sm:$0xff]
        %v3169 = vld [vmem:[%s17 + $0x50] sm:$0xf]
        %v3170 = vld [vmem:[%s18] sm:$0x1]
        %v3172 = vsel %vm1685, %v3158, 0
        %v3175 = vsel %vm1311, %v3169, 0
        %3177 = vmatprep.subr.mxu0 0.0
        %3178 = vmatpush1.msra.mxu0 %v3159
        %3179 = vmatprep.subr.mxu0 0.0
        %3180 = vmatpush1.msra.mxu0 %v3160
        %3181 = vmatprep.subr.mxu0 0.0
        %3182 = vmatpush1.msra.mxu0 %v3161
        %3183 = vmatprep.subr.mxu0 0.0
        %3184 = vmatpush1.msra.mxu0 %v3162
        %3185 = vmatprep.subr.mxu0 0.0
        %3186 = vmatpush1.msra.mxu0 %v3163
        %3187 = vmatprep.subr.mxu0 0.0
        %3188 = vmatpush1.msra.mxu0 %v3164
        %3189 = vmatprep.subr.mxu0 0.0
        %3190 = vmatpush1.msra.mxu0 %v3165
        %3191 = vmatprep.subr.mxu0 0.0
        %3192 = vmatpush1.msra.mxu0 %v3166
        %3193 = vmatprep.subr.mxu0 0.0
        %3194 = vmatpush1.msra.mxu0 %v3167
        %3195 = vmatprep.subr.mxu0 0.0
        %3196 = vmatpush1.msra.mxu0 %v3168
        %3197 = vmatprep.subr.mxu0 0.0
        %3198 = vmatpush1.msra.mxu0 %v3175
        %3199 = vmatprep.subr.mxu0 0.0
        %3200 = vmatpush1.msra.mxu0 0.0
        %3201 = vmatprep.subr.mxu0 0.0
        %3202 = vmatpush1.msra.mxu0 0.0
        %3203 = vmatprep.subr.mxu0 0.0
        %3204 = vmatpush1.msra.mxu0 0.0
        %3205 = vmatprep.subr.mxu0 0.0
        %3206 = vmatpush1.msra.mxu0 0.0
        %3207 = vmatprep.subr.mxu0 0.0
        %3208 = vmatpush1.msra.mxu0 0.0
        %3209 = vmatprep.subr.mxu0 0.0
        %3210 = vmatpush1.msra.mxu0 0.0
        %3211 = vmatprep.subr.mxu0 0.0
        %3212 = vmatpush1.msra.mxu0 0.0
        %3213 = vmatprep.subr.mxu0 0.0
        %3214 = vmatpush1.msra.mxu0 0.0
        %3215 = vmatprep.subr.mxu0 0.0
        %3216 = vmatpush1.msra.mxu0 0.0
        %3217 = vmatprep.subr.mxu0 0.0
        %3218 = vmatpush1.msra.mxu0 0.0
        %3219 = vmatprep.subr.mxu0 0.0
        %3220 = vmatpush1.msra.mxu0 0.0
        %3221 = vmatprep.subr.mxu0 0.0
        %3222 = vmatpush1.msra.mxu0 0.0
        %3223 = vmatprep.subr.mxu0 0.0
        %3224 = vmatpush1.msra.mxu0 0.0
        %3225 = vmatprep.subr.mxu0 0.0
        %3226 = vmatpush1.msra.mxu0 0.0
        %3227 = vmatprep.subr.mxu0 0.0
        %3228 = vmatpush1.msra.mxu0 0.0
        %3229 = vmatprep.subr.mxu0 0.0
        %3230 = vmatpush1.msra.mxu0 0.0
        %3231 = vmatprep.subr.mxu0 0.0
        %3232 = vmatpush1.msra.mxu0 0.0
        %3233 = vmatprep.subr.mxu0 0.0
        %3234 = vmatpush1.msra.mxu0 0.0
        %3235 = vmatprep.subr.mxu0 0.0
        %3236 = vmatpush1.msra.mxu0 0.0
        %3237 = vmatprep.subr.mxu0 0.0
        %3238 = vmatpush1.msra.mxu0 0.0
        %3239 = vmatprep.subr.mxu0 0.0
        %3240 = vmatpush1.msra.mxu0 0.0
        %3241 = vmatprep.mubr.f32.mxu0 0.0
        %3242 = vmatmul.mubr.f32.gmra.mrb[0].mxu0 %v3172
        %v3243 = vpop.f32.mrb[0].mxu0
        %v3244 = vadd.f32 %v3170, %v3243
        %v3245 = vpop.f32.mrb[0].mxu0
        %3246 = vdwg.mxu0
        %vm3247 = vcmask 73728
        %3248 = vst.msk [vmem:[%s594] sm:$0x1] %vm3247, %v3244
        %s3249 = sand.u32 %s445, 1
        %s3250 = scalar_lea.sflag [#allocation5], %s3249
        %s3251 = sand.u32 %s445, 1
        %s3252 = scalar_lea.vmem [#allocation4], %s3251
        // Predicated region
        $region97: #{net_forward.1} parent=95 // pred_check
          %p3253 = pneg %p455
        $region98: #{net_forward.1} parent=95 // pred_check_branch
          %3255 = sbr.rel (%p3253) target = $region100
        $region99: #{net_forward.1} parent=95 // pred_region
          %s3257 = ssub.s32 16, 16
          %3258 = vsyncadd %s3250, %s3257
          %s3259 = smul.addr %s33, 16
          %s3260 = scalar_lea.hbm %s19, %s3259
          %s3262 = sshll.u32 %s3252, 4
          %s3263 = int_to_ptr.vmem [resolvable:$true] %s3262
          %3265 = dma.vmem_to_hbm [thread:$0]  %s3263, 16, %s3260, %s3250
        $region100: #{net_forward.1} parent=95 // pred_fallthru
          _
      $region96: #{net_forward.1} parent=5 // pred_fallthru
        _
      %p3266 = scmp.le.s32.totalorder 2, %s28
      // Predicated region
      $region101: #{net_forward.1} parent=5 // pred_check
        %p3267 = pneg %p3266
      $region102: #{net_forward.1} parent=5 // pred_check_branch
        %3269 = sbr.rel (%p3267) target = $region104
      $region103: #{net_forward.1} parent=5 // pred_region
        %s3270 = ssub.s32 %s28, 2
        // Predicated region
        $region105: #{net_forward.1} parent=103 // pred_check
          %p3271 = pneg %p461
        $region106: #{net_forward.1} parent=103 // pred_check_branch
          %3273 = sbr.rel (%p3271) target = $region108
        $region107: #{net_forward.1} parent=103 // pred_region
          %s3274 = sand.u32 %s446, 1
          %s3275 = scalar_lea.sflag [#allocation5], %s3274
          %s3276 = sand.u32 %s446, 1
          %s3277 = scalar_lea.vmem [#allocation4], %s3276
          %3278 = dma.done %s3275, 16
        $region108: #{net_forward.1} parent=103 // pred_fallthru
          _
      $region104: #{net_forward.1} parent=5 // pred_fallthru
        _
    $region6: #{net_forward.1} parent=1 // loop_footer
      %s32 = sadd.s32 1, %s28
    $region7: #{net_forward.1} parent=1 // loop_footer_branch
      %27 = sbr.rel target = $region3
    $region8: #{net_forward.1} parent=1 // loop_exit
      _
    %3279 = vsyncpa [#allocation5], 1
    %s3280 = scalar_lea.sflag [#allocation5], 1
    %3281 = vsyncpa %s3280, 1

</llo_original>
